<compile_context>
chip_gen: v5e
topology: v5e:2x2
jax: 0.10.0
libtpu: 0.0.40
codegen_flags: <defaults>
</compile_context>

<pallas_src>
import jax
import jax.numpy as jnp
from jax import lax
from jax.experimental import pallas as pl
from jax.experimental.pallas import tpu as pltpu

COMPUTE_DTYPE = jnp.bfloat16   # matmul-operand dtype; accumulation is f32
B_TILE = 8                     # batch tile = f32 sublane count
LANE = 128                     # lane width


def _ceil_to(x, m):
    return ((x + m - 1) // m) * m


# ----------------------------------------------------------------------------
# Pallas kernel: hoisted input projection + fused bidirectional recurrence +
# split output projection.  Everything is time-major (T, Bt, feature).
# ----------------------------------------------------------------------------
def bilstm_kernel(
    emb_ref,      # (T, Bt, Ep)    compute dtype
    len_ref,      # (Bt, 1)        int32 valid lengths
    wih_f_ref,    # (Ep, 4*Hp)     compute dtype, forward  W_ih^T (gate-blocked)
    whh_f_ref,    # (Hp, 4*Hp)     compute dtype, forward  W_hh^T
    b_f_ref,      # (1, 4*Hp)      f32, forward  b_ih + b_hh
    wih_b_ref,    # (Ep, 4*Hp)     backward
    whh_b_ref,    # (Hp, 4*Hp)     backward
    b_b_ref,      # (1, 4*Hp)      backward
    wlin_f_ref,   # (Hp, Op)       linear weights for forward hidden half
    wlin_b_ref,   # (Hp, Op)       linear weights for backward hidden half
    blin_ref,     # (1, Op)        f32 linear bias
    out_ref,      # (T, Bt, Op)    f32 scores, time-major
    gi_f_scr,     # (T, Bt, 4*Hp)  f32 scratch: hoisted input gates (fwd)
    gi_b_scr,     # (T, Bt, 4*Hp)  f32 scratch: hoisted input gates (bwd)
    hf_scr,       # (T, Bt, Hp)    compute-dtype scratch: fwd hidden states
    hb_scr,       # (T, Bt, Hp)    compute-dtype scratch: bwd hidden states
):
    T, Bt, Ep = emb_ref.shape
    Hp = whh_f_ref.shape[0]
    Op = out_ref.shape[2]
    cdt = whh_f_ref.dtype

    # ---- hoisted input projection: one MXU matmul per direction -------------
    x = emb_ref[...].reshape(T * Bt, Ep)
    gi_f_scr[...] = (jnp.dot(x, wih_f_ref[...],
                             preferred_element_type=jnp.float32)
                     + b_f_ref[...]).reshape(T, Bt, 4 * Hp)
    gi_b_scr[...] = (jnp.dot(x, wih_b_ref[...],
                             preferred_element_type=jnp.float32)
                     + b_b_ref[...]).reshape(T, Bt, 4 * Hp)

    whh_f = whh_f_ref[...]
    whh_b = whh_b_ref[...]
    lens = len_ref[...]                               # (Bt, 1) int32
    zeros = jnp.zeros((Bt, Hp), jnp.float32)

    def gates_to_hc(gates, c):
        # PyTorch gate order: i, f, g, o.  Slices are 128-lane aligned.
        i = jax.nn.sigmoid(gates[:, 0 * Hp:1 * Hp])
        f = jax.nn.sigmoid(gates[:, 1 * Hp:2 * Hp])
        g = jnp.tanh(gates[:, 2 * Hp:3 * Hp])
        o = jax.nn.sigmoid(gates[:, 3 * Hp:4 * Hp])
        c_new = f * c + i * g
        h_new = o * jnp.tanh(c_new)
        return h_new, c_new

    # ---- fused forward + backward recurrence --------------------------------
    def body(step, carry):
        hf, cf, hb, cb = carry
        tf = step
        tb = T - 1 - step

        # forward direction, time step tf
        g_f = gi_f_scr[tf] + jnp.dot(hf.astype(cdt), whh_f,
                                     preferred_element_type=jnp.float32)
        hf_new, cf_new = gates_to_hc(g_f, cf)
        vf = lens > tf                                # (Bt, 1) bool
        hf = jnp.where(vf, hf_new, hf)
        cf = jnp.where(vf, cf_new, cf)
        hf_scr[tf] = jnp.where(vf, hf_new, zeros).astype(cdt)

        # backward direction, time step tb (packed semantics: starts at len-1,
        # the zero init is carried unchanged while tb >= length)
        g_b = gi_b_scr[tb] + jnp.dot(hb.astype(cdt), whh_b,
                                     preferred_element_type=jnp.float32)
        hb_new, cb_new = gates_to_hc(g_b, cb)
        vb = lens > tb
        hb = jnp.where(vb, hb_new, hb)
        cb = jnp.where(vb, cb_new, cb)
        hb_scr[tb] = jnp.where(vb, hb_new, zeros).astype(cdt)

        return hf, cf, hb, cb

    init = (zeros, zeros, zeros, zeros)
    unroll = True if T <= 32 else 4
    lax.fori_loop(0, T, body, init, unroll=unroll)

    # ---- output projection: two accumulating dots, no concatenate -----------
    hf_all = hf_scr[...].reshape(T * Bt, Hp)
    hb_all = hb_scr[...].reshape(T * Bt, Hp)
    scores = (jnp.dot(hf_all, wlin_f_ref[...], preferred_element_type=jnp.float32)
              + jnp.dot(hb_all, wlin_b_ref[...], preferred_element_type=jnp.float32)
              + blin_ref[...])
    out_ref[...] = scores.reshape(T, Bt, Op)


# ----------------------------------------------------------------------------
# Wrapper: embedding gather (time-major), per-gate zero padding to
# (8, 128)-aligned shapes, batch-tiled pallas_call.
# ----------------------------------------------------------------------------
@jax.jit
def bilstm_forward(sents, lengths, params):
    emb_table = params["embedding"]                 # (V, E) f32
    B, T = sents.shape
    V, E = emb_table.shape
    H = params["whh_f"].shape[1]                    # whh_f: (4H, H)
    O = params["wlin"].shape[0]                     # wlin:  (O, 2H)

    Bp = _ceil_to(max(B, B_TILE), B_TILE)
    Ep = _ceil_to(E, LANE)
    Hp = _ceil_to(H, LANE)
    Op = _ceil_to(O, LANE)

    # ---- gate-blocked, zero-padded, transposed weights -----------------------
    def pack_ih(w, b_ih, b_hh):
        # w: (4H, E) -> (Ep, 4*Hp); gate k occupies columns [k*Hp, k*Hp + H).
        wp = jnp.transpose(w.reshape(4, H, E), (2, 0, 1))            # (E, 4, H)
        wp = jnp.pad(wp, ((0, Ep - E), (0, 0), (0, Hp - H)))
        bp = jnp.pad((b_ih + b_hh).reshape(4, H), ((0, 0), (0, Hp - H)))
        return (wp.reshape(Ep, 4 * Hp).astype(COMPUTE_DTYPE),
                bp.reshape(1, 4 * Hp).astype(jnp.float32))

    def pack_hh(w):
        # w: (4H, H) -> (Hp, 4*Hp)
        wp = jnp.transpose(w.reshape(4, H, H), (2, 0, 1))            # (Hin,4,Hout)
        wp = jnp.pad(wp, ((0, Hp - H), (0, 0), (0, Hp - H)))
        return wp.reshape(Hp, 4 * Hp).astype(COMPUTE_DTYPE)

    wih_f, b_f = pack_ih(params["wih_f"], params["bih_f"], params["bhh_f"])
    wih_b, b_b = pack_ih(params["wih_b"], params["bih_b"], params["bhh_b"])
    whh_f = pack_hh(params["whh_f"])
    whh_b = pack_hh(params["whh_b"])

    wlin_t = params["wlin"].T                                        # (2H, O)
    wlin_f = jnp.pad(wlin_t[:H], ((0, Hp - H), (0, Op - O))).astype(COMPUTE_DTYPE)
    wlin_b = jnp.pad(wlin_t[H:], ((0, Hp - H), (0, Op - O))).astype(COMPUTE_DTYPE)
    blin = jnp.pad(params["blin"].reshape(1, O),
                   ((0, 0), (0, Op - O))).astype(jnp.float32)

    # ---- activations: gather directly time-major, lane-padded E --------------
    table_p = jnp.pad(emb_table, ((0, 0), (0, Ep - E))).astype(COMPUTE_DTYPE)
    sents_p = jnp.pad(sents.astype(jnp.int32), ((0, Bp - B), (0, 0)))
    emb_tm = table_p[jnp.transpose(sents_p)]                         # (T, Bp, Ep)

    lens_p = jnp.pad(lengths.astype(jnp.int32), (0, Bp - B)).reshape(Bp, 1)

    scores_tm = pl.pallas_call(
        bilstm_kernel,
        out_shape=jax.ShapeDtypeStruct((T, Bp, Op), jnp.float32),
        grid=(Bp // B_TILE,),
        in_specs=[
            pl.BlockSpec((T, B_TILE, Ep), lambda b: (0, b, 0)),      # emb
            pl.BlockSpec((B_TILE, 1), lambda b: (b, 0)),             # lengths
            pl.BlockSpec((Ep, 4 * Hp), lambda b: (0, 0)),            # wih_f
            pl.BlockSpec((Hp, 4 * Hp), lambda b: (0, 0)),            # whh_f
            pl.BlockSpec((1, 4 * Hp), lambda b: (0, 0)),             # b_f
            pl.BlockSpec((Ep, 4 * Hp), lambda b: (0, 0)),            # wih_b
            pl.BlockSpec((Hp, 4 * Hp), lambda b: (0, 0)),            # whh_b
            pl.BlockSpec((1, 4 * Hp), lambda b: (0, 0)),             # b_b
            pl.BlockSpec((Hp, Op), lambda b: (0, 0)),                # wlin_f
            pl.BlockSpec((Hp, Op), lambda b: (0, 0)),                # wlin_b
            pl.BlockSpec((1, Op), lambda b: (0, 0)),                 # blin
        ],
        out_specs=pl.BlockSpec((T, B_TILE, Op), lambda b: (0, b, 0)),
        scratch_shapes=[
            pltpu.VMEM((T, B_TILE, 4 * Hp), jnp.float32),
            pltpu.VMEM((T, B_TILE, 4 * Hp), jnp.float32),
            pltpu.VMEM((T, B_TILE, Hp), COMPUTE_DTYPE),
            pltpu.VMEM((T, B_TILE, Hp), COMPUTE_DTYPE),
        ],
        compiler_params=pltpu.CompilerParams(
            dimension_semantics=("parallel",)),
    )(emb_tm, lens_p, wih_f, whh_f, b_f, wih_b, whh_b, b_b,
      wlin_f, wlin_b, blin)

    # TODO(synk): for very large T*B, write the kernel output batch-major per
    # tile to avoid this extra (small) XLA transpose pass.
    return jnp.transpose(scores_tm, (1, 0, 2))[:B, :, :O]


# ----------------------------------------------------------------------------
# Pure-JAX reference (same precision recipe) for a correctness self-check.
# ----------------------------------------------------------------------------
def bilstm_reference(sents, lengths, params):
    emb = params["embedding"][sents]                  # (B, T, E) f32
    B, T, E = emb.shape
    H = params["whh_f"].shape[1]
    lengths = lengths.astype(jnp.int32)

    def run_dir(wih, whh, bih, bhh, reverse):
        wih_t = wih.T.astype(COMPUTE_DTYPE)
        whh_t = whh.T.astype(COMPUTE_DTYPE)
        b = (bih + bhh)[None, :].astype(jnp.float32)
        h = jnp.zeros((B, H), jnp.float32)
        c = jnp.zeros((B, H), jnp.float32)
        outs = [None] * T
        order = range(T - 1, -1, -1) if reverse else range(T)
        for t in order:
            x_t = emb[:, t, :].astype(COMPUTE_DTYPE)
            gates = (jnp.dot(x_t, wih_t, preferred_element_type=jnp.float32)
                     + jnp.dot(h.astype(COMPUTE_DTYPE), whh_t,
                               preferred_element_type=jnp.float32) + b)
            i = jax.nn.sigmoid(gates[:, 0 * H:1 * H])
            f = jax.nn.sigmoid(gates[:, 1 * H:2 * H])
            g = jnp.tanh(gates[:, 2 * H:3 * H])
            o = jax.nn.sigmoid(gates[:, 3 * H:4 * H])
            c_new = f * c + i * g
            h_new = o * jnp.tanh(c_new)
            valid = (lengths > t)[:, None]
            h = jnp.where(valid, h_new, h)
            c = jnp.where(valid, c_new, c)
            outs[t] = jnp.where(valid, h_new, 0.0)
        return jnp.stack(outs, axis=1)                # (B, T, H)

    hf = run_dir(params["wih_f"], params["whh_f"],
                 params["bih_f"], params["bhh_f"], reverse=False)
    hb = run_dir(params["wih_b"], params["whh_b"],
                 params["bih_b"], params["bhh_b"], reverse=True)
    rnn_out = jnp.concatenate([hf, hb], axis=-1).astype(COMPUTE_DTYPE)
    wlin_t = params["wlin"].T.astype(COMPUTE_DTYPE)
    scores = (jnp.dot(rnn_out.reshape(B * T, 2 * H), wlin_t,
                      preferred_element_type=jnp.float32)
              + params["blin"][None, :])
    return scores.reshape(B, T, -1)


# ----------------------------------------------------------------------------
# Deterministic parameter init (PyTorch-shaped tensors).
# ----------------------------------------------------------------------------
def init_params(key, vocab_size, emb_size, hidden_size, out_size):
    keys = jax.random.split(key, 16)
    k = 1.0 / jnp.sqrt(hidden_size)

    def u(key, shape):
        return jax.random.uniform(key, shape, jnp.float32, minval=-k, maxval=k)

    H4 = 4 * hidden_size
    return {
        "embedding": jax.random.normal(keys[0], (vocab_size, emb_size),
                                       jnp.float32),
        # forward direction
        "wih_f": u(keys[1], (H4, emb_size)),
        "whh_f": u(keys[2], (H4, hidden_size)),
        "bih_f": u(keys[3], (H4,)),
        "bhh_f": u(keys[4], (H4,)),
        # backward direction
        "wih_b": u(keys[5], (H4, emb_size)),
        "whh_b": u(keys[6], (H4, hidden_size)),
        "bih_b": u(keys[7], (H4,)),
        "bhh_b": u(keys[8], (H4,)),
        # output linear: (out, 2H), (out,)
        "wlin": u(keys[9], (out_size, 2 * hidden_size)),
        "blin": u(keys[10], (out_size,)),
    }


if __name__ == "__main__":
    vocab_size, emb_size, hidden_size, out_size = 32, 16, 32, 8
    batch, seq_len = 2, 8

    key = jax.random.PRNGKey(0)
    k_param, k_sent = jax.random.split(key)

    params = init_params(k_param, vocab_size, emb_size, hidden_size, out_size)

    sents = jax.random.randint(k_sent, (batch, seq_len), 0, vocab_size,
                               dtype=jnp.int32)
    # pack_padded_sequence requires lengths sorted descending (enforce_sorted).
    lengths = jnp.array([seq_len, 5], dtype=jnp.int32)

    scores = bilstm_forward(sents, lengths, params)
    scores = jax.block_until_ready(scores)

    assert scores.shape == (batch, seq_len, out_size)
    assert scores.dtype == jnp.float32

    ref = bilstm_reference(sents, lengths, params)
    max_err = float(jnp.max(jnp.abs(scores - ref)))
    assert bool(jnp.allclose(scores, ref, atol=1e-2, rtol=1e-2)), max_err

    print("KERNEL_OK")
</pallas_src>

<mosaic_0001>
module attributes {stable_mosaic.version = 11 : i64} {
  func.func @bilstm_kernel(%arg0: i32, %arg1: memref<8x8x128xbf16, #tpu.memory_space<vmem>>, %arg2: memref<8x1xi32, #tpu.memory_space<vmem>>, %arg3: memref<128x512xbf16, #tpu.memory_space<vmem>>, %arg4: memref<128x512xbf16, #tpu.memory_space<vmem>>, %arg5: memref<1x512xf32, #tpu.memory_space<vmem>>, %arg6: memref<128x512xbf16, #tpu.memory_space<vmem>>, %arg7: memref<128x512xbf16, #tpu.memory_space<vmem>>, %arg8: memref<1x512xf32, #tpu.memory_space<vmem>>, %arg9: memref<128x128xbf16, #tpu.memory_space<vmem>>, %arg10: memref<128x128xbf16, #tpu.memory_space<vmem>>, %arg11: memref<1x128xf32, #tpu.memory_space<vmem>>, %arg12: memref<8x8x128xf32, #tpu.memory_space<vmem>>, %arg13: memref<8x8x512xf32, #tpu.memory_space<vmem>>, %arg14: memref<8x8x512xf32, #tpu.memory_space<vmem>>, %arg15: memref<8x8x128xbf16, #tpu.memory_space<vmem>>, %arg16: memref<8x8x128xbf16, #tpu.memory_space<vmem>>) attributes {dimension_semantics = [#tpu.dimension_semantics<parallel>], iteration_bounds = array<i64: 1>, scalar_prefetch = 0 : i64, scratch_operands = 4 : i64, tpu.core_type = #tpu.core_type<tc>, window_params = [{transform_indices = @transform_0, window_bounds = array<i64: 8, 8, 128>}, {transform_indices = @transform_1, window_bounds = array<i64: 8, 1>}, {pipeline_mode = #tpu.pipeline_mode<synchronous>, transform_indices = @transform_2, window_bounds = array<i64: 128, 512>}, {pipeline_mode = #tpu.pipeline_mode<synchronous>, transform_indices = @transform_3, window_bounds = array<i64: 128, 512>}, {pipeline_mode = #tpu.pipeline_mode<synchronous>, transform_indices = @transform_4, window_bounds = array<i64: 1, 512>}, {pipeline_mode = #tpu.pipeline_mode<synchronous>, transform_indices = @transform_5, window_bounds = array<i64: 128, 512>}, {pipeline_mode = #tpu.pipeline_mode<synchronous>, transform_indices = @transform_6, window_bounds = array<i64: 128, 512>}, {pipeline_mode = #tpu.pipeline_mode<synchronous>, transform_indices = @transform_7, window_bounds = array<i64: 1, 512>}, {pipeline_mode = #tpu.pipeline_mode<synchronous>, transform_indices = @transform_8, window_bounds = array<i64: 128, 128>}, {pipeline_mode = #tpu.pipeline_mode<synchronous>, transform_indices = @transform_9, window_bounds = array<i64: 128, 128>}, {pipeline_mode = #tpu.pipeline_mode<synchronous>, transform_indices = @transform_10, window_bounds = array<i64: 1, 128>}, {transform_indices = @transform_11, window_bounds = array<i64: 8, 8, 128>}]} {
    %c0 = arith.constant 0 : index
    %c0_0 = arith.constant 0 : index
    %c0_1 = arith.constant 0 : index
    %0 = vector.load %arg1[%c0, %c0_0, %c0_1] : memref<8x8x128xbf16, #tpu.memory_space<vmem>>, vector<8x8x128xbf16>
    %1 = vector.shape_cast %0 : vector<8x8x128xbf16> to vector<64x128xbf16>
    %c0_2 = arith.constant 0 : index
    %c0_3 = arith.constant 0 : index
    %2 = vector.load %arg3[%c0_2, %c0_3] : memref<128x512xbf16, #tpu.memory_space<vmem>>, vector<128x512xbf16>
    %cst = arith.constant dense<0.000000e+00> : vector<64x512xf32>
    %3 = tpu.matmul %1, %2, %cst {dimension_numbers = #tpu.dot_dimension_numbers<[1], [0], [0], [1], [0, 0, 1, 1], [], []>} : vector<64x128xbf16>, vector<128x512xbf16>, vector<64x512xf32> -> vector<64x512xf32>
    %c0_4 = arith.constant 0 : index
    %c0_5 = arith.constant 0 : index
    %4 = vector.load %arg5[%c0_4, %c0_5] : memref<1x512xf32, #tpu.memory_space<vmem>>, vector<1x512xf32>
    %5 = vector.broadcast %4 : vector<1x512xf32> to vector<64x512xf32>
    %6 = arith.addf %3, %5 : vector<64x512xf32>
    %7 = vector.shape_cast %6 : vector<64x512xf32> to vector<8x8x512xf32>
    %c0_6 = arith.constant 0 : index
    %c0_7 = arith.constant 0 : index
    %c0_8 = arith.constant 0 : index
    %8 = vector.load %arg13[%c0_6, %c0_7, %c0_8] : memref<8x8x512xf32, #tpu.memory_space<vmem>>, vector<8x8x512xf32>
    tpu.vector_store %arg13[%c0_6, %c0_7, %c0_8], %7 {strides = array<i32>} : memref<8x8x512xf32, #tpu.memory_space<vmem>>, vector<8x8x512xf32>,
    %c0_9 = arith.constant 0 : index
    %c0_10 = arith.constant 0 : index
    %9 = vector.load %arg6[%c0_9, %c0_10] : memref<128x512xbf16, #tpu.memory_space<vmem>>, vector<128x512xbf16>
    %cst_11 = arith.constant dense<0.000000e+00> : vector<64x512xf32>
    %10 = tpu.matmul %1, %9, %cst_11 {dimension_numbers = #tpu.dot_dimension_numbers<[1], [0], [0], [1], [0, 0, 1, 1], [], []>} : vector<64x128xbf16>, vector<128x512xbf16>, vector<64x512xf32> -> vector<64x512xf32>
    %c0_12 = arith.constant 0 : index
    %c0_13 = arith.constant 0 : index
    %11 = vector.load %arg8[%c0_12, %c0_13] : memref<1x512xf32, #tpu.memory_space<vmem>>, vector<1x512xf32>
    %12 = vector.broadcast %11 : vector<1x512xf32> to vector<64x512xf32>
    %13 = arith.addf %10, %12 : vector<64x512xf32>
    %14 = vector.shape_cast %13 : vector<64x512xf32> to vector<8x8x512xf32>
    %c0_14 = arith.constant 0 : index
    %c0_15 = arith.constant 0 : index
    %c0_16 = arith.constant 0 : index
    %15 = vector.load %arg14[%c0_14, %c0_15, %c0_16] : memref<8x8x512xf32, #tpu.memory_space<vmem>>, vector<8x8x512xf32>
    tpu.vector_store %arg14[%c0_14, %c0_15, %c0_16], %14 {strides = array<i32>} : memref<8x8x512xf32, #tpu.memory_space<vmem>>, vector<8x8x512xf32>,
    %c0_17 = arith.constant 0 : index
    %c0_18 = arith.constant 0 : index
    %16 = vector.load %arg4[%c0_17, %c0_18] : memref<128x512xbf16, #tpu.memory_space<vmem>>, vector<128x512xbf16>
    %c0_19 = arith.constant 0 : index
    %c0_20 = arith.constant 0 : index
    %17 = vector.load %arg7[%c0_19, %c0_20] : memref<128x512xbf16, #tpu.memory_space<vmem>>, vector<128x512xbf16>
    %c0_21 = arith.constant 0 : index
    %c0_22 = arith.constant 0 : index
    %18 = vector.load %arg2[%c0_21, %c0_22] : memref<8x1xi32, #tpu.memory_space<vmem>>, vector<8x1xi32>
    %cst_23 = arith.constant 0.000000e+00 : f32
    %19 = vector.broadcast %cst_23 : f32 to vector<8x128xf32>
    %c0_i32 = arith.constant 0 : i32
    %c7_i32 = arith.constant 7 : i32
    %20 = arith.subi %c7_i32, %c0_i32 : i32
    %21 = arith.index_cast %c0_i32 : i32 to index
    %c0_24 = arith.constant 0 : index
    %c0_25 = arith.constant 0 : index
    %22 = vector.load %arg13[%21, %c0_24, %c0_25] : memref<8x8x512xf32, #tpu.memory_space<vmem>>, vector<1x8x512xf32>
    %23 = vector.shape_cast %22 : vector<1x8x512xf32> to vector<8x512xf32>
    %24 = arith.truncf %19 : vector<8x128xf32> to vector<8x128xbf16>
    %cst_26 = arith.constant dense<0.000000e+00> : vector<8x512xf32>
    %25 = tpu.matmul %24, %16, %cst_26 {dimension_numbers = #tpu.dot_dimension_numbers<[1], [0], [0], [1], [0, 0, 1, 1], [], []>} : vector<8x128xbf16>, vector<128x512xbf16>, vector<8x512xf32> -> vector<8x512xf32>
    %26 = arith.addf %23, %25 : vector<8x512xf32>
    %27 = vector.extract_strided_slice %26 {offsets = [0, 0], sizes = [8, 128], strides = [1, 1]} : vector<8x512xf32> to vector<8x128xf32>
    %28 = arith.negf %27 : vector<8x128xf32>
    %29 = math.exp %28 : vector<8x128xf32>
    %cst_27 = arith.constant 1.000000e+00 : f32
    %30 = vector.broadcast %cst_27 : f32 to vector<8x128xf32>
    %31 = arith.addf %30, %29 : vector<8x128xf32>
    %32 = arith.divf %30, %31 : vector<8x128xf32>
    %33 = vector.extract_strided_slice %26 {offsets = [0, 128], sizes = [8, 128], strides = [1, 1]} : vector<8x512xf32> to vector<8x128xf32>
    %34 = arith.negf %33 : vector<8x128xf32>
    %35 = math.exp %34 : vector<8x128xf32>
    %cst_28 = arith.constant 1.000000e+00 : f32
    %36 = vector.broadcast %cst_28 : f32 to vector<8x128xf32>
    %37 = arith.addf %36, %35 : vector<8x128xf32>
    %38 = arith.divf %36, %37 : vector<8x128xf32>
    %39 = vector.extract_strided_slice %26 {offsets = [0, 256], sizes = [8, 128], strides = [1, 1]} : vector<8x512xf32> to vector<8x128xf32>
    %40 = math.tanh %39 : vector<8x128xf32>
    %41 = vector.extract_strided_slice %26 {offsets = [0, 384], sizes = [8, 128], strides = [1, 1]} : vector<8x512xf32> to vector<8x128xf32>
    %42 = arith.negf %41 : vector<8x128xf32>
    %43 = math.exp %42 : vector<8x128xf32>
    %cst_29 = arith.constant 1.000000e+00 : f32
    %44 = vector.broadcast %cst_29 : f32 to vector<8x128xf32>
    %45 = arith.addf %44, %43 : vector<8x128xf32>
    %46 = arith.divf %44, %45 : vector<8x128xf32>
    %47 = arith.mulf %38, %19 : vector<8x128xf32>
    %48 = arith.mulf %32, %40 : vector<8x128xf32>
    %49 = arith.addf %47, %48 : vector<8x128xf32>
    %50 = math.tanh %49 : vector<8x128xf32>
    %51 = arith.mulf %46, %50 : vector<8x128xf32>
    %52 = vector.broadcast %c0_i32 : i32 to vector<8x1xi32>
    %53 = arith.cmpi sgt, %18, %52 : vector<8x1xi32>
    %54 = vector.shape_cast %53 : vector<8x1xi1> to vector<8x1xi1>
    %55 = vector.broadcast %54 : vector<8x1xi1> to vector<8x128xi1>
    %56 = arith.select %55, %51, %19 : vector<8x128xi1>, vector<8x128xf32>
    %57 = vector.shape_cast %53 : vector<8x1xi1> to vector<8x1xi1>
    %58 = vector.broadcast %57 : vector<8x1xi1> to vector<8x128xi1>
    %59 = arith.select %58, %49, %19 : vector<8x128xi1>, vector<8x128xf32>
    %60 = vector.shape_cast %53 : vector<8x1xi1> to vector<8x1xi1>
    %61 = vector.broadcast %60 : vector<8x1xi1> to vector<8x128xi1>
    %62 = arith.select %61, %51, %19 : vector<8x128xi1>, vector<8x128xf32>
    %63 = arith.truncf %62 : vector<8x128xf32> to vector<8x128xbf16>
    %64 = arith.index_cast %c0_i32 : i32 to index
    %c0_30 = arith.constant 0 : index
    %c0_31 = arith.constant 0 : index
    %65 = vector.load %arg15[%64, %c0_30, %c0_31] : memref<8x8x128xbf16, #tpu.memory_space<vmem>>, vector<1x8x128xbf16>
    %66 = vector.shape_cast %65 : vector<1x8x128xbf16> to vector<8x128xbf16>
    %67 = vector.shape_cast %63 : vector<8x128xbf16> to vector<1x8x128xbf16>
    tpu.vector_store %arg15[%64, %c0_30, %c0_31], %67 {strides = array<i32>} : memref<8x8x128xbf16, #tpu.memory_space<vmem>>, vector<1x8x128xbf16>,
    %68 = arith.index_cast %20 : i32 to index
    %c0_32 = arith.constant 0 : index
    %c0_33 = arith.constant 0 : index
    %69 = vector.load %arg14[%68, %c0_32, %c0_33] : memref<8x8x512xf32, #tpu.memory_space<vmem>>, vector<1x8x512xf32>
    %70 = vector.shape_cast %69 : vector<1x8x512xf32> to vector<8x512xf32>
    %71 = arith.truncf %19 : vector<8x128xf32> to vector<8x128xbf16>
    %cst_34 = arith.constant dense<0.000000e+00> : vector<8x512xf32>
    %72 = tpu.matmul %71, %17, %cst_34 {dimension_numbers = #tpu.dot_dimension_numbers<[1], [0], [0], [1], [0, 0, 1, 1], [], []>} : vector<8x128xbf16>, vector<128x512xbf16>, vector<8x512xf32> -> vector<8x512xf32>
    %73 = arith.addf %70, %72 : vector<8x512xf32>
    %74 = vector.extract_strided_slice %73 {offsets = [0, 0], sizes = [8, 128], strides = [1, 1]} : vector<8x512xf32> to vector<8x128xf32>
    %75 = arith.negf %74 : vector<8x128xf32>
    %76 = math.exp %75 : vector<8x128xf32>
    %cst_35 = arith.constant 1.000000e+00 : f32
    %77 = vector.broadcast %cst_35 : f32 to vector<8x128xf32>
    %78 = arith.addf %77, %76 : vector<8x128xf32>
    %79 = arith.divf %77, %78 : vector<8x128xf32>
    %80 = vector.extract_strided_slice %73 {offsets = [0, 128], sizes = [8, 128], strides = [1, 1]} : vector<8x512xf32> to vector<8x128xf32>
    %81 = arith.negf %80 : vector<8x128xf32>
    %82 = math.exp %81 : vector<8x128xf32>
    %cst_36 = arith.constant 1.000000e+00 : f32
    %83 = vector.broadcast %cst_36 : f32 to vector<8x128xf32>
    %84 = arith.addf %83, %82 : vector<8x128xf32>
    %85 = arith.divf %83, %84 : vector<8x128xf32>
    %86 = vector.extract_strided_slice %73 {offsets = [0, 256], sizes = [8, 128], strides = [1, 1]} : vector<8x512xf32> to vector<8x128xf32>
    %87 = math.tanh %86 : vector<8x128xf32>
    %88 = vector.extract_strided_slice %73 {offsets = [0, 384], sizes = [8, 128], strides = [1, 1]} : vector<8x512xf32> to vector<8x128xf32>
    %89 = arith.negf %88 : vector<8x128xf32>
    %90 = math.exp %89 : vector<8x128xf32>
    %cst_37 = arith.constant 1.000000e+00 : f32
    %91 = vector.broadcast %cst_37 : f32 to vector<8x128xf32>
    %92 = arith.addf %91, %90 : vector<8x128xf32>
    %93 = arith.divf %91, %92 : vector<8x128xf32>
    %94 = arith.mulf %85, %19 : vector<8x128xf32>
    %95 = arith.mulf %79, %87 : vector<8x128xf32>
    %96 = arith.addf %94, %95 : vector<8x128xf32>
    %97 = math.tanh %96 : vector<8x128xf32>
    %98 = arith.mulf %93, %97 : vector<8x128xf32>
    %99 = vector.broadcast %20 : i32 to vector<8x1xi32>
    %100 = arith.cmpi sgt, %18, %99 : vector<8x1xi32>
    %101 = vector.shape_cast %100 : vector<8x1xi1> to vector<8x1xi1>
    %102 = vector.broadcast %101 : vector<8x1xi1> to vector<8x128xi1>
    %103 = arith.select %102, %98, %19 : vector<8x128xi1>, vector<8x128xf32>
    %104 = vector.shape_cast %100 : vector<8x1xi1> to vector<8x1xi1>
    %105 = vector.broadcast %104 : vector<8x1xi1> to vector<8x128xi1>
    %106 = arith.select %105, %96, %19 : vector<8x128xi1>, vector<8x128xf32>
    %107 = vector.shape_cast %100 : vector<8x1xi1> to vector<8x1xi1>
    %108 = vector.broadcast %107 : vector<8x1xi1> to vector<8x128xi1>
    %109 = arith.select %108, %98, %19 : vector<8x128xi1>, vector<8x128xf32>
    %110 = arith.truncf %109 : vector<8x128xf32> to vector<8x128xbf16>
    %111 = arith.index_cast %20 : i32 to index
    %c0_38 = arith.constant 0 : index
    %c0_39 = arith.constant 0 : index
    %112 = vector.load %arg16[%111, %c0_38, %c0_39] : memref<8x8x128xbf16, #tpu.memory_space<vmem>>, vector<1x8x128xbf16>
    %113 = vector.shape_cast %112 : vector<1x8x128xbf16> to vector<8x128xbf16>
    %114 = vector.shape_cast %110 : vector<8x128xbf16> to vector<1x8x128xbf16>
    tpu.vector_store %arg16[%111, %c0_38, %c0_39], %114 {strides = array<i32>} : memref<8x8x128xbf16, #tpu.memory_space<vmem>>, vector<1x8x128xbf16>,
    %c1_i32 = arith.constant 1 : i32
    %c7_i32_40 = arith.constant 7 : i32
    %115 = arith.subi %c7_i32_40, %c1_i32 : i32
    %116 = arith.index_cast %c1_i32 : i32 to index
    %c0_41 = arith.constant 0 : index
    %c0_42 = arith.constant 0 : index
    %117 = vector.load %arg13[%116, %c0_41, %c0_42] : memref<8x8x512xf32, #tpu.memory_space<vmem>>, vector<1x8x512xf32>
    %118 = vector.shape_cast %117 : vector<1x8x512xf32> to vector<8x512xf32>
    %119 = arith.truncf %56 : vector<8x128xf32> to vector<8x128xbf16>
    %cst_43 = arith.constant dense<0.000000e+00> : vector<8x512xf32>
    %120 = tpu.matmul %119, %16, %cst_43 {dimension_numbers = #tpu.dot_dimension_numbers<[1], [0], [0], [1], [0, 0, 1, 1], [], []>} : vector<8x128xbf16>, vector<128x512xbf16>, vector<8x512xf32> -> vector<8x512xf32>
    %121 = arith.addf %118, %120 : vector<8x512xf32>
    %122 = vector.extract_strided_slice %121 {offsets = [0, 0], sizes = [8, 128], strides = [1, 1]} : vector<8x512xf32> to vector<8x128xf32>
    %123 = arith.negf %122 : vector<8x128xf32>
    %124 = math.exp %123 : vector<8x128xf32>
    %cst_44 = arith.constant 1.000000e+00 : f32
    %125 = vector.broadcast %cst_44 : f32 to vector<8x128xf32>
    %126 = arith.addf %125, %124 : vector<8x128xf32>
    %127 = arith.divf %125, %126 : vector<8x128xf32>
    %128 = vector.extract_strided_slice %121 {offsets = [0, 128], sizes = [8, 128], strides = [1, 1]} : vector<8x512xf32> to vector<8x128xf32>
    %129 = arith.negf %128 : vector<8x128xf32>
    %130 = math.exp %129 : vector<8x128xf32>
    %cst_45 = arith.constant 1.000000e+00 : f32
    %131 = vector.broadcast %cst_45 : f32 to vector<8x128xf32>
    %132 = arith.addf %131, %130 : vector<8x128xf32>
    %133 = arith.divf %131, %132 : vector<8x128xf32>
    %134 = vector.extract_strided_slice %121 {offsets = [0, 256], sizes = [8, 128], strides = [1, 1]} : vector<8x512xf32> to vector<8x128xf32>
    %135 = math.tanh %134 : vector<8x128xf32>
    %136 = vector.extract_strided_slice %121 {offsets = [0, 384], sizes = [8, 128], strides = [1, 1]} : vector<8x512xf32> to vector<8x128xf32>
    %137 = arith.negf %136 : vector<8x128xf32>
    %138 = math.exp %137 : vector<8x128xf32>
    %cst_46 = arith.constant 1.000000e+00 : f32
    %139 = vector.broadcast %cst_46 : f32 to vector<8x128xf32>
    %140 = arith.addf %139, %138 : vector<8x128xf32>
    %141 = arith.divf %139, %140 : vector<8x128xf32>
    %142 = arith.mulf %133, %59 : vector<8x128xf32>
    %143 = arith.mulf %127, %135 : vector<8x128xf32>
    %144 = arith.addf %142, %143 : vector<8x128xf32>
    %145 = math.tanh %144 : vector<8x128xf32>
    %146 = arith.mulf %141, %145 : vector<8x128xf32>
    %147 = vector.broadcast %c1_i32 : i32 to vector<8x1xi32>
    %148 = arith.cmpi sgt, %18, %147 : vector<8x1xi32>
    %149 = vector.shape_cast %148 : vector<8x1xi1> to vector<8x1xi1>
    %150 = vector.broadcast %149 : vector<8x1xi1> to vector<8x128xi1>
    %151 = arith.select %150, %146, %56 : vector<8x128xi1>, vector<8x128xf32>
    %152 = vector.shape_cast %148 : vector<8x1xi1> to vector<8x1xi1>
    %153 = vector.broadcast %152 : vector<8x1xi1> to vector<8x128xi1>
    %154 = arith.select %153, %144, %59 : vector<8x128xi1>, vector<8x128xf32>
    %155 = vector.shape_cast %148 : vector<8x1xi1> to vector<8x1xi1>
    %156 = vector.broadcast %155 : vector<8x1xi1> to vector<8x128xi1>
    %157 = arith.select %156, %146, %19 : vector<8x128xi1>, vector<8x128xf32>
    %158 = arith.truncf %157 : vector<8x128xf32> to vector<8x128xbf16>
    %159 = arith.index_cast %c1_i32 : i32 to index
    %c0_47 = arith.constant 0 : index
    %c0_48 = arith.constant 0 : index
    %160 = vector.load %arg15[%159, %c0_47, %c0_48] : memref<8x8x128xbf16, #tpu.memory_space<vmem>>, vector<1x8x128xbf16>
    %161 = vector.shape_cast %160 : vector<1x8x128xbf16> to vector<8x128xbf16>
    %162 = vector.shape_cast %158 : vector<8x128xbf16> to vector<1x8x128xbf16>
    tpu.vector_store %arg15[%159, %c0_47, %c0_48], %162 {strides = array<i32>} : memref<8x8x128xbf16, #tpu.memory_space<vmem>>, vector<1x8x128xbf16>,
    %163 = arith.index_cast %115 : i32 to index
    %c0_49 = arith.constant 0 : index
    %c0_50 = arith.constant 0 : index
    %164 = vector.load %arg14[%163, %c0_49, %c0_50] : memref<8x8x512xf32, #tpu.memory_space<vmem>>, vector<1x8x512xf32>
    %165 = vector.shape_cast %164 : vector<1x8x512xf32> to vector<8x512xf32>
    %166 = arith.truncf %103 : vector<8x128xf32> to vector<8x128xbf16>
    %cst_51 = arith.constant dense<0.000000e+00> : vector<8x512xf32>
    %167 = tpu.matmul %166, %17, %cst_51 {dimension_numbers = #tpu.dot_dimension_numbers<[1], [0], [0], [1], [0, 0, 1, 1], [], []>} : vector<8x128xbf16>, vector<128x512xbf16>, vector<8x512xf32> -> vector<8x512xf32>
    %168 = arith.addf %165, %167 : vector<8x512xf32>
    %169 = vector.extract_strided_slice %168 {offsets = [0, 0], sizes = [8, 128], strides = [1, 1]} : vector<8x512xf32> to vector<8x128xf32>
    %170 = arith.negf %169 : vector<8x128xf32>
    %171 = math.exp %170 : vector<8x128xf32>
    %cst_52 = arith.constant 1.000000e+00 : f32
    %172 = vector.broadcast %cst_52 : f32 to vector<8x128xf32>
    %173 = arith.addf %172, %171 : vector<8x128xf32>
    %174 = arith.divf %172, %173 : vector<8x128xf32>
    %175 = vector.extract_strided_slice %168 {offsets = [0, 128], sizes = [8, 128], strides = [1, 1]} : vector<8x512xf32> to vector<8x128xf32>
    %176 = arith.negf %175 : vector<8x128xf32>
    %177 = math.exp %176 : vector<8x128xf32>
    %cst_53 = arith.constant 1.000000e+00 : f32
    %178 = vector.broadcast %cst_53 : f32 to vector<8x128xf32>
    %179 = arith.addf %178, %177 : vector<8x128xf32>
    %180 = arith.divf %178, %179 : vector<8x128xf32>
    %181 = vector.extract_strided_slice %168 {offsets = [0, 256], sizes = [8, 128], strides = [1, 1]} : vector<8x512xf32> to vector<8x128xf32>
    %182 = math.tanh %181 : vector<8x128xf32>
    %183 = vector.extract_strided_slice %168 {offsets = [0, 384], sizes = [8, 128], strides = [1, 1]} : vector<8x512xf32> to vector<8x128xf32>
    %184 = arith.negf %183 : vector<8x128xf32>
    %185 = math.exp %184 : vector<8x128xf32>
    %cst_54 = arith.constant 1.000000e+00 : f32
    %186 = vector.broadcast %cst_54 : f32 to vector<8x128xf32>
    %187 = arith.addf %186, %185 : vector<8x128xf32>
    %188 = arith.divf %186, %187 : vector<8x128xf32>
    %189 = arith.mulf %180, %106 : vector<8x128xf32>
    %190 = arith.mulf %174, %182 : vector<8x128xf32>
    %191 = arith.addf %189, %190 : vector<8x128xf32>
    %192 = math.tanh %191 : vector<8x128xf32>
    %193 = arith.mulf %188, %192 : vector<8x128xf32>
    %194 = vector.broadcast %115 : i32 to vector<8x1xi32>
    %195 = arith.cmpi sgt, %18, %194 : vector<8x1xi32>
    %196 = vector.shape_cast %195 : vector<8x1xi1> to vector<8x1xi1>
    %197 = vector.broadcast %196 : vector<8x1xi1> to vector<8x128xi1>
    %198 = arith.select %197, %193, %103 : vector<8x128xi1>, vector<8x128xf32>
    %199 = vector.shape_cast %195 : vector<8x1xi1> to vector<8x1xi1>
    %200 = vector.broadcast %199 : vector<8x1xi1> to vector<8x128xi1>
    %201 = arith.select %200, %191, %106 : vector<8x128xi1>, vector<8x128xf32>
    %202 = vector.shape_cast %195 : vector<8x1xi1> to vector<8x1xi1>
    %203 = vector.broadcast %202 : vector<8x1xi1> to vector<8x128xi1>
    %204 = arith.select %203, %193, %19 : vector<8x128xi1>, vector<8x128xf32>
    %205 = arith.truncf %204 : vector<8x128xf32> to vector<8x128xbf16>
    %206 = arith.index_cast %115 : i32 to index
    %c0_55 = arith.constant 0 : index
    %c0_56 = arith.constant 0 : index
    %207 = vector.load %arg16[%206, %c0_55, %c0_56] : memref<8x8x128xbf16, #tpu.memory_space<vmem>>, vector<1x8x128xbf16>
    %208 = vector.shape_cast %207 : vector<1x8x128xbf16> to vector<8x128xbf16>
    %209 = vector.shape_cast %205 : vector<8x128xbf16> to vector<1x8x128xbf16>
    tpu.vector_store %arg16[%206, %c0_55, %c0_56], %209 {strides = array<i32>} : memref<8x8x128xbf16, #tpu.memory_space<vmem>>, vector<1x8x128xbf16>,
    %c2_i32 = arith.constant 2 : i32
    %c7_i32_57 = arith.constant 7 : i32
    %210 = arith.subi %c7_i32_57, %c2_i32 : i32
    %211 = arith.index_cast %c2_i32 : i32 to index
    %c0_58 = arith.constant 0 : index
    %c0_59 = arith.constant 0 : index
    %212 = vector.load %arg13[%211, %c0_58, %c0_59] : memref<8x8x512xf32, #tpu.memory_space<vmem>>, vector<1x8x512xf32>
    %213 = vector.shape_cast %212 : vector<1x8x512xf32> to vector<8x512xf32>
    %214 = arith.truncf %151 : vector<8x128xf32> to vector<8x128xbf16>
    %cst_60 = arith.constant dense<0.000000e+00> : vector<8x512xf32>
    %215 = tpu.matmul %214, %16, %cst_60 {dimension_numbers = #tpu.dot_dimension_numbers<[1], [0], [0], [1], [0, 0, 1, 1], [], []>} : vector<8x128xbf16>, vector<128x512xbf16>, vector<8x512xf32> -> vector<8x512xf32>
    %216 = arith.addf %213, %215 : vector<8x512xf32>
    %217 = vector.extract_strided_slice %216 {offsets = [0, 0], sizes = [8, 128], strides = [1, 1]} : vector<8x512xf32> to vector<8x128xf32>
    %218 = arith.negf %217 : vector<8x128xf32>
    %219 = math.exp %218 : vector<8x128xf32>
    %cst_61 = arith.constant 1.000000e+00 : f32
    %220 = vector.broadcast %cst_61 : f32 to vector<8x128xf32>
    %221 = arith.addf %220, %219 : vector<8x128xf32>
    %222 = arith.divf %220, %221 : vector<8x128xf32>
    %223 = vector.extract_strided_slice %216 {offsets = [0, 128], sizes = [8, 128], strides = [1, 1]} : vector<8x512xf32> to vector<8x128xf32>
    %224 = arith.negf %223 : vector<8x128xf32>
    %225 = math.exp %224 : vector<8x128xf32>
    %cst_62 = arith.constant 1.000000e+00 : f32
    %226 = vector.broadcast %cst_62 : f32 to vector<8x128xf32>
    %227 = arith.addf %226, %225 : vector<8x128xf32>
    %228 = arith.divf %226, %227 : vector<8x128xf32>
    %229 = vector.extract_strided_slice %216 {offsets = [0, 256], sizes = [8, 128], strides = [1, 1]} : vector<8x512xf32> to vector<8x128xf32>
    %230 = math.tanh %229 : vector<8x128xf32>
    %231 = vector.extract_strided_slice %216 {offsets = [0, 384], sizes = [8, 128], strides = [1, 1]} : vector<8x512xf32> to vector<8x128xf32>
    %232 = arith.negf %231 : vector<8x128xf32>
    %233 = math.exp %232 : vector<8x128xf32>
    %cst_63 = arith.constant 1.000000e+00 : f32
    %234 = vector.broadcast %cst_63 : f32 to vector<8x128xf32>
    %235 = arith.addf %234, %233 : vector<8x128xf32>
    %236 = arith.divf %234, %235 : vector<8x128xf32>
    %237 = arith.mulf %228, %154 : vector<8x128xf32>
    %238 = arith.mulf %222, %230 : vector<8x128xf32>
    %239 = arith.addf %237, %238 : vector<8x128xf32>
    %240 = math.tanh %239 : vector<8x128xf32>
    %241 = arith.mulf %236, %240 : vector<8x128xf32>
    %242 = vector.broadcast %c2_i32 : i32 to vector<8x1xi32>
    %243 = arith.cmpi sgt, %18, %242 : vector<8x1xi32>
    %244 = vector.shape_cast %243 : vector<8x1xi1> to vector<8x1xi1>
    %245 = vector.broadcast %244 : vector<8x1xi1> to vector<8x128xi1>
    %246 = arith.select %245, %241, %151 : vector<8x128xi1>, vector<8x128xf32>
    %247 = vector.shape_cast %243 : vector<8x1xi1> to vector<8x1xi1>
    %248 = vector.broadcast %247 : vector<8x1xi1> to vector<8x128xi1>
    %249 = arith.select %248, %239, %154 : vector<8x128xi1>, vector<8x128xf32>
    %250 = vector.shape_cast %243 : vector<8x1xi1> to vector<8x1xi1>
    %251 = vector.broadcast %250 : vector<8x1xi1> to vector<8x128xi1>
    %252 = arith.select %251, %241, %19 : vector<8x128xi1>, vector<8x128xf32>
    %253 = arith.truncf %252 : vector<8x128xf32> to vector<8x128xbf16>
    %254 = arith.index_cast %c2_i32 : i32 to index
    %c0_64 = arith.constant 0 : index
    %c0_65 = arith.constant 0 : index
    %255 = vector.load %arg15[%254, %c0_64, %c0_65] : memref<8x8x128xbf16, #tpu.memory_space<vmem>>, vector<1x8x128xbf16>
    %256 = vector.shape_cast %255 : vector<1x8x128xbf16> to vector<8x128xbf16>
    %257 = vector.shape_cast %253 : vector<8x128xbf16> to vector<1x8x128xbf16>
    tpu.vector_store %arg15[%254, %c0_64, %c0_65], %257 {strides = array<i32>} : memref<8x8x128xbf16, #tpu.memory_space<vmem>>, vector<1x8x128xbf16>,
    %258 = arith.index_cast %210 : i32 to index
    %c0_66 = arith.constant 0 : index
    %c0_67 = arith.constant 0 : index
    %259 = vector.load %arg14[%258, %c0_66, %c0_67] : memref<8x8x512xf32, #tpu.memory_space<vmem>>, vector<1x8x512xf32>
    %260 = vector.shape_cast %259 : vector<1x8x512xf32> to vector<8x512xf32>
    %261 = arith.truncf %198 : vector<8x128xf32> to vector<8x128xbf16>
    %cst_68 = arith.constant dense<0.000000e+00> : vector<8x512xf32>
    %262 = tpu.matmul %261, %17, %cst_68 {dimension_numbers = #tpu.dot_dimension_numbers<[1], [0], [0], [1], [0, 0, 1, 1], [], []>} : vector<8x128xbf16>, vector<128x512xbf16>, vector<8x512xf32> -> vector<8x512xf32>
    %263 = arith.addf %260, %262 : vector<8x512xf32>
    %264 = vector.extract_strided_slice %263 {offsets = [0, 0], sizes = [8, 128], strides = [1, 1]} : vector<8x512xf32> to vector<8x128xf32>
    %265 = arith.negf %264 : vector<8x128xf32>
    %266 = math.exp %265 : vector<8x128xf32>
    %cst_69 = arith.constant 1.000000e+00 : f32
    %267 = vector.broadcast %cst_69 : f32 to vector<8x128xf32>
    %268 = arith.addf %267, %266 : vector<8x128xf32>
    %269 = arith.divf %267, %268 : vector<8x128xf32>
    %270 = vector.extract_strided_slice %263 {offsets = [0, 128], sizes = [8, 128], strides = [1, 1]} : vector<8x512xf32> to vector<8x128xf32>
    %271 = arith.negf %270 : vector<8x128xf32>
    %272 = math.exp %271 : vector<8x128xf32>
    %cst_70 = arith.constant 1.000000e+00 : f32
    %273 = vector.broadcast %cst_70 : f32 to vector<8x128xf32>
    %274 = arith.addf %273, %272 : vector<8x128xf32>
    %275 = arith.divf %273, %274 : vector<8x128xf32>
    %276 = vector.extract_strided_slice %263 {offsets = [0, 256], sizes = [8, 128], strides = [1, 1]} : vector<8x512xf32> to vector<8x128xf32>
    %277 = math.tanh %276 : vector<8x128xf32>
    %278 = vector.extract_strided_slice %263 {offsets = [0, 384], sizes = [8, 128], strides = [1, 1]} : vector<8x512xf32> to vector<8x128xf32>
    %279 = arith.negf %278 : vector<8x128xf32>
    %280 = math.exp %279 : vector<8x128xf32>
    %cst_71 = arith.constant 1.000000e+00 : f32
    %281 = vector.broadcast %cst_71 : f32 to vector<8x128xf32>
    %282 = arith.addf %281, %280 : vector<8x128xf32>
    %283 = arith.divf %281, %282 : vector<8x128xf32>
    %284 = arith.mulf %275, %201 : vector<8x128xf32>
    %285 = arith.mulf %269, %277 : vector<8x128xf32>
    %286 = arith.addf %284, %285 : vector<8x128xf32>
    %287 = math.tanh %286 : vector<8x128xf32>
    %288 = arith.mulf %283, %287 : vector<8x128xf32>
    %289 = vector.broadcast %210 : i32 to vector<8x1xi32>
    %290 = arith.cmpi sgt, %18, %289 : vector<8x1xi32>
    %291 = vector.shape_cast %290 : vector<8x1xi1> to vector<8x1xi1>
    %292 = vector.broadcast %291 : vector<8x1xi1> to vector<8x128xi1>
    %293 = arith.select %292, %288, %198 : vector<8x128xi1>, vector<8x128xf32>
    %294 = vector.shape_cast %290 : vector<8x1xi1> to vector<8x1xi1>
    %295 = vector.broadcast %294 : vector<8x1xi1> to vector<8x128xi1>
    %296 = arith.select %295, %286, %201 : vector<8x128xi1>, vector<8x128xf32>
    %297 = vector.shape_cast %290 : vector<8x1xi1> to vector<8x1xi1>
    %298 = vector.broadcast %297 : vector<8x1xi1> to vector<8x128xi1>
    %299 = arith.select %298, %288, %19 : vector<8x128xi1>, vector<8x128xf32>
    %300 = arith.truncf %299 : vector<8x128xf32> to vector<8x128xbf16>
    %301 = arith.index_cast %210 : i32 to index
    %c0_72 = arith.constant 0 : index
    %c0_73 = arith.constant 0 : index
    %302 = vector.load %arg16[%301, %c0_72, %c0_73] : memref<8x8x128xbf16, #tpu.memory_space<vmem>>, vector<1x8x128xbf16>
    %303 = vector.shape_cast %302 : vector<1x8x128xbf16> to vector<8x128xbf16>
    %304 = vector.shape_cast %300 : vector<8x128xbf16> to vector<1x8x128xbf16>
    tpu.vector_store %arg16[%301, %c0_72, %c0_73], %304 {strides = array<i32>} : memref<8x8x128xbf16, #tpu.memory_space<vmem>>, vector<1x8x128xbf16>,
    %c3_i32 = arith.constant 3 : i32
    %c7_i32_74 = arith.constant 7 : i32
    %305 = arith.subi %c7_i32_74, %c3_i32 : i32
    %306 = arith.index_cast %c3_i32 : i32 to index
    %c0_75 = arith.constant 0 : index
    %c0_76 = arith.constant 0 : index
    %307 = vector.load %arg13[%306, %c0_75, %c0_76] : memref<8x8x512xf32, #tpu.memory_space<vmem>>, vector<1x8x512xf32>
    %308 = vector.shape_cast %307 : vector<1x8x512xf32> to vector<8x512xf32>
    %309 = arith.truncf %246 : vector<8x128xf32> to vector<8x128xbf16>
    %cst_77 = arith.constant dense<0.000000e+00> : vector<8x512xf32>
    %310 = tpu.matmul %309, %16, %cst_77 {dimension_numbers = #tpu.dot_dimension_numbers<[1], [0], [0], [1], [0, 0, 1, 1], [], []>} : vector<8x128xbf16>, vector<128x512xbf16>, vector<8x512xf32> -> vector<8x512xf32>
    %311 = arith.addf %308, %310 : vector<8x512xf32>
    %312 = vector.extract_strided_slice %311 {offsets = [0, 0], sizes = [8, 128], strides = [1, 1]} : vector<8x512xf32> to vector<8x128xf32>
    %313 = arith.negf %312 : vector<8x128xf32>
    %314 = math.exp %313 : vector<8x128xf32>
    %cst_78 = arith.constant 1.000000e+00 : f32
    %315 = vector.broadcast %cst_78 : f32 to vector<8x128xf32>
    %316 = arith.addf %315, %314 : vector<8x128xf32>
    %317 = arith.divf %315, %316 : vector<8x128xf32>
    %318 = vector.extract_strided_slice %311 {offsets = [0, 128], sizes = [8, 128], strides = [1, 1]} : vector<8x512xf32> to vector<8x128xf32>
    %319 = arith.negf %318 : vector<8x128xf32>
    %320 = math.exp %319 : vector<8x128xf32>
    %cst_79 = arith.constant 1.000000e+00 : f32
    %321 = vector.broadcast %cst_79 : f32 to vector<8x128xf32>
    %322 = arith.addf %321, %320 : vector<8x128xf32>
    %323 = arith.divf %321, %322 : vector<8x128xf32>
    %324 = vector.extract_strided_slice %311 {offsets = [0, 256], sizes = [8, 128], strides = [1, 1]} : vector<8x512xf32> to vector<8x128xf32>
    %325 = math.tanh %324 : vector<8x128xf32>
    %326 = vector.extract_strided_slice %311 {offsets = [0, 384], sizes = [8, 128], strides = [1, 1]} : vector<8x512xf32> to vector<8x128xf32>
    %327 = arith.negf %326 : vector<8x128xf32>
    %328 = math.exp %327 : vector<8x128xf32>
    %cst_80 = arith.constant 1.000000e+00 : f32
    %329 = vector.broadcast %cst_80 : f32 to vector<8x128xf32>
    %330 = arith.addf %329, %328 : vector<8x128xf32>
    %331 = arith.divf %329, %330 : vector<8x128xf32>
    %332 = arith.mulf %323, %249 : vector<8x128xf32>
    %333 = arith.mulf %317, %325 : vector<8x128xf32>
    %334 = arith.addf %332, %333 : vector<8x128xf32>
    %335 = math.tanh %334 : vector<8x128xf32>
    %336 = arith.mulf %331, %335 : vector<8x128xf32>
    %337 = vector.broadcast %c3_i32 : i32 to vector<8x1xi32>
    %338 = arith.cmpi sgt, %18, %337 : vector<8x1xi32>
    %339 = vector.shape_cast %338 : vector<8x1xi1> to vector<8x1xi1>
    %340 = vector.broadcast %339 : vector<8x1xi1> to vector<8x128xi1>
    %341 = arith.select %340, %336, %246 : vector<8x128xi1>, vector<8x128xf32>
    %342 = vector.shape_cast %338 : vector<8x1xi1> to vector<8x1xi1>
    %343 = vector.broadcast %342 : vector<8x1xi1> to vector<8x128xi1>
    %344 = arith.select %343, %334, %249 : vector<8x128xi1>, vector<8x128xf32>
    %345 = vector.shape_cast %338 : vector<8x1xi1> to vector<8x1xi1>
    %346 = vector.broadcast %345 : vector<8x1xi1> to vector<8x128xi1>
    %347 = arith.select %346, %336, %19 : vector<8x128xi1>, vector<8x128xf32>
    %348 = arith.truncf %347 : vector<8x128xf32> to vector<8x128xbf16>
    %349 = arith.index_cast %c3_i32 : i32 to index
    %c0_81 = arith.constant 0 : index
    %c0_82 = arith.constant 0 : index
    %350 = vector.load %arg15[%349, %c0_81, %c0_82] : memref<8x8x128xbf16, #tpu.memory_space<vmem>>, vector<1x8x128xbf16>
    %351 = vector.shape_cast %350 : vector<1x8x128xbf16> to vector<8x128xbf16>
    %352 = vector.shape_cast %348 : vector<8x128xbf16> to vector<1x8x128xbf16>
    tpu.vector_store %arg15[%349, %c0_81, %c0_82], %352 {strides = array<i32>} : memref<8x8x128xbf16, #tpu.memory_space<vmem>>, vector<1x8x128xbf16>,
    %353 = arith.index_cast %305 : i32 to index
    %c0_83 = arith.constant 0 : index
    %c0_84 = arith.constant 0 : index
    %354 = vector.load %arg14[%353, %c0_83, %c0_84] : memref<8x8x512xf32, #tpu.memory_space<vmem>>, vector<1x8x512xf32>
    %355 = vector.shape_cast %354 : vector<1x8x512xf32> to vector<8x512xf32>
    %356 = arith.truncf %293 : vector<8x128xf32> to vector<8x128xbf16>
    %cst_85 = arith.constant dense<0.000000e+00> : vector<8x512xf32>
    %357 = tpu.matmul %356, %17, %cst_85 {dimension_numbers = #tpu.dot_dimension_numbers<[1], [0], [0], [1], [0, 0, 1, 1], [], []>} : vector<8x128xbf16>, vector<128x512xbf16>, vector<8x512xf32> -> vector<8x512xf32>
    %358 = arith.addf %355, %357 : vector<8x512xf32>
    %359 = vector.extract_strided_slice %358 {offsets = [0, 0], sizes = [8, 128], strides = [1, 1]} : vector<8x512xf32> to vector<8x128xf32>
    %360 = arith.negf %359 : vector<8x128xf32>
    %361 = math.exp %360 : vector<8x128xf32>
    %cst_86 = arith.constant 1.000000e+00 : f32
    %362 = vector.broadcast %cst_86 : f32 to vector<8x128xf32>
    %363 = arith.addf %362, %361 : vector<8x128xf32>
    %364 = arith.divf %362, %363 : vector<8x128xf32>
    %365 = vector.extract_strided_slice %358 {offsets = [0, 128], sizes = [8, 128], strides = [1, 1]} : vector<8x512xf32> to vector<8x128xf32>
    %366 = arith.negf %365 : vector<8x128xf32>
    %367 = math.exp %366 : vector<8x128xf32>
    %cst_87 = arith.constant 1.000000e+00 : f32
    %368 = vector.broadcast %cst_87 : f32 to vector<8x128xf32>
    %369 = arith.addf %368, %367 : vector<8x128xf32>
    %370 = arith.divf %368, %369 : vector<8x128xf32>
    %371 = vector.extract_strided_slice %358 {offsets = [0, 256], sizes = [8, 128], strides = [1, 1]} : vector<8x512xf32> to vector<8x128xf32>
    %372 = math.tanh %371 : vector<8x128xf32>
    %373 = vector.extract_strided_slice %358 {offsets = [0, 384], sizes = [8, 128], strides = [1, 1]} : vector<8x512xf32> to vector<8x128xf32>
    %374 = arith.negf %373 : vector<8x128xf32>
    %375 = math.exp %374 : vector<8x128xf32>
    %cst_88 = arith.constant 1.000000e+00 : f32
    %376 = vector.broadcast %cst_88 : f32 to vector<8x128xf32>
    %377 = arith.addf %376, %375 : vector<8x128xf32>
    %378 = arith.divf %376, %377 : vector<8x128xf32>
    %379 = arith.mulf %370, %296 : vector<8x128xf32>
    %380 = arith.mulf %364, %372 : vector<8x128xf32>
    %381 = arith.addf %379, %380 : vector<8x128xf32>
    %382 = math.tanh %381 : vector<8x128xf32>
    %383 = arith.mulf %378, %382 : vector<8x128xf32>
    %384 = vector.broadcast %305 : i32 to vector<8x1xi32>
    %385 = arith.cmpi sgt, %18, %384 : vector<8x1xi32>
    %386 = vector.shape_cast %385 : vector<8x1xi1> to vector<8x1xi1>
    %387 = vector.broadcast %386 : vector<8x1xi1> to vector<8x128xi1>
    %388 = arith.select %387, %383, %293 : vector<8x128xi1>, vector<8x128xf32>
    %389 = vector.shape_cast %385 : vector<8x1xi1> to vector<8x1xi1>
    %390 = vector.broadcast %389 : vector<8x1xi1> to vector<8x128xi1>
    %391 = arith.select %390, %381, %296 : vector<8x128xi1>, vector<8x128xf32>
    %392 = vector.shape_cast %385 : vector<8x1xi1> to vector<8x1xi1>
    %393 = vector.broadcast %392 : vector<8x1xi1> to vector<8x128xi1>
    %394 = arith.select %393, %383, %19 : vector<8x128xi1>, vector<8x128xf32>
    %395 = arith.truncf %394 : vector<8x128xf32> to vector<8x128xbf16>
    %396 = arith.index_cast %305 : i32 to index
    %c0_89 = arith.constant 0 : index
    %c0_90 = arith.constant 0 : index
    %397 = vector.load %arg16[%396, %c0_89, %c0_90] : memref<8x8x128xbf16, #tpu.memory_space<vmem>>, vector<1x8x128xbf16>
    %398 = vector.shape_cast %397 : vector<1x8x128xbf16> to vector<8x128xbf16>
    %399 = vector.shape_cast %395 : vector<8x128xbf16> to vector<1x8x128xbf16>
    tpu.vector_store %arg16[%396, %c0_89, %c0_90], %399 {strides = array<i32>} : memref<8x8x128xbf16, #tpu.memory_space<vmem>>, vector<1x8x128xbf16>,
    %c4_i32 = arith.constant 4 : i32
    %c7_i32_91 = arith.constant 7 : i32
    %400 = arith.subi %c7_i32_91, %c4_i32 : i32
    %401 = arith.index_cast %c4_i32 : i32 to index
    %c0_92 = arith.constant 0 : index
    %c0_93 = arith.constant 0 : index
    %402 = vector.load %arg13[%401, %c0_92, %c0_93] : memref<8x8x512xf32, #tpu.memory_space<vmem>>, vector<1x8x512xf32>
    %403 = vector.shape_cast %402 : vector<1x8x512xf32> to vector<8x512xf32>
    %404 = arith.truncf %341 : vector<8x128xf32> to vector<8x128xbf16>
    %cst_94 = arith.constant dense<0.000000e+00> : vector<8x512xf32>
    %405 = tpu.matmul %404, %16, %cst_94 {dimension_numbers = #tpu.dot_dimension_numbers<[1], [0], [0], [1], [0, 0, 1, 1], [], []>} : vector<8x128xbf16>, vector<128x512xbf16>, vector<8x512xf32> -> vector<8x512xf32>
    %406 = arith.addf %403, %405 : vector<8x512xf32>
    %407 = vector.extract_strided_slice %406 {offsets = [0, 0], sizes = [8, 128], strides = [1, 1]} : vector<8x512xf32> to vector<8x128xf32>
    %408 = arith.negf %407 : vector<8x128xf32>
    %409 = math.exp %408 : vector<8x128xf32>
    %cst_95 = arith.constant 1.000000e+00 : f32
    %410 = vector.broadcast %cst_95 : f32 to vector<8x128xf32>
    %411 = arith.addf %410, %409 : vector<8x128xf32>
    %412 = arith.divf %410, %411 : vector<8x128xf32>
    %413 = vector.extract_strided_slice %406 {offsets = [0, 128], sizes = [8, 128], strides = [1, 1]} : vector<8x512xf32> to vector<8x128xf32>
    %414 = arith.negf %413 : vector<8x128xf32>
    %415 = math.exp %414 : vector<8x128xf32>
    %cst_96 = arith.constant 1.000000e+00 : f32
    %416 = vector.broadcast %cst_96 : f32 to vector<8x128xf32>
    %417 = arith.addf %416, %415 : vector<8x128xf32>
    %418 = arith.divf %416, %417 : vector<8x128xf32>
    %419 = vector.extract_strided_slice %406 {offsets = [0, 256], sizes = [8, 128], strides = [1, 1]} : vector<8x512xf32> to vector<8x128xf32>
    %420 = math.tanh %419 : vector<8x128xf32>
    %421 = vector.extract_strided_slice %406 {offsets = [0, 384], sizes = [8, 128], strides = [1, 1]} : vector<8x512xf32> to vector<8x128xf32>
    %422 = arith.negf %421 : vector<8x128xf32>
    %423 = math.exp %422 : vector<8x128xf32>
    %cst_97 = arith.constant 1.000000e+00 : f32
    %424 = vector.broadcast %cst_97 : f32 to vector<8x128xf32>
    %425 = arith.addf %424, %423 : vector<8x128xf32>
    %426 = arith.divf %424, %425 : vector<8x128xf32>
    %427 = arith.mulf %418, %344 : vector<8x128xf32>
    %428 = arith.mulf %412, %420 : vector<8x128xf32>
    %429 = arith.addf %427, %428 : vector<8x128xf32>
    %430 = math.tanh %429 : vector<8x128xf32>
    %431 = arith.mulf %426, %430 : vector<8x128xf32>
    %432 = vector.broadcast %c4_i32 : i32 to vector<8x1xi32>
    %433 = arith.cmpi sgt, %18, %432 : vector<8x1xi32>
    %434 = vector.shape_cast %433 : vector<8x1xi1> to vector<8x1xi1>
    %435 = vector.broadcast %434 : vector<8x1xi1> to vector<8x128xi1>
    %436 = arith.select %435, %431, %341 : vector<8x128xi1>, vector<8x128xf32>
    %437 = vector.shape_cast %433 : vector<8x1xi1> to vector<8x1xi1>
    %438 = vector.broadcast %437 : vector<8x1xi1> to vector<8x128xi1>
    %439 = arith.select %438, %429, %344 : vector<8x128xi1>, vector<8x128xf32>
    %440 = vector.shape_cast %433 : vector<8x1xi1> to vector<8x1xi1>
    %441 = vector.broadcast %440 : vector<8x1xi1> to vector<8x128xi1>
    %442 = arith.select %441, %431, %19 : vector<8x128xi1>, vector<8x128xf32>
    %443 = arith.truncf %442 : vector<8x128xf32> to vector<8x128xbf16>
    %444 = arith.index_cast %c4_i32 : i32 to index
    %c0_98 = arith.constant 0 : index
    %c0_99 = arith.constant 0 : index
    %445 = vector.load %arg15[%444, %c0_98, %c0_99] : memref<8x8x128xbf16, #tpu.memory_space<vmem>>, vector<1x8x128xbf16>
    %446 = vector.shape_cast %445 : vector<1x8x128xbf16> to vector<8x128xbf16>
    %447 = vector.shape_cast %443 : vector<8x128xbf16> to vector<1x8x128xbf16>
    tpu.vector_store %arg15[%444, %c0_98, %c0_99], %447 {strides = array<i32>} : memref<8x8x128xbf16, #tpu.memory_space<vmem>>, vector<1x8x128xbf16>,
    %448 = arith.index_cast %400 : i32 to index
    %c0_100 = arith.constant 0 : index
    %c0_101 = arith.constant 0 : index
    %449 = vector.load %arg14[%448, %c0_100, %c0_101] : memref<8x8x512xf32, #tpu.memory_space<vmem>>, vector<1x8x512xf32>
    %450 = vector.shape_cast %449 : vector<1x8x512xf32> to vector<8x512xf32>
    %451 = arith.truncf %388 : vector<8x128xf32> to vector<8x128xbf16>
    %cst_102 = arith.constant dense<0.000000e+00> : vector<8x512xf32>
    %452 = tpu.matmul %451, %17, %cst_102 {dimension_numbers = #tpu.dot_dimension_numbers<[1], [0], [0], [1], [0, 0, 1, 1], [], []>} : vector<8x128xbf16>, vector<128x512xbf16>, vector<8x512xf32> -> vector<8x512xf32>
    %453 = arith.addf %450, %452 : vector<8x512xf32>
    %454 = vector.extract_strided_slice %453 {offsets = [0, 0], sizes = [8, 128], strides = [1, 1]} : vector<8x512xf32> to vector<8x128xf32>
    %455 = arith.negf %454 : vector<8x128xf32>
    %456 = math.exp %455 : vector<8x128xf32>
    %cst_103 = arith.constant 1.000000e+00 : f32
    %457 = vector.broadcast %cst_103 : f32 to vector<8x128xf32>
    %458 = arith.addf %457, %456 : vector<8x128xf32>
    %459 = arith.divf %457, %458 : vector<8x128xf32>
    %460 = vector.extract_strided_slice %453 {offsets = [0, 128], sizes = [8, 128], strides = [1, 1]} : vector<8x512xf32> to vector<8x128xf32>
    %461 = arith.negf %460 : vector<8x128xf32>
    %462 = math.exp %461 : vector<8x128xf32>
    %cst_104 = arith.constant 1.000000e+00 : f32
    %463 = vector.broadcast %cst_104 : f32 to vector<8x128xf32>
    %464 = arith.addf %463, %462 : vector<8x128xf32>
    %465 = arith.divf %463, %464 : vector<8x128xf32>
    %466 = vector.extract_strided_slice %453 {offsets = [0, 256], sizes = [8, 128], strides = [1, 1]} : vector<8x512xf32> to vector<8x128xf32>
    %467 = math.tanh %466 : vector<8x128xf32>
    %468 = vector.extract_strided_slice %453 {offsets = [0, 384], sizes = [8, 128], strides = [1, 1]} : vector<8x512xf32> to vector<8x128xf32>
    %469 = arith.negf %468 : vector<8x128xf32>
    %470 = math.exp %469 : vector<8x128xf32>
    %cst_105 = arith.constant 1.000000e+00 : f32
    %471 = vector.broadcast %cst_105 : f32 to vector<8x128xf32>
    %472 = arith.addf %471, %470 : vector<8x128xf32>
    %473 = arith.divf %471, %472 : vector<8x128xf32>
    %474 = arith.mulf %465, %391 : vector<8x128xf32>
    %475 = arith.mulf %459, %467 : vector<8x128xf32>
    %476 = arith.addf %474, %475 : vector<8x128xf32>
    %477 = math.tanh %476 : vector<8x128xf32>
    %478 = arith.mulf %473, %477 : vector<8x128xf32>
    %479 = vector.broadcast %400 : i32 to vector<8x1xi32>
    %480 = arith.cmpi sgt, %18, %479 : vector<8x1xi32>
    %481 = vector.shape_cast %480 : vector<8x1xi1> to vector<8x1xi1>
    %482 = vector.broadcast %481 : vector<8x1xi1> to vector<8x128xi1>
    %483 = arith.select %482, %478, %388 : vector<8x128xi1>, vector<8x128xf32>
    %484 = vector.shape_cast %480 : vector<8x1xi1> to vector<8x1xi1>
    %485 = vector.broadcast %484 : vector<8x1xi1> to vector<8x128xi1>
    %486 = arith.select %485, %476, %391 : vector<8x128xi1>, vector<8x128xf32>
    %487 = vector.shape_cast %480 : vector<8x1xi1> to vector<8x1xi1>
    %488 = vector.broadcast %487 : vector<8x1xi1> to vector<8x128xi1>
    %489 = arith.select %488, %478, %19 : vector<8x128xi1>, vector<8x128xf32>
    %490 = arith.truncf %489 : vector<8x128xf32> to vector<8x128xbf16>
    %491 = arith.index_cast %400 : i32 to index
    %c0_106 = arith.constant 0 : index
    %c0_107 = arith.constant 0 : index
    %492 = vector.load %arg16[%491, %c0_106, %c0_107] : memref<8x8x128xbf16, #tpu.memory_space<vmem>>, vector<1x8x128xbf16>
    %493 = vector.shape_cast %492 : vector<1x8x128xbf16> to vector<8x128xbf16>
    %494 = vector.shape_cast %490 : vector<8x128xbf16> to vector<1x8x128xbf16>
    tpu.vector_store %arg16[%491, %c0_106, %c0_107], %494 {strides = array<i32>} : memref<8x8x128xbf16, #tpu.memory_space<vmem>>, vector<1x8x128xbf16>,
    %c5_i32 = arith.constant 5 : i32
    %c7_i32_108 = arith.constant 7 : i32
    %495 = arith.subi %c7_i32_108, %c5_i32 : i32
    %496 = arith.index_cast %c5_i32 : i32 to index
    %c0_109 = arith.constant 0 : index
    %c0_110 = arith.constant 0 : index
    %497 = vector.load %arg13[%496, %c0_109, %c0_110] : memref<8x8x512xf32, #tpu.memory_space<vmem>>, vector<1x8x512xf32>
    %498 = vector.shape_cast %497 : vector<1x8x512xf32> to vector<8x512xf32>
    %499 = arith.truncf %436 : vector<8x128xf32> to vector<8x128xbf16>
    %cst_111 = arith.constant dense<0.000000e+00> : vector<8x512xf32>
    %500 = tpu.matmul %499, %16, %cst_111 {dimension_numbers = #tpu.dot_dimension_numbers<[1], [0], [0], [1], [0, 0, 1, 1], [], []>} : vector<8x128xbf16>, vector<128x512xbf16>, vector<8x512xf32> -> vector<8x512xf32>
    %501 = arith.addf %498, %500 : vector<8x512xf32>
    %502 = vector.extract_strided_slice %501 {offsets = [0, 0], sizes = [8, 128], strides = [1, 1]} : vector<8x512xf32> to vector<8x128xf32>
    %503 = arith.negf %502 : vector<8x128xf32>
    %504 = math.exp %503 : vector<8x128xf32>
    %cst_112 = arith.constant 1.000000e+00 : f32
    %505 = vector.broadcast %cst_112 : f32 to vector<8x128xf32>
    %506 = arith.addf %505, %504 : vector<8x128xf32>
    %507 = arith.divf %505, %506 : vector<8x128xf32>
    %508 = vector.extract_strided_slice %501 {offsets = [0, 128], sizes = [8, 128], strides = [1, 1]} : vector<8x512xf32> to vector<8x128xf32>
    %509 = arith.negf %508 : vector<8x128xf32>
    %510 = math.exp %509 : vector<8x128xf32>
    %cst_113 = arith.constant 1.000000e+00 : f32
    %511 = vector.broadcast %cst_113 : f32 to vector<8x128xf32>
    %512 = arith.addf %511, %510 : vector<8x128xf32>
    %513 = arith.divf %511, %512 : vector<8x128xf32>
    %514 = vector.extract_strided_slice %501 {offsets = [0, 256], sizes = [8, 128], strides = [1, 1]} : vector<8x512xf32> to vector<8x128xf32>
    %515 = math.tanh %514 : vector<8x128xf32>
    %516 = vector.extract_strided_slice %501 {offsets = [0, 384], sizes = [8, 128], strides = [1, 1]} : vector<8x512xf32> to vector<8x128xf32>
    %517 = arith.negf %516 : vector<8x128xf32>
    %518 = math.exp %517 : vector<8x128xf32>
    %cst_114 = arith.constant 1.000000e+00 : f32
    %519 = vector.broadcast %cst_114 : f32 to vector<8x128xf32>
    %520 = arith.addf %519, %518 : vector<8x128xf32>
    %521 = arith.divf %519, %520 : vector<8x128xf32>
    %522 = arith.mulf %513, %439 : vector<8x128xf32>
    %523 = arith.mulf %507, %515 : vector<8x128xf32>
    %524 = arith.addf %522, %523 : vector<8x128xf32>
    %525 = math.tanh %524 : vector<8x128xf32>
    %526 = arith.mulf %521, %525 : vector<8x128xf32>
    %527 = vector.broadcast %c5_i32 : i32 to vector<8x1xi32>
    %528 = arith.cmpi sgt, %18, %527 : vector<8x1xi32>
    %529 = vector.shape_cast %528 : vector<8x1xi1> to vector<8x1xi1>
    %530 = vector.broadcast %529 : vector<8x1xi1> to vector<8x128xi1>
    %531 = arith.select %530, %526, %436 : vector<8x128xi1>, vector<8x128xf32>
    %532 = vector.shape_cast %528 : vector<8x1xi1> to vector<8x1xi1>
    %533 = vector.broadcast %532 : vector<8x1xi1> to vector<8x128xi1>
    %534 = arith.select %533, %524, %439 : vector<8x128xi1>, vector<8x128xf32>
    %535 = vector.shape_cast %528 : vector<8x1xi1> to vector<8x1xi1>
    %536 = vector.broadcast %535 : vector<8x1xi1> to vector<8x128xi1>
    %537 = arith.select %536, %526, %19 : vector<8x128xi1>, vector<8x128xf32>
    %538 = arith.truncf %537 : vector<8x128xf32> to vector<8x128xbf16>
    %539 = arith.index_cast %c5_i32 : i32 to index
    %c0_115 = arith.constant 0 : index
    %c0_116 = arith.constant 0 : index
    %540 = vector.load %arg15[%539, %c0_115, %c0_116] : memref<8x8x128xbf16, #tpu.memory_space<vmem>>, vector<1x8x128xbf16>
    %541 = vector.shape_cast %540 : vector<1x8x128xbf16> to vector<8x128xbf16>
    %542 = vector.shape_cast %538 : vector<8x128xbf16> to vector<1x8x128xbf16>
    tpu.vector_store %arg15[%539, %c0_115, %c0_116], %542 {strides = array<i32>} : memref<8x8x128xbf16, #tpu.memory_space<vmem>>, vector<1x8x128xbf16>,
    %543 = arith.index_cast %495 : i32 to index
    %c0_117 = arith.constant 0 : index
    %c0_118 = arith.constant 0 : index
    %544 = vector.load %arg14[%543, %c0_117, %c0_118] : memref<8x8x512xf32, #tpu.memory_space<vmem>>, vector<1x8x512xf32>
    %545 = vector.shape_cast %544 : vector<1x8x512xf32> to vector<8x512xf32>
    %546 = arith.truncf %483 : vector<8x128xf32> to vector<8x128xbf16>
    %cst_119 = arith.constant dense<0.000000e+00> : vector<8x512xf32>
    %547 = tpu.matmul %546, %17, %cst_119 {dimension_numbers = #tpu.dot_dimension_numbers<[1], [0], [0], [1], [0, 0, 1, 1], [], []>} : vector<8x128xbf16>, vector<128x512xbf16>, vector<8x512xf32> -> vector<8x512xf32>
    %548 = arith.addf %545, %547 : vector<8x512xf32>
    %549 = vector.extract_strided_slice %548 {offsets = [0, 0], sizes = [8, 128], strides = [1, 1]} : vector<8x512xf32> to vector<8x128xf32>
    %550 = arith.negf %549 : vector<8x128xf32>
    %551 = math.exp %550 : vector<8x128xf32>
    %cst_120 = arith.constant 1.000000e+00 : f32
    %552 = vector.broadcast %cst_120 : f32 to vector<8x128xf32>
    %553 = arith.addf %552, %551 : vector<8x128xf32>
    %554 = arith.divf %552, %553 : vector<8x128xf32>
    %555 = vector.extract_strided_slice %548 {offsets = [0, 128], sizes = [8, 128], strides = [1, 1]} : vector<8x512xf32> to vector<8x128xf32>
    %556 = arith.negf %555 : vector<8x128xf32>
    %557 = math.exp %556 : vector<8x128xf32>
    %cst_121 = arith.constant 1.000000e+00 : f32
    %558 = vector.broadcast %cst_121 : f32 to vector<8x128xf32>
    %559 = arith.addf %558, %557 : vector<8x128xf32>
    %560 = arith.divf %558, %559 : vector<8x128xf32>
    %561 = vector.extract_strided_slice %548 {offsets = [0, 256], sizes = [8, 128], strides = [1, 1]} : vector<8x512xf32> to vector<8x128xf32>
    %562 = math.tanh %561 : vector<8x128xf32>
    %563 = vector.extract_strided_slice %548 {offsets = [0, 384], sizes = [8, 128], strides = [1, 1]} : vector<8x512xf32> to vector<8x128xf32>
    %564 = arith.negf %563 : vector<8x128xf32>
    %565 = math.exp %564 : vector<8x128xf32>
    %cst_122 = arith.constant 1.000000e+00 : f32
    %566 = vector.broadcast %cst_122 : f32 to vector<8x128xf32>
    %567 = arith.addf %566, %565 : vector<8x128xf32>
    %568 = arith.divf %566, %567 : vector<8x128xf32>
    %569 = arith.mulf %560, %486 : vector<8x128xf32>
    %570 = arith.mulf %554, %562 : vector<8x128xf32>
    %571 = arith.addf %569, %570 : vector<8x128xf32>
    %572 = math.tanh %571 : vector<8x128xf32>
    %573 = arith.mulf %568, %572 : vector<8x128xf32>
    %574 = vector.broadcast %495 : i32 to vector<8x1xi32>
    %575 = arith.cmpi sgt, %18, %574 : vector<8x1xi32>
    %576 = vector.shape_cast %575 : vector<8x1xi1> to vector<8x1xi1>
    %577 = vector.broadcast %576 : vector<8x1xi1> to vector<8x128xi1>
    %578 = arith.select %577, %573, %483 : vector<8x128xi1>, vector<8x128xf32>
    %579 = vector.shape_cast %575 : vector<8x1xi1> to vector<8x1xi1>
    %580 = vector.broadcast %579 : vector<8x1xi1> to vector<8x128xi1>
    %581 = arith.select %580, %571, %486 : vector<8x128xi1>, vector<8x128xf32>
    %582 = vector.shape_cast %575 : vector<8x1xi1> to vector<8x1xi1>
    %583 = vector.broadcast %582 : vector<8x1xi1> to vector<8x128xi1>
    %584 = arith.select %583, %573, %19 : vector<8x128xi1>, vector<8x128xf32>
    %585 = arith.truncf %584 : vector<8x128xf32> to vector<8x128xbf16>
    %586 = arith.index_cast %495 : i32 to index
    %c0_123 = arith.constant 0 : index
    %c0_124 = arith.constant 0 : index
    %587 = vector.load %arg16[%586, %c0_123, %c0_124] : memref<8x8x128xbf16, #tpu.memory_space<vmem>>, vector<1x8x128xbf16>
    %588 = vector.shape_cast %587 : vector<1x8x128xbf16> to vector<8x128xbf16>
    %589 = vector.shape_cast %585 : vector<8x128xbf16> to vector<1x8x128xbf16>
    tpu.vector_store %arg16[%586, %c0_123, %c0_124], %589 {strides = array<i32>} : memref<8x8x128xbf16, #tpu.memory_space<vmem>>, vector<1x8x128xbf16>,
    %c6_i32 = arith.constant 6 : i32
    %c7_i32_125 = arith.constant 7 : i32
    %590 = arith.subi %c7_i32_125, %c6_i32 : i32
    %591 = arith.index_cast %c6_i32 : i32 to index
    %c0_126 = arith.constant 0 : index
    %c0_127 = arith.constant 0 : index
    %592 = vector.load %arg13[%591, %c0_126, %c0_127] : memref<8x8x512xf32, #tpu.memory_space<vmem>>, vector<1x8x512xf32>
    %593 = vector.shape_cast %592 : vector<1x8x512xf32> to vector<8x512xf32>
    %594 = arith.truncf %531 : vector<8x128xf32> to vector<8x128xbf16>
    %cst_128 = arith.constant dense<0.000000e+00> : vector<8x512xf32>
    %595 = tpu.matmul %594, %16, %cst_128 {dimension_numbers = #tpu.dot_dimension_numbers<[1], [0], [0], [1], [0, 0, 1, 1], [], []>} : vector<8x128xbf16>, vector<128x512xbf16>, vector<8x512xf32> -> vector<8x512xf32>
    %596 = arith.addf %593, %595 : vector<8x512xf32>
    %597 = vector.extract_strided_slice %596 {offsets = [0, 0], sizes = [8, 128], strides = [1, 1]} : vector<8x512xf32> to vector<8x128xf32>
    %598 = arith.negf %597 : vector<8x128xf32>
    %599 = math.exp %598 : vector<8x128xf32>
    %cst_129 = arith.constant 1.000000e+00 : f32
    %600 = vector.broadcast %cst_129 : f32 to vector<8x128xf32>
    %601 = arith.addf %600, %599 : vector<8x128xf32>
    %602 = arith.divf %600, %601 : vector<8x128xf32>
    %603 = vector.extract_strided_slice %596 {offsets = [0, 128], sizes = [8, 128], strides = [1, 1]} : vector<8x512xf32> to vector<8x128xf32>
    %604 = arith.negf %603 : vector<8x128xf32>
    %605 = math.exp %604 : vector<8x128xf32>
    %cst_130 = arith.constant 1.000000e+00 : f32
    %606 = vector.broadcast %cst_130 : f32 to vector<8x128xf32>
    %607 = arith.addf %606, %605 : vector<8x128xf32>
    %608 = arith.divf %606, %607 : vector<8x128xf32>
    %609 = vector.extract_strided_slice %596 {offsets = [0, 256], sizes = [8, 128], strides = [1, 1]} : vector<8x512xf32> to vector<8x128xf32>
    %610 = math.tanh %609 : vector<8x128xf32>
    %611 = vector.extract_strided_slice %596 {offsets = [0, 384], sizes = [8, 128], strides = [1, 1]} : vector<8x512xf32> to vector<8x128xf32>
    %612 = arith.negf %611 : vector<8x128xf32>
    %613 = math.exp %612 : vector<8x128xf32>
    %cst_131 = arith.constant 1.000000e+00 : f32
    %614 = vector.broadcast %cst_131 : f32 to vector<8x128xf32>
    %615 = arith.addf %614, %613 : vector<8x128xf32>
    %616 = arith.divf %614, %615 : vector<8x128xf32>
    %617 = arith.mulf %608, %534 : vector<8x128xf32>
    %618 = arith.mulf %602, %610 : vector<8x128xf32>
    %619 = arith.addf %617, %618 : vector<8x128xf32>
    %620 = math.tanh %619 : vector<8x128xf32>
    %621 = arith.mulf %616, %620 : vector<8x128xf32>
    %622 = vector.broadcast %c6_i32 : i32 to vector<8x1xi32>
    %623 = arith.cmpi sgt, %18, %622 : vector<8x1xi32>
    %624 = vector.shape_cast %623 : vector<8x1xi1> to vector<8x1xi1>
    %625 = vector.broadcast %624 : vector<8x1xi1> to vector<8x128xi1>
    %626 = arith.select %625, %621, %531 : vector<8x128xi1>, vector<8x128xf32>
    %627 = vector.shape_cast %623 : vector<8x1xi1> to vector<8x1xi1>
    %628 = vector.broadcast %627 : vector<8x1xi1> to vector<8x128xi1>
    %629 = arith.select %628, %619, %534 : vector<8x128xi1>, vector<8x128xf32>
    %630 = vector.shape_cast %623 : vector<8x1xi1> to vector<8x1xi1>
    %631 = vector.broadcast %630 : vector<8x1xi1> to vector<8x128xi1>
    %632 = arith.select %631, %621, %19 : vector<8x128xi1>, vector<8x128xf32>
    %633 = arith.truncf %632 : vector<8x128xf32> to vector<8x128xbf16>
    %634 = arith.index_cast %c6_i32 : i32 to index
    %c0_132 = arith.constant 0 : index
    %c0_133 = arith.constant 0 : index
    %635 = vector.load %arg15[%634, %c0_132, %c0_133] : memref<8x8x128xbf16, #tpu.memory_space<vmem>>, vector<1x8x128xbf16>
    %636 = vector.shape_cast %635 : vector<1x8x128xbf16> to vector<8x128xbf16>
    %637 = vector.shape_cast %633 : vector<8x128xbf16> to vector<1x8x128xbf16>
    tpu.vector_store %arg15[%634, %c0_132, %c0_133], %637 {strides = array<i32>} : memref<8x8x128xbf16, #tpu.memory_space<vmem>>, vector<1x8x128xbf16>,
    %638 = arith.index_cast %590 : i32 to index
    %c0_134 = arith.constant 0 : index
    %c0_135 = arith.constant 0 : index
    %639 = vector.load %arg14[%638, %c0_134, %c0_135] : memref<8x8x512xf32, #tpu.memory_space<vmem>>, vector<1x8x512xf32>
    %640 = vector.shape_cast %639 : vector<1x8x512xf32> to vector<8x512xf32>
    %641 = arith.truncf %578 : vector<8x128xf32> to vector<8x128xbf16>
    %cst_136 = arith.constant dense<0.000000e+00> : vector<8x512xf32>
    %642 = tpu.matmul %641, %17, %cst_136 {dimension_numbers = #tpu.dot_dimension_numbers<[1], [0], [0], [1], [0, 0, 1, 1], [], []>} : vector<8x128xbf16>, vector<128x512xbf16>, vector<8x512xf32> -> vector<8x512xf32>
    %643 = arith.addf %640, %642 : vector<8x512xf32>
    %644 = vector.extract_strided_slice %643 {offsets = [0, 0], sizes = [8, 128], strides = [1, 1]} : vector<8x512xf32> to vector<8x128xf32>
    %645 = arith.negf %644 : vector<8x128xf32>
    %646 = math.exp %645 : vector<8x128xf32>
    %cst_137 = arith.constant 1.000000e+00 : f32
    %647 = vector.broadcast %cst_137 : f32 to vector<8x128xf32>
    %648 = arith.addf %647, %646 : vector<8x128xf32>
    %649 = arith.divf %647, %648 : vector<8x128xf32>
    %650 = vector.extract_strided_slice %643 {offsets = [0, 128], sizes = [8, 128], strides = [1, 1]} : vector<8x512xf32> to vector<8x128xf32>
    %651 = arith.negf %650 : vector<8x128xf32>
    %652 = math.exp %651 : vector<8x128xf32>
    %cst_138 = arith.constant 1.000000e+00 : f32
    %653 = vector.broadcast %cst_138 : f32 to vector<8x128xf32>
    %654 = arith.addf %653, %652 : vector<8x128xf32>
    %655 = arith.divf %653, %654 : vector<8x128xf32>
    %656 = vector.extract_strided_slice %643 {offsets = [0, 256], sizes = [8, 128], strides = [1, 1]} : vector<8x512xf32> to vector<8x128xf32>
    %657 = math.tanh %656 : vector<8x128xf32>
    %658 = vector.extract_strided_slice %643 {offsets = [0, 384], sizes = [8, 128], strides = [1, 1]} : vector<8x512xf32> to vector<8x128xf32>
    %659 = arith.negf %658 : vector<8x128xf32>
    %660 = math.exp %659 : vector<8x128xf32>
    %cst_139 = arith.constant 1.000000e+00 : f32
    %661 = vector.broadcast %cst_139 : f32 to vector<8x128xf32>
    %662 = arith.addf %661, %660 : vector<8x128xf32>
    %663 = arith.divf %661, %662 : vector<8x128xf32>
    %664 = arith.mulf %655, %581 : vector<8x128xf32>
    %665 = arith.mulf %649, %657 : vector<8x128xf32>
    %666 = arith.addf %664, %665 : vector<8x128xf32>
    %667 = math.tanh %666 : vector<8x128xf32>
    %668 = arith.mulf %663, %667 : vector<8x128xf32>
    %669 = vector.broadcast %590 : i32 to vector<8x1xi32>
    %670 = arith.cmpi sgt, %18, %669 : vector<8x1xi32>
    %671 = vector.shape_cast %670 : vector<8x1xi1> to vector<8x1xi1>
    %672 = vector.broadcast %671 : vector<8x1xi1> to vector<8x128xi1>
    %673 = arith.select %672, %668, %578 : vector<8x128xi1>, vector<8x128xf32>
    %674 = vector.shape_cast %670 : vector<8x1xi1> to vector<8x1xi1>
    %675 = vector.broadcast %674 : vector<8x1xi1> to vector<8x128xi1>
    %676 = arith.select %675, %666, %581 : vector<8x128xi1>, vector<8x128xf32>
    %677 = vector.shape_cast %670 : vector<8x1xi1> to vector<8x1xi1>
    %678 = vector.broadcast %677 : vector<8x1xi1> to vector<8x128xi1>
    %679 = arith.select %678, %668, %19 : vector<8x128xi1>, vector<8x128xf32>
    %680 = arith.truncf %679 : vector<8x128xf32> to vector<8x128xbf16>
    %681 = arith.index_cast %590 : i32 to index
    %c0_140 = arith.constant 0 : index
    %c0_141 = arith.constant 0 : index
    %682 = vector.load %arg16[%681, %c0_140, %c0_141] : memref<8x8x128xbf16, #tpu.memory_space<vmem>>, vector<1x8x128xbf16>
    %683 = vector.shape_cast %682 : vector<1x8x128xbf16> to vector<8x128xbf16>
    %684 = vector.shape_cast %680 : vector<8x128xbf16> to vector<1x8x128xbf16>
    tpu.vector_store %arg16[%681, %c0_140, %c0_141], %684 {strides = array<i32>} : memref<8x8x128xbf16, #tpu.memory_space<vmem>>, vector<1x8x128xbf16>,
    %c7_i32_142 = arith.constant 7 : i32
    %c7_i32_143 = arith.constant 7 : i32
    %685 = arith.subi %c7_i32_143, %c7_i32_142 : i32
    %686 = arith.index_cast %c7_i32_142 : i32 to index
    %c0_144 = arith.constant 0 : index
    %c0_145 = arith.constant 0 : index
    %687 = vector.load %arg13[%686, %c0_144, %c0_145] : memref<8x8x512xf32, #tpu.memory_space<vmem>>, vector<1x8x512xf32>
    %688 = vector.shape_cast %687 : vector<1x8x512xf32> to vector<8x512xf32>
    %689 = arith.truncf %626 : vector<8x128xf32> to vector<8x128xbf16>
    %cst_146 = arith.constant dense<0.000000e+00> : vector<8x512xf32>
    %690 = tpu.matmul %689, %16, %cst_146 {dimension_numbers = #tpu.dot_dimension_numbers<[1], [0], [0], [1], [0, 0, 1, 1], [], []>} : vector<8x128xbf16>, vector<128x512xbf16>, vector<8x512xf32> -> vector<8x512xf32>
    %691 = arith.addf %688, %690 : vector<8x512xf32>
    %692 = vector.extract_strided_slice %691 {offsets = [0, 0], sizes = [8, 128], strides = [1, 1]} : vector<8x512xf32> to vector<8x128xf32>
    %693 = arith.negf %692 : vector<8x128xf32>
    %694 = math.exp %693 : vector<8x128xf32>
    %cst_147 = arith.constant 1.000000e+00 : f32
    %695 = vector.broadcast %cst_147 : f32 to vector<8x128xf32>
    %696 = arith.addf %695, %694 : vector<8x128xf32>
    %697 = arith.divf %695, %696 : vector<8x128xf32>
    %698 = vector.extract_strided_slice %691 {offsets = [0, 128], sizes = [8, 128], strides = [1, 1]} : vector<8x512xf32> to vector<8x128xf32>
    %699 = arith.negf %698 : vector<8x128xf32>
    %700 = math.exp %699 : vector<8x128xf32>
    %cst_148 = arith.constant 1.000000e+00 : f32
    %701 = vector.broadcast %cst_148 : f32 to vector<8x128xf32>
    %702 = arith.addf %701, %700 : vector<8x128xf32>
    %703 = arith.divf %701, %702 : vector<8x128xf32>
    %704 = vector.extract_strided_slice %691 {offsets = [0, 256], sizes = [8, 128], strides = [1, 1]} : vector<8x512xf32> to vector<8x128xf32>
    %705 = math.tanh %704 : vector<8x128xf32>
    %706 = vector.extract_strided_slice %691 {offsets = [0, 384], sizes = [8, 128], strides = [1, 1]} : vector<8x512xf32> to vector<8x128xf32>
    %707 = arith.negf %706 : vector<8x128xf32>
    %708 = math.exp %707 : vector<8x128xf32>
    %cst_149 = arith.constant 1.000000e+00 : f32
    %709 = vector.broadcast %cst_149 : f32 to vector<8x128xf32>
    %710 = arith.addf %709, %708 : vector<8x128xf32>
    %711 = arith.divf %709, %710 : vector<8x128xf32>
    %712 = arith.mulf %703, %629 : vector<8x128xf32>
    %713 = arith.mulf %697, %705 : vector<8x128xf32>
    %714 = arith.addf %712, %713 : vector<8x128xf32>
    %715 = math.tanh %714 : vector<8x128xf32>
    %716 = arith.mulf %711, %715 : vector<8x128xf32>
    %717 = vector.broadcast %c7_i32_142 : i32 to vector<8x1xi32>
    %718 = arith.cmpi sgt, %18, %717 : vector<8x1xi32>
    %719 = vector.shape_cast %718 : vector<8x1xi1> to vector<8x1xi1>
    %720 = vector.broadcast %719 : vector<8x1xi1> to vector<8x128xi1>
    %721 = arith.select %720, %716, %626 : vector<8x128xi1>, vector<8x128xf32>
    %722 = vector.shape_cast %718 : vector<8x1xi1> to vector<8x1xi1>
    %723 = vector.broadcast %722 : vector<8x1xi1> to vector<8x128xi1>
    %724 = arith.select %723, %714, %629 : vector<8x128xi1>, vector<8x128xf32>
    %725 = vector.shape_cast %718 : vector<8x1xi1> to vector<8x1xi1>
    %726 = vector.broadcast %725 : vector<8x1xi1> to vector<8x128xi1>
    %727 = arith.select %726, %716, %19 : vector<8x128xi1>, vector<8x128xf32>
    %728 = arith.truncf %727 : vector<8x128xf32> to vector<8x128xbf16>
    %729 = arith.index_cast %c7_i32_142 : i32 to index
    %c0_150 = arith.constant 0 : index
    %c0_151 = arith.constant 0 : index
    %730 = vector.load %arg15[%729, %c0_150, %c0_151] : memref<8x8x128xbf16, #tpu.memory_space<vmem>>, vector<1x8x128xbf16>
    %731 = vector.shape_cast %730 : vector<1x8x128xbf16> to vector<8x128xbf16>
    %732 = vector.shape_cast %728 : vector<8x128xbf16> to vector<1x8x128xbf16>
    tpu.vector_store %arg15[%729, %c0_150, %c0_151], %732 {strides = array<i32>} : memref<8x8x128xbf16, #tpu.memory_space<vmem>>, vector<1x8x128xbf16>,
    %733 = arith.index_cast %685 : i32 to index
    %c0_152 = arith.constant 0 : index
    %c0_153 = arith.constant 0 : index
    %734 = vector.load %arg14[%733, %c0_152, %c0_153] : memref<8x8x512xf32, #tpu.memory_space<vmem>>, vector<1x8x512xf32>
    %735 = vector.shape_cast %734 : vector<1x8x512xf32> to vector<8x512xf32>
    %736 = arith.truncf %673 : vector<8x128xf32> to vector<8x128xbf16>
    %cst_154 = arith.constant dense<0.000000e+00> : vector<8x512xf32>
    %737 = tpu.matmul %736, %17, %cst_154 {dimension_numbers = #tpu.dot_dimension_numbers<[1], [0], [0], [1], [0, 0, 1, 1], [], []>} : vector<8x128xbf16>, vector<128x512xbf16>, vector<8x512xf32> -> vector<8x512xf32>
    %738 = arith.addf %735, %737 : vector<8x512xf32>
    %739 = vector.extract_strided_slice %738 {offsets = [0, 0], sizes = [8, 128], strides = [1, 1]} : vector<8x512xf32> to vector<8x128xf32>
    %740 = arith.negf %739 : vector<8x128xf32>
    %741 = math.exp %740 : vector<8x128xf32>
    %cst_155 = arith.constant 1.000000e+00 : f32
    %742 = vector.broadcast %cst_155 : f32 to vector<8x128xf32>
    %743 = arith.addf %742, %741 : vector<8x128xf32>
    %744 = arith.divf %742, %743 : vector<8x128xf32>
    %745 = vector.extract_strided_slice %738 {offsets = [0, 128], sizes = [8, 128], strides = [1, 1]} : vector<8x512xf32> to vector<8x128xf32>
    %746 = arith.negf %745 : vector<8x128xf32>
    %747 = math.exp %746 : vector<8x128xf32>
    %cst_156 = arith.constant 1.000000e+00 : f32
    %748 = vector.broadcast %cst_156 : f32 to vector<8x128xf32>
    %749 = arith.addf %748, %747 : vector<8x128xf32>
    %750 = arith.divf %748, %749 : vector<8x128xf32>
    %751 = vector.extract_strided_slice %738 {offsets = [0, 256], sizes = [8, 128], strides = [1, 1]} : vector<8x512xf32> to vector<8x128xf32>
    %752 = math.tanh %751 : vector<8x128xf32>
    %753 = vector.extract_strided_slice %738 {offsets = [0, 384], sizes = [8, 128], strides = [1, 1]} : vector<8x512xf32> to vector<8x128xf32>
    %754 = arith.negf %753 : vector<8x128xf32>
    %755 = math.exp %754 : vector<8x128xf32>
    %cst_157 = arith.constant 1.000000e+00 : f32
    %756 = vector.broadcast %cst_157 : f32 to vector<8x128xf32>
    %757 = arith.addf %756, %755 : vector<8x128xf32>
    %758 = arith.divf %756, %757 : vector<8x128xf32>
    %759 = arith.mulf %750, %676 : vector<8x128xf32>
    %760 = arith.mulf %744, %752 : vector<8x128xf32>
    %761 = arith.addf %759, %760 : vector<8x128xf32>
    %762 = math.tanh %761 : vector<8x128xf32>
    %763 = arith.mulf %758, %762 : vector<8x128xf32>
    %764 = vector.broadcast %685 : i32 to vector<8x1xi32>
    %765 = arith.cmpi sgt, %18, %764 : vector<8x1xi32>
    %766 = vector.shape_cast %765 : vector<8x1xi1> to vector<8x1xi1>
    %767 = vector.broadcast %766 : vector<8x1xi1> to vector<8x128xi1>
    %768 = arith.select %767, %763, %673 : vector<8x128xi1>, vector<8x128xf32>
    %769 = vector.shape_cast %765 : vector<8x1xi1> to vector<8x1xi1>
    %770 = vector.broadcast %769 : vector<8x1xi1> to vector<8x128xi1>
    %771 = arith.select %770, %761, %676 : vector<8x128xi1>, vector<8x128xf32>
    %772 = vector.shape_cast %765 : vector<8x1xi1> to vector<8x1xi1>
    %773 = vector.broadcast %772 : vector<8x1xi1> to vector<8x128xi1>
    %774 = arith.select %773, %763, %19 : vector<8x128xi1>, vector<8x128xf32>
    %775 = arith.truncf %774 : vector<8x128xf32> to vector<8x128xbf16>
    %776 = arith.index_cast %685 : i32 to index
    %c0_158 = arith.constant 0 : index
    %c0_159 = arith.constant 0 : index
    %777 = vector.load %arg16[%776, %c0_158, %c0_159] : memref<8x8x128xbf16, #tpu.memory_space<vmem>>, vector<1x8x128xbf16>
    %778 = vector.shape_cast %777 : vector<1x8x128xbf16> to vector<8x128xbf16>
    %779 = vector.shape_cast %775 : vector<8x128xbf16> to vector<1x8x128xbf16>
    tpu.vector_store %arg16[%776, %c0_158, %c0_159], %779 {strides = array<i32>} : memref<8x8x128xbf16, #tpu.memory_space<vmem>>, vector<1x8x128xbf16>,
    %c8_i32 = arith.constant 8 : i32
    %c0_160 = arith.constant 0 : index
    %c0_161 = arith.constant 0 : index
    %c0_162 = arith.constant 0 : index
    %780 = vector.load %arg15[%c0_160, %c0_161, %c0_162] : memref<8x8x128xbf16, #tpu.memory_space<vmem>>, vector<8x8x128xbf16>
    %781 = vector.shape_cast %780 : vector<8x8x128xbf16> to vector<64x128xbf16>
    %c0_163 = arith.constant 0 : index
    %c0_164 = arith.constant 0 : index
    %c0_165 = arith.constant 0 : index
    %782 = vector.load %arg16[%c0_163, %c0_164, %c0_165] : memref<8x8x128xbf16, #tpu.memory_space<vmem>>, vector<8x8x128xbf16>
    %783 = vector.shape_cast %782 : vector<8x8x128xbf16> to vector<64x128xbf16>
    %c0_166 = arith.constant 0 : index
    %c0_167 = arith.constant 0 : index
    %784 = vector.load %arg9[%c0_166, %c0_167] : memref<128x128xbf16, #tpu.memory_space<vmem>>, vector<128x128xbf16>
    %cst_168 = arith.constant dense<0.000000e+00> : vector<64x128xf32>
    %785 = tpu.matmul %781, %784, %cst_168 {dimension_numbers = #tpu.dot_dimension_numbers<[1], [0], [0], [1], [0, 0, 1, 1], [], []>} : vector<64x128xbf16>, vector<128x128xbf16>, vector<64x128xf32> -> vector<64x128xf32>
    %c0_169 = arith.constant 0 : index
    %c0_170 = arith.constant 0 : index
    %786 = vector.load %arg10[%c0_169, %c0_170] : memref<128x128xbf16, #tpu.memory_space<vmem>>, vector<128x128xbf16>
    %cst_171 = arith.constant dense<0.000000e+00> : vector<64x128xf32>
    %787 = tpu.matmul %783, %786, %cst_171 {dimension_numbers = #tpu.dot_dimension_numbers<[1], [0], [0], [1], [0, 0, 1, 1], [], []>} : vector<64x128xbf16>, vector<128x128xbf16>, vector<64x128xf32> -> vector<64x128xf32>
    %788 = arith.addf %785, %787 : vector<64x128xf32>
    %c0_172 = arith.constant 0 : index
    %c0_173 = arith.constant 0 : index
    %789 = vector.load %arg11[%c0_172, %c0_173] : memref<1x128xf32, #tpu.memory_space<vmem>>, vector<1x128xf32>
    %790 = vector.broadcast %789 : vector<1x128xf32> to vector<64x128xf32>
    %791 = arith.addf %788, %790 : vector<64x128xf32>
    %792 = vector.shape_cast %791 : vector<64x128xf32> to vector<8x8x128xf32>
    %c0_174 = arith.constant 0 : index
    %c0_175 = arith.constant 0 : index
    %c0_176 = arith.constant 0 : index
    %793 = vector.load %arg12[%c0_174, %c0_175, %c0_176] : memref<8x8x128xf32, #tpu.memory_space<vmem>>, vector<8x8x128xf32>
    tpu.vector_store %arg12[%c0_174, %c0_175, %c0_176], %792 {strides = array<i32>} : memref<8x8x128xf32, #tpu.memory_space<vmem>>, vector<8x8x128xf32>,
    return
  }
  func.func @transform_0(%arg0: i32) -> (i32, i32, i32) {
    %c0_i32 = arith.constant 0 : i32
    %c0_i32_0 = arith.constant 0 : i32
    %c0_i32_1 = arith.constant 0 : i32
    return %c0_i32, %arg0, %c0_i32_0 : i32, i32, i32
  }
  func.func @transform_1(%arg0: i32) -> (i32, i32) {
    %c0_i32 = arith.constant 0 : i32
    %c0_i32_0 = arith.constant 0 : i32
    return %arg0, %c0_i32 : i32, i32
  }
  func.func @transform_2(%arg0: i32) -> (i32, i32) {
    %c0_i32 = arith.constant 0 : i32
    %c0_i32_0 = arith.constant 0 : i32
    %c0_i32_1 = arith.constant 0 : i32
    return %c0_i32, %c0_i32_0 : i32, i32
  }
  func.func @transform_3(%arg0: i32) -> (i32, i32) {
    %c0_i32 = arith.constant 0 : i32
    %c0_i32_0 = arith.constant 0 : i32
    %c0_i32_1 = arith.constant 0 : i32
    return %c0_i32, %c0_i32_0 : i32, i32
  }
  func.func @transform_4(%arg0: i32) -> (i32, i32) {
    %c0_i32 = arith.constant 0 : i32
    %c0_i32_0 = arith.constant 0 : i32
    %c0_i32_1 = arith.constant 0 : i32
    return %c0_i32, %c0_i32_0 : i32, i32
  }
  func.func @transform_5(%arg0: i32) -> (i32, i32) {
    %c0_i32 = arith.constant 0 : i32
    %c0_i32_0 = arith.constant 0 : i32
    %c0_i32_1 = arith.constant 0 : i32
    return %c0_i32, %c0_i32_0 : i32, i32
  }
  func.func @transform_6(%arg0: i32) -> (i32, i32) {
    %c0_i32 = arith.constant 0 : i32
    %c0_i32_0 = arith.constant 0 : i32
    %c0_i32_1 = arith.constant 0 : i32
    return %c0_i32, %c0_i32_0 : i32, i32
  }
  func.func @transform_7(%arg0: i32) -> (i32, i32) {
    %c0_i32 = arith.constant 0 : i32
    %c0_i32_0 = arith.constant 0 : i32
    %c0_i32_1 = arith.constant 0 : i32
    return %c0_i32, %c0_i32_0 : i32, i32
  }
  func.func @transform_8(%arg0: i32) -> (i32, i32) {
    %c0_i32 = arith.constant 0 : i32
    %c0_i32_0 = arith.constant 0 : i32
    %c0_i32_1 = arith.constant 0 : i32
    return %c0_i32, %c0_i32_0 : i32, i32
  }
  func.func @transform_9(%arg0: i32) -> (i32, i32) {
    %c0_i32 = arith.constant 0 : i32
    %c0_i32_0 = arith.constant 0 : i32
    %c0_i32_1 = arith.constant 0 : i32
    return %c0_i32, %c0_i32_0 : i32, i32
  }
  func.func @transform_10(%arg0: i32) -> (i32, i32) {
    %c0_i32 = arith.constant 0 : i32
    %c0_i32_0 = arith.constant 0 : i32
    %c0_i32_1 = arith.constant 0 : i32
    return %c0_i32, %c0_i32_0 : i32, i32
  }
  func.func @transform_11(%arg0: i32) -> (i32, i32, i32) {
    %c0_i32 = arith.constant 0 : i32
    %c0_i32_0 = arith.constant 0 : i32
    %c0_i32_1 = arith.constant 0 : i32
    return %c0_i32, %arg0, %c0_i32_0 : i32, i32, i32
  }
}

</mosaic_0001>

<llo_original>
// kernel: bilstm_forward.1
$region0: #{bilstm_forward.1}
  #allocation0 [shape = 'u32[]', space=smem, size = 0x4, offset = 0x4, fixed_abs, tag = 'smem constant byte address 0x4 - core index']
  #allocation1 [shape = 'u32[72,128]{1,0:T(1,128)}', space=vmem, size = 0x9000, scoped, tag = 'internal scratch']
  #allocation2 [shape = 'f32[8,8,512]{2,1,0:T(8,128)}', space=vmem, size = 0x20000, scoped, tag = 'scratch operand']
  #allocation3 [shape = 'f32[8,8,512]{2,1,0:T(8,128)}', space=vmem, size = 0x20000, scoped, tag = 'scratch operand']
  #allocation4 [shape = 'bf16[8,8,128]{2,1,0:T(8,128)(2,1)}', space=vmem, size = 0x4000, scoped, tag = 'scratch operand']
  #allocation5 [shape = 'bf16[8,8,128]{2,1,0:T(8,128)(2,1)}', space=vmem, size = 0x4000, scoped, tag = 'scratch operand']
  %s0 = inlined_call_operand.vmem [shape: bf16[8,8,128], index: 0, kind: input, shape index: {}]
  %s1 = inlined_call_operand.vmem [shape: s32[8,1], index: 1, kind: input, shape index: {}]
  %s2 = inlined_call_operand.vmem [shape: bf16[128,512], index: 2, kind: input, shape index: {}]
  %s3 = inlined_call_operand.vmem [shape: bf16[128,512], index: 3, kind: input, shape index: {}]
  %s4 = inlined_call_operand.vmem [shape: f32[1,512], index: 4, kind: input, shape index: {}]
  %s5 = inlined_call_operand.vmem [shape: bf16[128,512], index: 5, kind: input, shape index: {}]
  %s6 = inlined_call_operand.vmem [shape: bf16[128,512], index: 6, kind: input, shape index: {}]
  %s7 = inlined_call_operand.vmem [shape: f32[1,512], index: 7, kind: input, shape index: {}]
  %s8 = inlined_call_operand.vmem [shape: bf16[128,128], index: 8, kind: input, shape index: {}]
  %s9 = inlined_call_operand.vmem [shape: bf16[128,128], index: 9, kind: input, shape index: {}]
  %s10 = inlined_call_operand.vmem [shape: f32[1,128], index: 10, kind: input, shape index: {}]
  %s11 = inlined_call_operand.vmem [shape: f32[8,8,128], index: 11, kind: output, shape index: {}]
  %s12 = sld [smem:[#allocation0]]
  $region54: #{bilstm_forward.1} parent=0
    _
  %s14 = ssub.s32 1, %s12
  %s15 = scalar_select 0, %s14, %s12
  // Predicated region
  $region2: #{bilstm_forward.1} parent=0 // pred_check
    _
  $region3: #{bilstm_forward.1} parent=0 // pred_check_branch
    %17 = sbr.rel (0) target = $region5
  $region4: #{bilstm_forward.1} parent=0 // pred_region
    _
  $region5: #{bilstm_forward.1} parent=0 // pred_fallthru
    _
  // Predicated region
  $region6: #{bilstm_forward.1} parent=0 // pred_check
    _
  $region7: #{bilstm_forward.1} parent=0 // pred_check_branch
    %19 = sbr.rel (0) target = $region9
  $region8: #{bilstm_forward.1} parent=0 // pred_region
    _
  $region9: #{bilstm_forward.1} parent=0 // pred_fallthru
    _
  // Predicated region
  $region10: #{bilstm_forward.1} parent=0 // pred_check
    _
  $region11: #{bilstm_forward.1} parent=0 // pred_check_branch
    %21 = sbr.rel (0) target = $region13
  $region12: #{bilstm_forward.1} parent=0 // pred_region
    _
  $region13: #{bilstm_forward.1} parent=0 // pred_fallthru
    _
  // Predicated region
  $region14: #{bilstm_forward.1} parent=0 // pred_check
    _
  $region15: #{bilstm_forward.1} parent=0 // pred_check_branch
    %23 = sbr.rel (0) target = $region17
  $region16: #{bilstm_forward.1} parent=0 // pred_region
    _
  $region17: #{bilstm_forward.1} parent=0 // pred_fallthru
    _
  // Predicated region
  $region18: #{bilstm_forward.1} parent=0 // pred_check
    _
  $region19: #{bilstm_forward.1} parent=0 // pred_check_branch
    %25 = sbr.rel (0) target = $region21
  $region20: #{bilstm_forward.1} parent=0 // pred_region
    _
  $region21: #{bilstm_forward.1} parent=0 // pred_fallthru
    _
  // Predicated region
  $region22: #{bilstm_forward.1} parent=0 // pred_check
    _
  $region23: #{bilstm_forward.1} parent=0 // pred_check_branch
    %27 = sbr.rel (0) target = $region25
  $region24: #{bilstm_forward.1} parent=0 // pred_region
    _
  $region25: #{bilstm_forward.1} parent=0 // pred_fallthru
    _
  // Predicated region
  $region26: #{bilstm_forward.1} parent=0 // pred_check
    _
  $region27: #{bilstm_forward.1} parent=0 // pred_check_branch
    %29 = sbr.rel (0) target = $region29
  $region28: #{bilstm_forward.1} parent=0 // pred_region
    _
  $region29: #{bilstm_forward.1} parent=0 // pred_fallthru
    _
  // Predicated region
  $region30: #{bilstm_forward.1} parent=0 // pred_check
    _
  $region31: #{bilstm_forward.1} parent=0 // pred_check_branch
    %31 = sbr.rel (0) target = $region33
  $region32: #{bilstm_forward.1} parent=0 // pred_region
    _
  $region33: #{bilstm_forward.1} parent=0 // pred_fallthru
    _
  // Predicated region
  $region34: #{bilstm_forward.1} parent=0 // pred_check
    _
  $region35: #{bilstm_forward.1} parent=0 // pred_check_branch
    %33 = sbr.rel (0) target = $region37
  $region36: #{bilstm_forward.1} parent=0 // pred_region
    _
  $region37: #{bilstm_forward.1} parent=0 // pred_fallthru
    _
  // Predicated region
  $region38: #{bilstm_forward.1} parent=0 // pred_check
    _
  $region39: #{bilstm_forward.1} parent=0 // pred_check_branch
    %35 = sbr.rel (0) target = $region41
  $region40: #{bilstm_forward.1} parent=0 // pred_region
    _
  $region41: #{bilstm_forward.1} parent=0 // pred_fallthru
    _
  // Predicated region
  $region42: #{bilstm_forward.1} parent=0 // pred_check
    _
  $region43: #{bilstm_forward.1} parent=0 // pred_check_branch
    %37 = sbr.rel (0) target = $region45
  $region44: #{bilstm_forward.1} parent=0 // pred_region
    _
  $region45: #{bilstm_forward.1} parent=0 // pred_fallthru
    _
  %v39 = vld [vmem:[%s0] sm:$0xf]
  %v40 = vld [vmem:[%s0 + $0x4] sm:$0xf]
  %v41 = vld [vmem:[%s0 + $0x8] sm:$0xf]
  %v42 = vld [vmem:[%s0 + $0xc] sm:$0xf]
  %v43 = vld [vmem:[%s0 + $0x10] sm:$0xf]
  %v44 = vld [vmem:[%s0 + $0x14] sm:$0xf]
  %v45 = vld [vmem:[%s0 + $0x18] sm:$0xf]
  %v46 = vld [vmem:[%s0 + $0x1c] sm:$0xf]
  %v47 = vld [vmem:[%s2] sm:$0xff]
  %v48 = vld [vmem:[%s2 + $0x8] sm:$0xff]
  %v49 = vld [vmem:[%s2 + $0x10] sm:$0xff]
  %v50 = vld [vmem:[%s2 + $0x18] sm:$0xff]
  %v51 = vld [vmem:[%s2 + $0x20] sm:$0xff]
  %v52 = vld [vmem:[%s2 + $0x28] sm:$0xff]
  %v53 = vld [vmem:[%s2 + $0x30] sm:$0xff]
  %v54 = vld [vmem:[%s2 + $0x38] sm:$0xff]
  %v55 = vld [vmem:[%s2 + $0x40] sm:$0xff]
  %v56 = vld [vmem:[%s2 + $0x48] sm:$0xff]
  %v57 = vld [vmem:[%s2 + $0x50] sm:$0xff]
  %v58 = vld [vmem:[%s2 + $0x58] sm:$0xff]
  %v59 = vld [vmem:[%s2 + $0x60] sm:$0xff]
  %v60 = vld [vmem:[%s2 + $0x68] sm:$0xff]
  %v61 = vld [vmem:[%s2 + $0x70] sm:$0xff]
  %v62 = vld [vmem:[%s2 + $0x78] sm:$0xff]
  %v63 = vld [vmem:[%s2 + $0x80] sm:$0xff]
  %v64 = vld [vmem:[%s2 + $0x88] sm:$0xff]
  %v65 = vld [vmem:[%s2 + $0x90] sm:$0xff]
  %v66 = vld [vmem:[%s2 + $0x98] sm:$0xff]
  %v67 = vld [vmem:[%s2 + $0xa0] sm:$0xff]
  %v68 = vld [vmem:[%s2 + $0xa8] sm:$0xff]
  %v69 = vld [vmem:[%s2 + $0xb0] sm:$0xff]
  %v70 = vld [vmem:[%s2 + $0xb8] sm:$0xff]
  %v71 = vld [vmem:[%s2 + $0xc0] sm:$0xff]
  %v72 = vld [vmem:[%s2 + $0xc8] sm:$0xff]
  %v73 = vld [vmem:[%s2 + $0xd0] sm:$0xff]
  %v74 = vld [vmem:[%s2 + $0xd8] sm:$0xff]
  %v75 = vld [vmem:[%s2 + $0xe0] sm:$0xff]
  %v76 = vld [vmem:[%s2 + $0xe8] sm:$0xff]
  %v77 = vld [vmem:[%s2 + $0xf0] sm:$0xff]
  %v78 = vld [vmem:[%s2 + $0xf8] sm:$0xff]
  %v79 = vld [vmem:[%s4] sm:$0xf]
  %v81 = vperm.slane %v79, 0
  %v82 = vperm.slane %v79, 1
  %v83 = vperm.slane %v79, 2
  %v84 = vperm.slane %v79, 3
  %v97 = vunpack.c.l.b16 %v39
  %v98 = vunpack.c.l.b16 %v40
  %v99 = vunpack.c.l.b16 %v41
  %v100 = vunpack.c.l.b16 %v42
  %v101 = vunpack.c.l.b16 %v43
  %v102 = vunpack.c.l.b16 %v44
  %v103 = vunpack.c.l.b16 %v45
  %v104 = vunpack.c.l.b16 %v46
  %v105 = vpack.c.b16 %v98, %v97
  %v106 = vpack.c.b16 %v100, %v99
  %v107 = vpack.c.b16 %v102, %v101
  %v108 = vpack.c.b16 %v104, %v103
  %v145 = vunpack.c.l.b16 %v47
  %v146 = vunpack.c.h.b16 %v47
  %v147 = vunpack.c.l.b16 %v48
  %v148 = vunpack.c.h.b16 %v48
  %v149 = vunpack.c.l.b16 %v49
  %v150 = vunpack.c.h.b16 %v49
  %v151 = vunpack.c.l.b16 %v50
  %v152 = vunpack.c.h.b16 %v50
  %v153 = vunpack.c.l.b16 %v51
  %v154 = vunpack.c.h.b16 %v51
  %v155 = vunpack.c.l.b16 %v52
  %v156 = vunpack.c.h.b16 %v52
  %v157 = vunpack.c.l.b16 %v53
  %v158 = vunpack.c.h.b16 %v53
  %v159 = vunpack.c.l.b16 %v54
  %v160 = vunpack.c.h.b16 %v54
  %v161 = vunpack.c.l.b16 %v55
  %v162 = vunpack.c.h.b16 %v55
  %v163 = vunpack.c.l.b16 %v56
  %v164 = vunpack.c.h.b16 %v56
  %v165 = vunpack.c.l.b16 %v57
  %v166 = vunpack.c.h.b16 %v57
  %v167 = vunpack.c.l.b16 %v58
  %v168 = vunpack.c.h.b16 %v58
  %v169 = vunpack.c.l.b16 %v59
  %v170 = vunpack.c.h.b16 %v59
  %v171 = vunpack.c.l.b16 %v60
  %v172 = vunpack.c.h.b16 %v60
  %v173 = vunpack.c.l.b16 %v61
  %v174 = vunpack.c.h.b16 %v61
  %v175 = vunpack.c.l.b16 %v62
  %v176 = vunpack.c.h.b16 %v62
  %v177 = vunpack.c.l.b16 %v63
  %v178 = vunpack.c.h.b16 %v63
  %v179 = vunpack.c.l.b16 %v64
  %v180 = vunpack.c.h.b16 %v64
  %v181 = vunpack.c.l.b16 %v65
  %v182 = vunpack.c.h.b16 %v65
  %v183 = vunpack.c.l.b16 %v66
  %v184 = vunpack.c.h.b16 %v66
  %v185 = vunpack.c.l.b16 %v67
  %v186 = vunpack.c.h.b16 %v67
  %v187 = vunpack.c.l.b16 %v68
  %v188 = vunpack.c.h.b16 %v68
  %v189 = vunpack.c.l.b16 %v69
  %v190 = vunpack.c.h.b16 %v69
  %v191 = vunpack.c.l.b16 %v70
  %v192 = vunpack.c.h.b16 %v70
  %v193 = vunpack.c.l.b16 %v71
  %v194 = vunpack.c.h.b16 %v71
  %v195 = vunpack.c.l.b16 %v72
  %v196 = vunpack.c.h.b16 %v72
  %v197 = vunpack.c.l.b16 %v73
  %v198 = vunpack.c.h.b16 %v73
  %v199 = vunpack.c.l.b16 %v74
  %v200 = vunpack.c.h.b16 %v74
  %v201 = vunpack.c.l.b16 %v75
  %v202 = vunpack.c.h.b16 %v75
  %v203 = vunpack.c.l.b16 %v76
  %v204 = vunpack.c.h.b16 %v76
  %v205 = vunpack.c.l.b16 %v77
  %v206 = vunpack.c.h.b16 %v77
  %v207 = vunpack.c.l.b16 %v78
  %v208 = vunpack.c.h.b16 %v78
  %v209 = vpack.c.b16 %v149, %v145
  %v210 = vpack.c.b16 %v150, %v146
  %v211 = vpack.c.b16 %v151, %v147
  %v212 = vpack.c.b16 %v152, %v148
  %v213 = vpack.c.b16 %v157, %v153
  %v214 = vpack.c.b16 %v158, %v154
  %v215 = vpack.c.b16 %v159, %v155
  %v216 = vpack.c.b16 %v160, %v156
  %v217 = vpack.c.b16 %v165, %v161
  %v218 = vpack.c.b16 %v166, %v162
  %v219 = vpack.c.b16 %v167, %v163
  %v220 = vpack.c.b16 %v168, %v164
  %v221 = vpack.c.b16 %v173, %v169
  %v222 = vpack.c.b16 %v174, %v170
  %v223 = vpack.c.b16 %v175, %v171
  %v224 = vpack.c.b16 %v176, %v172
  %v225 = vpack.c.b16 %v181, %v177
  %v226 = vpack.c.b16 %v182, %v178
  %v227 = vpack.c.b16 %v183, %v179
  %v228 = vpack.c.b16 %v184, %v180
  %v229 = vpack.c.b16 %v189, %v185
  %v230 = vpack.c.b16 %v190, %v186
  %v231 = vpack.c.b16 %v191, %v187
  %v232 = vpack.c.b16 %v192, %v188
  %v233 = vpack.c.b16 %v197, %v193
  %v234 = vpack.c.b16 %v198, %v194
  %v235 = vpack.c.b16 %v199, %v195
  %v236 = vpack.c.b16 %v200, %v196
  %v237 = vpack.c.b16 %v205, %v201
  %v238 = vpack.c.b16 %v206, %v202
  %v239 = vpack.c.b16 %v207, %v203
  %v240 = vpack.c.b16 %v208, %v204
  %273 = vmatpush.bf16.msra.mxu0 %v237
  %274 = vmatpush.bf16.msra.mxu0 %v233
  %275 = vmatpush.bf16.msra.mxu0 %v229
  %276 = vmatpush.bf16.msra.mxu0 %v225
  %277 = vmatpush.bf16.msra.mxu0 %v221
  %278 = vmatpush.bf16.msra.mxu0 %v217
  %279 = vmatpush.bf16.msra.mxu0 %v213
  %280 = vmatpush.bf16.msra.mxu0 %v209
  %281 = vmatmul.bf16.gmra.mxu0 %v105
  %v282 = vpop.f32.mrf.mxu0
  %v283 = vadd.f32 %v81, %v282
  %v284 = vpop.f32.mrf.mxu0
  %v285 = vadd.f32 %v81, %v284
  %286 = vmatmul.bf16.gmra.mxu0 %v106
  %v287 = vpop.f32.mrf.mxu0
  %v288 = vadd.f32 %v81, %v287
  %v289 = vpop.f32.mrf.mxu0
  %v290 = vadd.f32 %v81, %v289
  %291 = vmatmul.bf16.gmra.mxu0 %v107
  %v292 = vpop.f32.mrf.mxu0
  %v293 = vadd.f32 %v81, %v292
  %v294 = vpop.f32.mrf.mxu0
  %v295 = vadd.f32 %v81, %v294
  %296 = vmatmul.bf16.gmra.mxu0 %v108
  %v297 = vpop.f32.mrf.mxu0
  %v298 = vadd.f32 %v81, %v297
  %v299 = vpop.f32.mrf.mxu0
  %v300 = vadd.f32 %v81, %v299
  %301 = vdwg.mxu0
  %302 = vmatpush.bf16.msra.mxu0 %v238
  %303 = vmatpush.bf16.msra.mxu0 %v234
  %304 = vmatpush.bf16.msra.mxu0 %v230
  %305 = vmatpush.bf16.msra.mxu0 %v226
  %306 = vmatpush.bf16.msra.mxu0 %v222
  %307 = vmatpush.bf16.msra.mxu0 %v218
  %308 = vmatpush.bf16.msra.mxu0 %v214
  %309 = vmatpush.bf16.msra.mxu0 %v210
  %310 = vmatmul.bf16.gmra.mxu0 %v105
  %v311 = vpop.f32.mrf.mxu0
  %v312 = vadd.f32 %v82, %v311
  %v313 = vpop.f32.mrf.mxu0
  %v314 = vadd.f32 %v82, %v313
  %315 = vmatmul.bf16.gmra.mxu0 %v106
  %v316 = vpop.f32.mrf.mxu0
  %v317 = vadd.f32 %v82, %v316
  %v318 = vpop.f32.mrf.mxu0
  %v319 = vadd.f32 %v82, %v318
  %320 = vmatmul.bf16.gmra.mxu0 %v107
  %v321 = vpop.f32.mrf.mxu0
  %v322 = vadd.f32 %v82, %v321
  %v323 = vpop.f32.mrf.mxu0
  %v324 = vadd.f32 %v82, %v323
  %325 = vmatmul.bf16.gmra.mxu0 %v108
  %v326 = vpop.f32.mrf.mxu0
  %v327 = vadd.f32 %v82, %v326
  %v328 = vpop.f32.mrf.mxu0
  %v329 = vadd.f32 %v82, %v328
  %330 = vdwg.mxu0
  %331 = vmatpush.bf16.msra.mxu0 %v239
  %332 = vmatpush.bf16.msra.mxu0 %v235
  %333 = vmatpush.bf16.msra.mxu0 %v231
  %334 = vmatpush.bf16.msra.mxu0 %v227
  %335 = vmatpush.bf16.msra.mxu0 %v223
  %336 = vmatpush.bf16.msra.mxu0 %v219
  %337 = vmatpush.bf16.msra.mxu0 %v215
  %338 = vmatpush.bf16.msra.mxu0 %v211
  %339 = vmatmul.bf16.gmra.mxu0 %v105
  %v340 = vpop.f32.mrf.mxu0
  %v341 = vadd.f32 %v83, %v340
  %v342 = vpop.f32.mrf.mxu0
  %v343 = vadd.f32 %v83, %v342
  %344 = vmatmul.bf16.gmra.mxu0 %v106
  %v345 = vpop.f32.mrf.mxu0
  %v346 = vadd.f32 %v83, %v345
  %v347 = vpop.f32.mrf.mxu0
  %v348 = vadd.f32 %v83, %v347
  %349 = vmatmul.bf16.gmra.mxu0 %v107
  %v350 = vpop.f32.mrf.mxu0
  %v351 = vadd.f32 %v83, %v350
  %v352 = vpop.f32.mrf.mxu0
  %v353 = vadd.f32 %v83, %v352
  %354 = vmatmul.bf16.gmra.mxu0 %v108
  %v355 = vpop.f32.mrf.mxu0
  %v356 = vadd.f32 %v83, %v355
  %v357 = vpop.f32.mrf.mxu0
  %v358 = vadd.f32 %v83, %v357
  %359 = vdwg.mxu0
  %360 = vmatpush.bf16.msra.mxu0 %v240
  %361 = vmatpush.bf16.msra.mxu0 %v236
  %362 = vmatpush.bf16.msra.mxu0 %v232
  %363 = vmatpush.bf16.msra.mxu0 %v228
  %364 = vmatpush.bf16.msra.mxu0 %v224
  %365 = vmatpush.bf16.msra.mxu0 %v220
  %366 = vmatpush.bf16.msra.mxu0 %v216
  %367 = vmatpush.bf16.msra.mxu0 %v212
  %368 = vmatmul.bf16.gmra.mxu0 %v105
  %v369 = vpop.f32.mrf.mxu0
  %v370 = vadd.f32 %v84, %v369
  %v371 = vpop.f32.mrf.mxu0
  %v372 = vadd.f32 %v84, %v371
  %373 = vmatmul.bf16.gmra.mxu0 %v106
  %v374 = vpop.f32.mrf.mxu0
  %v375 = vadd.f32 %v84, %v374
  %v376 = vpop.f32.mrf.mxu0
  %v377 = vadd.f32 %v84, %v376
  %378 = vmatmul.bf16.gmra.mxu0 %v107
  %v379 = vpop.f32.mrf.mxu0
  %v380 = vadd.f32 %v84, %v379
  %v381 = vpop.f32.mrf.mxu0
  %v382 = vadd.f32 %v84, %v381
  %383 = vmatmul.bf16.gmra.mxu0 %v108
  %v384 = vpop.f32.mrf.mxu0
  %v385 = vadd.f32 %v84, %v384
  %v386 = vpop.f32.mrf.mxu0
  %v387 = vadd.f32 %v84, %v386
  %388 = vdwg.mxu0
  %389 = vst [vmem:[#allocation2] sm:$0xff] %v283
  %390 = vst [vmem:[#allocation2 + $0x8] sm:$0xff] %v312
  %391 = vst [vmem:[#allocation2 + $0x10] sm:$0xff] %v341
  %392 = vst [vmem:[#allocation2 + $0x18] sm:$0xff] %v370
  %393 = vst [vmem:[#allocation2 + $0x20] sm:$0xff] %v285
  %394 = vst [vmem:[#allocation2 + $0x28] sm:$0xff] %v314
  %395 = vst [vmem:[#allocation2 + $0x30] sm:$0xff] %v343
  %396 = vst [vmem:[#allocation2 + $0x38] sm:$0xff] %v372
  %397 = vst [vmem:[#allocation2 + $0x40] sm:$0xff] %v288
  %398 = vst [vmem:[#allocation2 + $0x48] sm:$0xff] %v317
  %399 = vst [vmem:[#allocation2 + $0x50] sm:$0xff] %v346
  %400 = vst [vmem:[#allocation2 + $0x58] sm:$0xff] %v375
  %401 = vst [vmem:[#allocation2 + $0x60] sm:$0xff] %v290
  %402 = vst [vmem:[#allocation2 + $0x68] sm:$0xff] %v319
  %403 = vst [vmem:[#allocation2 + $0x70] sm:$0xff] %v348
  %404 = vst [vmem:[#allocation2 + $0x78] sm:$0xff] %v377
  %405 = vst [vmem:[#allocation2 + $0x80] sm:$0xff] %v293
  %406 = vst [vmem:[#allocation2 + $0x88] sm:$0xff] %v322
  %407 = vst [vmem:[#allocation2 + $0x90] sm:$0xff] %v351
  %408 = vst [vmem:[#allocation2 + $0x98] sm:$0xff] %v380
  %409 = vst [vmem:[#allocation2 + $0xa0] sm:$0xff] %v295
  %410 = vst [vmem:[#allocation2 + $0xa8] sm:$0xff] %v324
  %411 = vst [vmem:[#allocation2 + $0xb0] sm:$0xff] %v353
  %412 = vst [vmem:[#allocation2 + $0xb8] sm:$0xff] %v382
  %413 = vst [vmem:[#allocation2 + $0xc0] sm:$0xff] %v298
  %414 = vst [vmem:[#allocation2 + $0xc8] sm:$0xff] %v327
  %415 = vst [vmem:[#allocation2 + $0xd0] sm:$0xff] %v356
  %416 = vst [vmem:[#allocation2 + $0xd8] sm:$0xff] %v385
  %417 = vst [vmem:[#allocation2 + $0xe0] sm:$0xff] %v300
  %418 = vst [vmem:[#allocation2 + $0xe8] sm:$0xff] %v329
  %419 = vst [vmem:[#allocation2 + $0xf0] sm:$0xff] %v358
  %420 = vst [vmem:[#allocation2 + $0xf8] sm:$0xff] %v387
  %v421 = vld [vmem:[%s5] sm:$0xff]
  %v422 = vld [vmem:[%s5 + $0x8] sm:$0xff]
  %v423 = vld [vmem:[%s5 + $0x10] sm:$0xff]
  %v424 = vld [vmem:[%s5 + $0x18] sm:$0xff]
  %v425 = vld [vmem:[%s5 + $0x20] sm:$0xff]
  %v426 = vld [vmem:[%s5 + $0x28] sm:$0xff]
  %v427 = vld [vmem:[%s5 + $0x30] sm:$0xff]
  %v428 = vld [vmem:[%s5 + $0x38] sm:$0xff]
  %v429 = vld [vmem:[%s5 + $0x40] sm:$0xff]
  %v430 = vld [vmem:[%s5 + $0x48] sm:$0xff]
  %v431 = vld [vmem:[%s5 + $0x50] sm:$0xff]
  %v432 = vld [vmem:[%s5 + $0x58] sm:$0xff]
  %v433 = vld [vmem:[%s5 + $0x60] sm:$0xff]
  %v434 = vld [vmem:[%s5 + $0x68] sm:$0xff]
  %v435 = vld [vmem:[%s5 + $0x70] sm:$0xff]
  %v436 = vld [vmem:[%s5 + $0x78] sm:$0xff]
  %v437 = vld [vmem:[%s5 + $0x80] sm:$0xff]
  %v438 = vld [vmem:[%s5 + $0x88] sm:$0xff]
  %v439 = vld [vmem:[%s5 + $0x90] sm:$0xff]
  %v440 = vld [vmem:[%s5 + $0x98] sm:$0xff]
  %v441 = vld [vmem:[%s5 + $0xa0] sm:$0xff]
  %v442 = vld [vmem:[%s5 + $0xa8] sm:$0xff]
  %v443 = vld [vmem:[%s5 + $0xb0] sm:$0xff]
  %v444 = vld [vmem:[%s5 + $0xb8] sm:$0xff]
  %v445 = vld [vmem:[%s5 + $0xc0] sm:$0xff]
  %v446 = vld [vmem:[%s5 + $0xc8] sm:$0xff]
  %v447 = vld [vmem:[%s5 + $0xd0] sm:$0xff]
  %v448 = vld [vmem:[%s5 + $0xd8] sm:$0xff]
  %v449 = vld [vmem:[%s5 + $0xe0] sm:$0xff]
  %v450 = vld [vmem:[%s5 + $0xe8] sm:$0xff]
  %v451 = vld [vmem:[%s5 + $0xf0] sm:$0xff]
  %v452 = vld [vmem:[%s5 + $0xf8] sm:$0xff]
  %v453 = vld [vmem:[%s7] sm:$0xf]
  %v455 = vperm.slane %v453, 0
  %v456 = vperm.slane %v453, 1
  %v457 = vperm.slane %v453, 2
  %v458 = vperm.slane %v453, 3
  %v495 = vunpack.c.l.b16 %v421
  %v496 = vunpack.c.h.b16 %v421
  %v497 = vunpack.c.l.b16 %v422
  %v498 = vunpack.c.h.b16 %v422
  %v499 = vunpack.c.l.b16 %v423
  %v500 = vunpack.c.h.b16 %v423
  %v501 = vunpack.c.l.b16 %v424
  %v502 = vunpack.c.h.b16 %v424
  %v503 = vunpack.c.l.b16 %v425
  %v504 = vunpack.c.h.b16 %v425
  %v505 = vunpack.c.l.b16 %v426
  %v506 = vunpack.c.h.b16 %v426
  %v507 = vunpack.c.l.b16 %v427
  %v508 = vunpack.c.h.b16 %v427
  %v509 = vunpack.c.l.b16 %v428
  %v510 = vunpack.c.h.b16 %v428
  %v511 = vunpack.c.l.b16 %v429
  %v512 = vunpack.c.h.b16 %v429
  %v513 = vunpack.c.l.b16 %v430
  %v514 = vunpack.c.h.b16 %v430
  %v515 = vunpack.c.l.b16 %v431
  %v516 = vunpack.c.h.b16 %v431
  %v517 = vunpack.c.l.b16 %v432
  %v518 = vunpack.c.h.b16 %v432
  %v519 = vunpack.c.l.b16 %v433
  %v520 = vunpack.c.h.b16 %v433
  %v521 = vunpack.c.l.b16 %v434
  %v522 = vunpack.c.h.b16 %v434
  %v523 = vunpack.c.l.b16 %v435
  %v524 = vunpack.c.h.b16 %v435
  %v525 = vunpack.c.l.b16 %v436
  %v526 = vunpack.c.h.b16 %v436
  %v527 = vunpack.c.l.b16 %v437
  %v528 = vunpack.c.h.b16 %v437
  %v529 = vunpack.c.l.b16 %v438
  %v530 = vunpack.c.h.b16 %v438
  %v531 = vunpack.c.l.b16 %v439
  %v532 = vunpack.c.h.b16 %v439
  %v533 = vunpack.c.l.b16 %v440
  %v534 = vunpack.c.h.b16 %v440
  %v535 = vunpack.c.l.b16 %v441
  %v536 = vunpack.c.h.b16 %v441
  %v537 = vunpack.c.l.b16 %v442
  %v538 = vunpack.c.h.b16 %v442
  %v539 = vunpack.c.l.b16 %v443
  %v540 = vunpack.c.h.b16 %v443
  %v541 = vunpack.c.l.b16 %v444
  %v542 = vunpack.c.h.b16 %v444
  %v543 = vunpack.c.l.b16 %v445
  %v544 = vunpack.c.h.b16 %v445
  %v545 = vunpack.c.l.b16 %v446
  %v546 = vunpack.c.h.b16 %v446
  %v547 = vunpack.c.l.b16 %v447
  %v548 = vunpack.c.h.b16 %v447
  %v549 = vunpack.c.l.b16 %v448
  %v550 = vunpack.c.h.b16 %v448
  %v551 = vunpack.c.l.b16 %v449
  %v552 = vunpack.c.h.b16 %v449
  %v553 = vunpack.c.l.b16 %v450
  %v554 = vunpack.c.h.b16 %v450
  %v555 = vunpack.c.l.b16 %v451
  %v556 = vunpack.c.h.b16 %v451
  %v557 = vunpack.c.l.b16 %v452
  %v558 = vunpack.c.h.b16 %v452
  %v559 = vpack.c.b16 %v499, %v495
  %v560 = vpack.c.b16 %v500, %v496
  %v561 = vpack.c.b16 %v501, %v497
  %v562 = vpack.c.b16 %v502, %v498
  %v563 = vpack.c.b16 %v507, %v503
  %v564 = vpack.c.b16 %v508, %v504
  %v565 = vpack.c.b16 %v509, %v505
  %v566 = vpack.c.b16 %v510, %v506
  %v567 = vpack.c.b16 %v515, %v511
  %v568 = vpack.c.b16 %v516, %v512
  %v569 = vpack.c.b16 %v517, %v513
  %v570 = vpack.c.b16 %v518, %v514
  %v571 = vpack.c.b16 %v523, %v519
  %v572 = vpack.c.b16 %v524, %v520
  %v573 = vpack.c.b16 %v525, %v521
  %v574 = vpack.c.b16 %v526, %v522
  %v575 = vpack.c.b16 %v531, %v527
  %v576 = vpack.c.b16 %v532, %v528
  %v577 = vpack.c.b16 %v533, %v529
  %v578 = vpack.c.b16 %v534, %v530
  %v579 = vpack.c.b16 %v539, %v535
  %v580 = vpack.c.b16 %v540, %v536
  %v581 = vpack.c.b16 %v541, %v537
  %v582 = vpack.c.b16 %v542, %v538
  %v583 = vpack.c.b16 %v547, %v543
  %v584 = vpack.c.b16 %v548, %v544
  %v585 = vpack.c.b16 %v549, %v545
  %v586 = vpack.c.b16 %v550, %v546
  %v587 = vpack.c.b16 %v555, %v551
  %v588 = vpack.c.b16 %v556, %v552
  %v589 = vpack.c.b16 %v557, %v553
  %v590 = vpack.c.b16 %v558, %v554
  %623 = vmatpush.bf16.msra.mxu0 %v587
  %624 = vmatpush.bf16.msra.mxu0 %v583
  %625 = vmatpush.bf16.msra.mxu0 %v579
  %626 = vmatpush.bf16.msra.mxu0 %v575
  %627 = vmatpush.bf16.msra.mxu0 %v571
  %628 = vmatpush.bf16.msra.mxu0 %v567
  %629 = vmatpush.bf16.msra.mxu0 %v563
  %630 = vmatpush.bf16.msra.mxu0 %v559
  %631 = vmatmul.bf16.gmra.mxu0 %v105
  %v632 = vpop.f32.mrf.mxu0
  %v633 = vadd.f32 %v455, %v632
  %v634 = vpop.f32.mrf.mxu0
  %v635 = vadd.f32 %v455, %v634
  %636 = vmatmul.bf16.gmra.mxu0 %v106
  %v637 = vpop.f32.mrf.mxu0
  %v638 = vadd.f32 %v455, %v637
  %v639 = vpop.f32.mrf.mxu0
  %v640 = vadd.f32 %v455, %v639
  %641 = vmatmul.bf16.gmra.mxu0 %v107
  %v642 = vpop.f32.mrf.mxu0
  %v643 = vadd.f32 %v455, %v642
  %v644 = vpop.f32.mrf.mxu0
  %v645 = vadd.f32 %v455, %v644
  %646 = vmatmul.bf16.gmra.mxu0 %v108
  %v647 = vpop.f32.mrf.mxu0
  %v648 = vadd.f32 %v455, %v647
  %v649 = vpop.f32.mrf.mxu0
  %v650 = vadd.f32 %v455, %v649
  %651 = vdwg.mxu0
  %652 = vmatpush.bf16.msra.mxu0 %v588
  %653 = vmatpush.bf16.msra.mxu0 %v584
  %654 = vmatpush.bf16.msra.mxu0 %v580
  %655 = vmatpush.bf16.msra.mxu0 %v576
  %656 = vmatpush.bf16.msra.mxu0 %v572
  %657 = vmatpush.bf16.msra.mxu0 %v568
  %658 = vmatpush.bf16.msra.mxu0 %v564
  %659 = vmatpush.bf16.msra.mxu0 %v560
  %660 = vmatmul.bf16.gmra.mxu0 %v105
  %v661 = vpop.f32.mrf.mxu0
  %v662 = vadd.f32 %v456, %v661
  %v663 = vpop.f32.mrf.mxu0
  %v664 = vadd.f32 %v456, %v663
  %665 = vmatmul.bf16.gmra.mxu0 %v106
  %v666 = vpop.f32.mrf.mxu0
  %v667 = vadd.f32 %v456, %v666
  %v668 = vpop.f32.mrf.mxu0
  %v669 = vadd.f32 %v456, %v668
  %670 = vmatmul.bf16.gmra.mxu0 %v107
  %v671 = vpop.f32.mrf.mxu0
  %v672 = vadd.f32 %v456, %v671
  %v673 = vpop.f32.mrf.mxu0
  %v674 = vadd.f32 %v456, %v673
  %675 = vmatmul.bf16.gmra.mxu0 %v108
  %v676 = vpop.f32.mrf.mxu0
  %v677 = vadd.f32 %v456, %v676
  %v678 = vpop.f32.mrf.mxu0
  %v679 = vadd.f32 %v456, %v678
  %680 = vdwg.mxu0
  %681 = vmatpush.bf16.msra.mxu0 %v589
  %682 = vmatpush.bf16.msra.mxu0 %v585
  %683 = vmatpush.bf16.msra.mxu0 %v581
  %684 = vmatpush.bf16.msra.mxu0 %v577
  %685 = vmatpush.bf16.msra.mxu0 %v573
  %686 = vmatpush.bf16.msra.mxu0 %v569
  %687 = vmatpush.bf16.msra.mxu0 %v565
  %688 = vmatpush.bf16.msra.mxu0 %v561
  %689 = vmatmul.bf16.gmra.mxu0 %v105
  %v690 = vpop.f32.mrf.mxu0
  %v691 = vadd.f32 %v457, %v690
  %v692 = vpop.f32.mrf.mxu0
  %v693 = vadd.f32 %v457, %v692
  %694 = vmatmul.bf16.gmra.mxu0 %v106
  %v695 = vpop.f32.mrf.mxu0
  %v696 = vadd.f32 %v457, %v695
  %v697 = vpop.f32.mrf.mxu0
  %v698 = vadd.f32 %v457, %v697
  %699 = vmatmul.bf16.gmra.mxu0 %v107
  %v700 = vpop.f32.mrf.mxu0
  %v701 = vadd.f32 %v457, %v700
  %v702 = vpop.f32.mrf.mxu0
  %v703 = vadd.f32 %v457, %v702
  %704 = vmatmul.bf16.gmra.mxu0 %v108
  %v705 = vpop.f32.mrf.mxu0
  %v706 = vadd.f32 %v457, %v705
  %v707 = vpop.f32.mrf.mxu0
  %v708 = vadd.f32 %v457, %v707
  %709 = vdwg.mxu0
  %710 = vmatpush.bf16.msra.mxu0 %v590
  %711 = vmatpush.bf16.msra.mxu0 %v586
  %712 = vmatpush.bf16.msra.mxu0 %v582
  %713 = vmatpush.bf16.msra.mxu0 %v578
  %714 = vmatpush.bf16.msra.mxu0 %v574
  %715 = vmatpush.bf16.msra.mxu0 %v570
  %716 = vmatpush.bf16.msra.mxu0 %v566
  %717 = vmatpush.bf16.msra.mxu0 %v562
  %718 = vmatmul.bf16.gmra.mxu0 %v105
  %v719 = vpop.f32.mrf.mxu0
  %v720 = vadd.f32 %v458, %v719
  %v721 = vpop.f32.mrf.mxu0
  %v722 = vadd.f32 %v458, %v721
  %723 = vmatmul.bf16.gmra.mxu0 %v106
  %v724 = vpop.f32.mrf.mxu0
  %v725 = vadd.f32 %v458, %v724
  %v726 = vpop.f32.mrf.mxu0
  %v727 = vadd.f32 %v458, %v726
  %728 = vmatmul.bf16.gmra.mxu0 %v107
  %v729 = vpop.f32.mrf.mxu0
  %v730 = vadd.f32 %v458, %v729
  %v731 = vpop.f32.mrf.mxu0
  %v732 = vadd.f32 %v458, %v731
  %733 = vmatmul.bf16.gmra.mxu0 %v108
  %v734 = vpop.f32.mrf.mxu0
  %v735 = vadd.f32 %v458, %v734
  %v736 = vpop.f32.mrf.mxu0
  %v737 = vadd.f32 %v458, %v736
  %738 = vdwg.mxu0
  %739 = vst [vmem:[#allocation3] sm:$0xff] %v633
  %740 = vst [vmem:[#allocation3 + $0x8] sm:$0xff] %v662
  %741 = vst [vmem:[#allocation3 + $0x10] sm:$0xff] %v691
  %742 = vst [vmem:[#allocation3 + $0x18] sm:$0xff] %v720
  %743 = vst [vmem:[#allocation3 + $0x20] sm:$0xff] %v635
  %744 = vst [vmem:[#allocation3 + $0x28] sm:$0xff] %v664
  %745 = vst [vmem:[#allocation3 + $0x30] sm:$0xff] %v693
  %746 = vst [vmem:[#allocation3 + $0x38] sm:$0xff] %v722
  %747 = vst [vmem:[#allocation3 + $0x40] sm:$0xff] %v638
  %748 = vst [vmem:[#allocation3 + $0x48] sm:$0xff] %v667
  %749 = vst [vmem:[#allocation3 + $0x50] sm:$0xff] %v696
  %750 = vst [vmem:[#allocation3 + $0x58] sm:$0xff] %v725
  %751 = vst [vmem:[#allocation3 + $0x60] sm:$0xff] %v640
  %752 = vst [vmem:[#allocation3 + $0x68] sm:$0xff] %v669
  %753 = vst [vmem:[#allocation3 + $0x70] sm:$0xff] %v698
  %754 = vst [vmem:[#allocation3 + $0x78] sm:$0xff] %v727
  %755 = vst [vmem:[#allocation3 + $0x80] sm:$0xff] %v643
  %756 = vst [vmem:[#allocation3 + $0x88] sm:$0xff] %v672
  %757 = vst [vmem:[#allocation3 + $0x90] sm:$0xff] %v701
  %758 = vst [vmem:[#allocation3 + $0x98] sm:$0xff] %v730
  %759 = vst [vmem:[#allocation3 + $0xa0] sm:$0xff] %v645
  %760 = vst [vmem:[#allocation3 + $0xa8] sm:$0xff] %v674
  %761 = vst [vmem:[#allocation3 + $0xb0] sm:$0xff] %v703
  %762 = vst [vmem:[#allocation3 + $0xb8] sm:$0xff] %v732
  %763 = vst [vmem:[#allocation3 + $0xc0] sm:$0xff] %v648
  %764 = vst [vmem:[#allocation3 + $0xc8] sm:$0xff] %v677
  %765 = vst [vmem:[#allocation3 + $0xd0] sm:$0xff] %v706
  %766 = vst [vmem:[#allocation3 + $0xd8] sm:$0xff] %v735
  %767 = vst [vmem:[#allocation3 + $0xe0] sm:$0xff] %v650
  %768 = vst [vmem:[#allocation3 + $0xe8] sm:$0xff] %v679
  %769 = vst [vmem:[#allocation3 + $0xf0] sm:$0xff] %v708
  %770 = vst [vmem:[#allocation3 + $0xf8] sm:$0xff] %v737
  %v771 = vld [vmem:[%s3] sm:$0xff]
  %v772 = vld [vmem:[%s3 + $0x8] sm:$0xff]
  %v773 = vld [vmem:[%s3 + $0x10] sm:$0xff]
  %v774 = vld [vmem:[%s3 + $0x18] sm:$0xff]
  %v775 = vld [vmem:[%s3 + $0x20] sm:$0xff]
  %v776 = vld [vmem:[%s3 + $0x28] sm:$0xff]
  %v777 = vld [vmem:[%s3 + $0x30] sm:$0xff]
  %v778 = vld [vmem:[%s3 + $0x38] sm:$0xff]
  %v779 = vld [vmem:[%s3 + $0x40] sm:$0xff]
  %v780 = vld [vmem:[%s3 + $0x48] sm:$0xff]
  %v781 = vld [vmem:[%s3 + $0x50] sm:$0xff]
  %v782 = vld [vmem:[%s3 + $0x58] sm:$0xff]
  %v783 = vld [vmem:[%s3 + $0x60] sm:$0xff]
  %v784 = vld [vmem:[%s3 + $0x68] sm:$0xff]
  %v785 = vld [vmem:[%s3 + $0x70] sm:$0xff]
  %v786 = vld [vmem:[%s3 + $0x78] sm:$0xff]
  %v787 = vld [vmem:[%s3 + $0x80] sm:$0xff]
  %v788 = vld [vmem:[%s3 + $0x88] sm:$0xff]
  %v789 = vld [vmem:[%s3 + $0x90] sm:$0xff]
  %v790 = vld [vmem:[%s3 + $0x98] sm:$0xff]
  %v791 = vld [vmem:[%s3 + $0xa0] sm:$0xff]
  %v792 = vld [vmem:[%s3 + $0xa8] sm:$0xff]
  %v793 = vld [vmem:[%s3 + $0xb0] sm:$0xff]
  %v794 = vld [vmem:[%s3 + $0xb8] sm:$0xff]
  %v795 = vld [vmem:[%s3 + $0xc0] sm:$0xff]
  %v796 = vld [vmem:[%s3 + $0xc8] sm:$0xff]
  %v797 = vld [vmem:[%s3 + $0xd0] sm:$0xff]
  %v798 = vld [vmem:[%s3 + $0xd8] sm:$0xff]
  %v799 = vld [vmem:[%s3 + $0xe0] sm:$0xff]
  %v800 = vld [vmem:[%s3 + $0xe8] sm:$0xff]
  %v801 = vld [vmem:[%s3 + $0xf0] sm:$0xff]
  %v802 = vld [vmem:[%s3 + $0xf8] sm:$0xff]
  %v803 = vld [vmem:[%s6] sm:$0xff]
  %v804 = vld [vmem:[%s6 + $0x8] sm:$0xff]
  %v805 = vld [vmem:[%s6 + $0x10] sm:$0xff]
  %v806 = vld [vmem:[%s6 + $0x18] sm:$0xff]
  %v807 = vld [vmem:[%s6 + $0x20] sm:$0xff]
  %v808 = vld [vmem:[%s6 + $0x28] sm:$0xff]
  %v809 = vld [vmem:[%s6 + $0x30] sm:$0xff]
  %v810 = vld [vmem:[%s6 + $0x38] sm:$0xff]
  %v811 = vld [vmem:[%s6 + $0x40] sm:$0xff]
  %v812 = vld [vmem:[%s6 + $0x48] sm:$0xff]
  %v813 = vld [vmem:[%s6 + $0x50] sm:$0xff]
  %v814 = vld [vmem:[%s6 + $0x58] sm:$0xff]
  %v815 = vld [vmem:[%s6 + $0x60] sm:$0xff]
  %v816 = vld [vmem:[%s6 + $0x68] sm:$0xff]
  %v817 = vld [vmem:[%s6 + $0x70] sm:$0xff]
  %v818 = vld [vmem:[%s6 + $0x78] sm:$0xff]
  %v819 = vld [vmem:[%s6 + $0x80] sm:$0xff]
  %v820 = vld [vmem:[%s6 + $0x88] sm:$0xff]
  %v821 = vld [vmem:[%s6 + $0x90] sm:$0xff]
  %v822 = vld [vmem:[%s6 + $0x98] sm:$0xff]
  %v823 = vld [vmem:[%s6 + $0xa0] sm:$0xff]
  %v824 = vld [vmem:[%s6 + $0xa8] sm:$0xff]
  %v825 = vld [vmem:[%s6 + $0xb0] sm:$0xff]
  %v826 = vld [vmem:[%s6 + $0xb8] sm:$0xff]
  %v827 = vld [vmem:[%s6 + $0xc0] sm:$0xff]
  %v828 = vld [vmem:[%s6 + $0xc8] sm:$0xff]
  %v829 = vld [vmem:[%s6 + $0xd0] sm:$0xff]
  %v830 = vld [vmem:[%s6 + $0xd8] sm:$0xff]
  %v831 = vld [vmem:[%s6 + $0xe0] sm:$0xff]
  %v832 = vld [vmem:[%s6 + $0xe8] sm:$0xff]
  %v833 = vld [vmem:[%s6 + $0xf0] sm:$0xff]
  %v834 = vld [vmem:[%s6 + $0xf8] sm:$0xff]
  %v835 = vld [vmem:[%s1] sm:$0xff]
  %v836 = vld [vmem:[#allocation2] sm:$0xff]
  %v837 = vld [vmem:[#allocation2 + $0x8] sm:$0xff]
  %v838 = vld [vmem:[#allocation2 + $0x10] sm:$0xff]
  %v839 = vld [vmem:[#allocation2 + $0x18] sm:$0xff]
  %v872 = vunpack.c.l.b16 %v771
  %v873 = vunpack.c.h.b16 %v771
  %v874 = vunpack.c.l.b16 %v772
  %v875 = vunpack.c.h.b16 %v772
  %v876 = vunpack.c.l.b16 %v773
  %v877 = vunpack.c.h.b16 %v773
  %v878 = vunpack.c.l.b16 %v774
  %v879 = vunpack.c.h.b16 %v774
  %v880 = vunpack.c.l.b16 %v775
  %v881 = vunpack.c.h.b16 %v775
  %v882 = vunpack.c.l.b16 %v776
  %v883 = vunpack.c.h.b16 %v776
  %v884 = vunpack.c.l.b16 %v777
  %v885 = vunpack.c.h.b16 %v777
  %v886 = vunpack.c.l.b16 %v778
  %v887 = vunpack.c.h.b16 %v778
  %v888 = vunpack.c.l.b16 %v779
  %v889 = vunpack.c.h.b16 %v779
  %v890 = vunpack.c.l.b16 %v780
  %v891 = vunpack.c.h.b16 %v780
  %v892 = vunpack.c.l.b16 %v781
  %v893 = vunpack.c.h.b16 %v781
  %v894 = vunpack.c.l.b16 %v782
  %v895 = vunpack.c.h.b16 %v782
  %v896 = vunpack.c.l.b16 %v783
  %v897 = vunpack.c.h.b16 %v783
  %v898 = vunpack.c.l.b16 %v784
  %v899 = vunpack.c.h.b16 %v784
  %v900 = vunpack.c.l.b16 %v785
  %v901 = vunpack.c.h.b16 %v785
  %v902 = vunpack.c.l.b16 %v786
  %v903 = vunpack.c.h.b16 %v786
  %v904 = vunpack.c.l.b16 %v787
  %v905 = vunpack.c.h.b16 %v787
  %v906 = vunpack.c.l.b16 %v788
  %v907 = vunpack.c.h.b16 %v788
  %v908 = vunpack.c.l.b16 %v789
  %v909 = vunpack.c.h.b16 %v789
  %v910 = vunpack.c.l.b16 %v790
  %v911 = vunpack.c.h.b16 %v790
  %v912 = vunpack.c.l.b16 %v791
  %v913 = vunpack.c.h.b16 %v791
  %v914 = vunpack.c.l.b16 %v792
  %v915 = vunpack.c.h.b16 %v792
  %v916 = vunpack.c.l.b16 %v793
  %v917 = vunpack.c.h.b16 %v793
  %v918 = vunpack.c.l.b16 %v794
  %v919 = vunpack.c.h.b16 %v794
  %v920 = vunpack.c.l.b16 %v795
  %v921 = vunpack.c.h.b16 %v795
  %v922 = vunpack.c.l.b16 %v796
  %v923 = vunpack.c.h.b16 %v796
  %v924 = vunpack.c.l.b16 %v797
  %v925 = vunpack.c.h.b16 %v797
  %v926 = vunpack.c.l.b16 %v798
  %v927 = vunpack.c.h.b16 %v798
  %v928 = vunpack.c.l.b16 %v799
  %v929 = vunpack.c.h.b16 %v799
  %v930 = vunpack.c.l.b16 %v800
  %v931 = vunpack.c.h.b16 %v800
  %v932 = vunpack.c.l.b16 %v801
  %v933 = vunpack.c.h.b16 %v801
  %v934 = vunpack.c.l.b16 %v802
  %v935 = vunpack.c.h.b16 %v802
  %v936 = vpack.c.b16 %v876, %v872
  %v937 = vpack.c.b16 %v877, %v873
  %v938 = vpack.c.b16 %v878, %v874
  %v939 = vpack.c.b16 %v879, %v875
  %v940 = vpack.c.b16 %v884, %v880
  %v941 = vpack.c.b16 %v885, %v881
  %v942 = vpack.c.b16 %v886, %v882
  %v943 = vpack.c.b16 %v887, %v883
  %v944 = vpack.c.b16 %v892, %v888
  %v945 = vpack.c.b16 %v893, %v889
  %v946 = vpack.c.b16 %v894, %v890
  %v947 = vpack.c.b16 %v895, %v891
  %v948 = vpack.c.b16 %v900, %v896
  %v949 = vpack.c.b16 %v901, %v897
  %v950 = vpack.c.b16 %v902, %v898
  %v951 = vpack.c.b16 %v903, %v899
  %v952 = vpack.c.b16 %v908, %v904
  %v953 = vpack.c.b16 %v909, %v905
  %v954 = vpack.c.b16 %v910, %v906
  %v955 = vpack.c.b16 %v911, %v907
  %v956 = vpack.c.b16 %v916, %v912
  %v957 = vpack.c.b16 %v917, %v913
  %v958 = vpack.c.b16 %v918, %v914
  %v959 = vpack.c.b16 %v919, %v915
  %v960 = vpack.c.b16 %v924, %v920
  %v961 = vpack.c.b16 %v925, %v921
  %v962 = vpack.c.b16 %v926, %v922
  %v963 = vpack.c.b16 %v927, %v923
  %v964 = vpack.c.b16 %v932, %v928
  %v965 = vpack.c.b16 %v933, %v929
  %v966 = vpack.c.b16 %v934, %v930
  %v967 = vpack.c.b16 %v935, %v931
  %1000 = vmatpush.bf16.msra.mxu0 %v964
  %1001 = vmatpush.bf16.msra.mxu0 %v960
  %1002 = vmatpush.bf16.msra.mxu0 %v956
  %1003 = vmatpush.bf16.msra.mxu0 %v952
  %1004 = vmatpush.bf16.msra.mxu0 %v948
  %1005 = vmatpush.bf16.msra.mxu0 %v944
  %1006 = vmatpush.bf16.msra.mxu0 %v940
  %1007 = vmatpush.bf16.msra.mxu0 %v936
  %1008 = vmatmul.bf16.gmra.mxu0 0
  %v1009 = vpop.f32.mrf.mxu0
  %v1010 = vadd.f32 0.0, %v1009
  %v1011 = vpop.f32.mrf.mxu0
  %1012 = vdwg.mxu0
  %1013 = vmatpush.bf16.msra.mxu0 %v965
  %1014 = vmatpush.bf16.msra.mxu0 %v961
  %1015 = vmatpush.bf16.msra.mxu0 %v957
  %1016 = vmatpush.bf16.msra.mxu0 %v953
  %1017 = vmatpush.bf16.msra.mxu0 %v949
  %1018 = vmatpush.bf16.msra.mxu0 %v945
  %1019 = vmatpush.bf16.msra.mxu0 %v941
  %1020 = vmatpush.bf16.msra.mxu0 %v937
  %1021 = vmatmul.bf16.gmra.mxu0 0
  %v1022 = vpop.f32.mrf.mxu0
  %v1023 = vadd.f32 0.0, %v1022
  %v1024 = vpop.f32.mrf.mxu0
  %1025 = vdwg.mxu0
  %1026 = vmatpush.bf16.msra.mxu0 %v966
  %1027 = vmatpush.bf16.msra.mxu0 %v962
  %1028 = vmatpush.bf16.msra.mxu0 %v958
  %1029 = vmatpush.bf16.msra.mxu0 %v954
  %1030 = vmatpush.bf16.msra.mxu0 %v950
  %1031 = vmatpush.bf16.msra.mxu0 %v946
  %1032 = vmatpush.bf16.msra.mxu0 %v942
  %1033 = vmatpush.bf16.msra.mxu0 %v938
  %1034 = vmatmul.bf16.gmra.mxu0 0
  %v1035 = vpop.f32.mrf.mxu0
  %v1036 = vadd.f32 0.0, %v1035
  %v1037 = vpop.f32.mrf.mxu0
  %1038 = vdwg.mxu0
  %1039 = vmatpush.bf16.msra.mxu0 %v967
  %1040 = vmatpush.bf16.msra.mxu0 %v963
  %1041 = vmatpush.bf16.msra.mxu0 %v959
  %1042 = vmatpush.bf16.msra.mxu0 %v955
  %1043 = vmatpush.bf16.msra.mxu0 %v951
  %1044 = vmatpush.bf16.msra.mxu0 %v947
  %1045 = vmatpush.bf16.msra.mxu0 %v943
  %1046 = vmatpush.bf16.msra.mxu0 %v939
  %1047 = vmatmul.bf16.gmra.mxu0 0
  %v1048 = vpop.f32.mrf.mxu0
  %v1049 = vadd.f32 0.0, %v1048
  %v1050 = vpop.f32.mrf.mxu0
  %1051 = vdwg.mxu0
  %v1052 = vadd.f32 %v836, %v1010
  %v1053 = vadd.f32 %v837, %v1023
  %v1054 = vadd.f32 %v838, %v1036
  %v1055 = vadd.f32 %v839, %v1049
  %v1056 = vxor.u32 %v1052, 2147483648
  %v1057 = vmul.f32 %v1056, 1.442695
  %v1058 = vpow.pop %v1057
  %v1059 = vadd.f32 %v1058, 1.0
  %v1060 = vrcp.pop %v1059
  %v1061 = vmul.f32 %v1059, %v1060
  %v1062 = vsub.f32 1.0, %v1061
  %v1063 = vmul.f32 %v1060, %v1062
  %v1064 = vadd.f32 %v1060, %v1063
  %vm1065 = vweird.f32 %v1059
  %vm1066 = vweird.f32 %v1060
  %vm1067 = vmor %vm1065, %vm1066
  %v1068 = vsel %vm1067, %v1060, %v1064
  %v1069 = vand.u32 2147483647, %v1059
  %vm1070 = vcmp.eq.f32.partialorder %v1069, 8.507059e+37
  %v1071 = vand.u32 %v1059, 2147483648
  %v1072 = vor.u32 1.1754944e-38, %v1071
  %v1073 = vsel %vm1070, %v1072, %v1068
  %v1074 = vmul.f32 1.0, %v1073
  %v1075 = vxor.u32 %v1053, 2147483648
  %v1076 = vmul.f32 %v1075, 1.442695
  %v1077 = vpow.pop %v1076
  %v1078 = vadd.f32 %v1077, 1.0
  %v1079 = vrcp.pop %v1078
  %v1080 = vmul.f32 %v1078, %v1079
  %v1081 = vsub.f32 1.0, %v1080
  %v1082 = vmul.f32 %v1079, %v1081
  %v1083 = vadd.f32 %v1079, %v1082
  %vm1084 = vweird.f32 %v1078
  %vm1085 = vweird.f32 %v1079
  %vm1086 = vmor %vm1084, %vm1085
  %v1087 = vsel %vm1086, %v1079, %v1083
  %v1088 = vand.u32 2147483647, %v1078
  %vm1089 = vcmp.eq.f32.partialorder %v1088, 8.507059e+37
  %v1090 = vand.u32 %v1078, 2147483648
  %v1091 = vor.u32 1.1754944e-38, %v1090
  %v1092 = vsel %vm1089, %v1091, %v1087
  %v1093 = vmul.f32 1.0, %v1092
  %v1094 = vtanh.pop %v1054
  %v1095 = vxor.u32 %v1055, 2147483648
  %v1096 = vmul.f32 %v1095, 1.442695
  %v1097 = vpow.pop %v1096
  %v1098 = vadd.f32 %v1097, 1.0
  %v1099 = vrcp.pop %v1098
  %v1100 = vmul.f32 %v1098, %v1099
  %v1101 = vsub.f32 1.0, %v1100
  %v1102 = vmul.f32 %v1099, %v1101
  %v1103 = vadd.f32 %v1099, %v1102
  %vm1104 = vweird.f32 %v1098
  %vm1105 = vweird.f32 %v1099
  %vm1106 = vmor %vm1104, %vm1105
  %v1107 = vsel %vm1106, %v1099, %v1103
  %v1108 = vand.u32 2147483647, %v1098
  %vm1109 = vcmp.eq.f32.partialorder %v1108, 8.507059e+37
  %v1110 = vand.u32 %v1098, 2147483648
  %v1111 = vor.u32 1.1754944e-38, %v1110
  %v1112 = vsel %vm1109, %v1111, %v1107
  %v1113 = vmul.f32 1.0, %v1112
  %v1114 = vmul.f32 %v1093, 0.0
  %v1115 = vmul.f32 %v1074, %v1094
  %v1116 = vadd.f32 %v1114, %v1115
  %v1117 = vtanh.pop %v1116
  %v1118 = vmul.f32 %v1113, %v1117
  %vm1119 = vcmp.gt.s32.totalorder %v835, 0
  %v1120 = vsel %vm1119, 1, 0
  %1121 = vset.pattern.permute.xlu0 0
  %1122 = vperm.xlu0 %1121, %v1120
  %v1123 = vpop.permute.xlu0 %1122
  %vm1124 = vcmp.eq.s32.totalorder %v1123, 1
  %v1125 = vsel %vm1124, %v1118, 0.0
  %v1126 = vsel %vm1124, %v1116, 0.0
  %v1127 = vpack.c.bf16 %v1125, %v1125
  %1128 = vst [vmem:[#allocation4] sm:$0xf] %v1127
  %s1129 = scalar_lea.vmem [#allocation3], 224
  %v1130 = vld [vmem:[%s1129] sm:$0xff]
  %v1131 = vld [vmem:[%s1129 + $0x8] sm:$0xff]
  %v1132 = vld [vmem:[%s1129 + $0x10] sm:$0xff]
  %v1133 = vld [vmem:[%s1129 + $0x18] sm:$0xff]
  %v1166 = vunpack.c.l.b16 %v803
  %v1167 = vunpack.c.h.b16 %v803
  %v1168 = vunpack.c.l.b16 %v804
  %v1169 = vunpack.c.h.b16 %v804
  %v1170 = vunpack.c.l.b16 %v805
  %v1171 = vunpack.c.h.b16 %v805
  %v1172 = vunpack.c.l.b16 %v806
  %v1173 = vunpack.c.h.b16 %v806
  %v1174 = vunpack.c.l.b16 %v807
  %v1175 = vunpack.c.h.b16 %v807
  %v1176 = vunpack.c.l.b16 %v808
  %v1177 = vunpack.c.h.b16 %v808
  %v1178 = vunpack.c.l.b16 %v809
  %v1179 = vunpack.c.h.b16 %v809
  %v1180 = vunpack.c.l.b16 %v810
  %v1181 = vunpack.c.h.b16 %v810
  %v1182 = vunpack.c.l.b16 %v811
  %v1183 = vunpack.c.h.b16 %v811
  %v1184 = vunpack.c.l.b16 %v812
  %v1185 = vunpack.c.h.b16 %v812
  %v1186 = vunpack.c.l.b16 %v813
  %v1187 = vunpack.c.h.b16 %v813
  %v1188 = vunpack.c.l.b16 %v814
  %v1189 = vunpack.c.h.b16 %v814
  %v1190 = vunpack.c.l.b16 %v815
  %v1191 = vunpack.c.h.b16 %v815
  %v1192 = vunpack.c.l.b16 %v816
  %v1193 = vunpack.c.h.b16 %v816
  %v1194 = vunpack.c.l.b16 %v817
  %v1195 = vunpack.c.h.b16 %v817
  %v1196 = vunpack.c.l.b16 %v818
  %v1197 = vunpack.c.h.b16 %v818
  %v1198 = vunpack.c.l.b16 %v819
  %v1199 = vunpack.c.h.b16 %v819
  %v1200 = vunpack.c.l.b16 %v820
  %v1201 = vunpack.c.h.b16 %v820
  %v1202 = vunpack.c.l.b16 %v821
  %v1203 = vunpack.c.h.b16 %v821
  %v1204 = vunpack.c.l.b16 %v822
  %v1205 = vunpack.c.h.b16 %v822
  %v1206 = vunpack.c.l.b16 %v823
  %v1207 = vunpack.c.h.b16 %v823
  %v1208 = vunpack.c.l.b16 %v824
  %v1209 = vunpack.c.h.b16 %v824
  %v1210 = vunpack.c.l.b16 %v825
  %v1211 = vunpack.c.h.b16 %v825
  %v1212 = vunpack.c.l.b16 %v826
  %v1213 = vunpack.c.h.b16 %v826
  %v1214 = vunpack.c.l.b16 %v827
  %v1215 = vunpack.c.h.b16 %v827
  %v1216 = vunpack.c.l.b16 %v828
  %v1217 = vunpack.c.h.b16 %v828
  %v1218 = vunpack.c.l.b16 %v829
  %v1219 = vunpack.c.h.b16 %v829
  %v1220 = vunpack.c.l.b16 %v830
  %v1221 = vunpack.c.h.b16 %v830
  %v1222 = vunpack.c.l.b16 %v831
  %v1223 = vunpack.c.h.b16 %v831
  %v1224 = vunpack.c.l.b16 %v832
  %v1225 = vunpack.c.h.b16 %v832
  %v1226 = vunpack.c.l.b16 %v833
  %v1227 = vunpack.c.h.b16 %v833
  %v1228 = vunpack.c.l.b16 %v834
  %v1229 = vunpack.c.h.b16 %v834
  %v1230 = vpack.c.b16 %v1170, %v1166
  %v1231 = vpack.c.b16 %v1171, %v1167
  %v1232 = vpack.c.b16 %v1172, %v1168
  %v1233 = vpack.c.b16 %v1173, %v1169
  %v1234 = vpack.c.b16 %v1178, %v1174
  %v1235 = vpack.c.b16 %v1179, %v1175
  %v1236 = vpack.c.b16 %v1180, %v1176
  %v1237 = vpack.c.b16 %v1181, %v1177
  %v1238 = vpack.c.b16 %v1186, %v1182
  %v1239 = vpack.c.b16 %v1187, %v1183
  %v1240 = vpack.c.b16 %v1188, %v1184
  %v1241 = vpack.c.b16 %v1189, %v1185
  %v1242 = vpack.c.b16 %v1194, %v1190
  %v1243 = vpack.c.b16 %v1195, %v1191
  %v1244 = vpack.c.b16 %v1196, %v1192
  %v1245 = vpack.c.b16 %v1197, %v1193
  %v1246 = vpack.c.b16 %v1202, %v1198
  %v1247 = vpack.c.b16 %v1203, %v1199
  %v1248 = vpack.c.b16 %v1204, %v1200
  %v1249 = vpack.c.b16 %v1205, %v1201
  %v1250 = vpack.c.b16 %v1210, %v1206
  %v1251 = vpack.c.b16 %v1211, %v1207
  %v1252 = vpack.c.b16 %v1212, %v1208
  %v1253 = vpack.c.b16 %v1213, %v1209
  %v1254 = vpack.c.b16 %v1218, %v1214
  %v1255 = vpack.c.b16 %v1219, %v1215
  %v1256 = vpack.c.b16 %v1220, %v1216
  %v1257 = vpack.c.b16 %v1221, %v1217
  %v1258 = vpack.c.b16 %v1226, %v1222
  %v1259 = vpack.c.b16 %v1227, %v1223
  %v1260 = vpack.c.b16 %v1228, %v1224
  %v1261 = vpack.c.b16 %v1229, %v1225
  %1294 = vmatpush.bf16.msra.mxu0 %v1258
  %1295 = vmatpush.bf16.msra.mxu0 %v1254
  %1296 = vmatpush.bf16.msra.mxu0 %v1250
  %1297 = vmatpush.bf16.msra.mxu0 %v1246
  %1298 = vmatpush.bf16.msra.mxu0 %v1242
  %1299 = vmatpush.bf16.msra.mxu0 %v1238
  %1300 = vmatpush.bf16.msra.mxu0 %v1234
  %1301 = vmatpush.bf16.msra.mxu0 %v1230
  %1302 = vmatmul.bf16.gmra.mxu0 0
  %v1303 = vpop.f32.mrf.mxu0
  %v1304 = vadd.f32 0.0, %v1303
  %v1305 = vpop.f32.mrf.mxu0
  %1306 = vdwg.mxu0
  %1307 = vmatpush.bf16.msra.mxu0 %v1259
  %1308 = vmatpush.bf16.msra.mxu0 %v1255
  %1309 = vmatpush.bf16.msra.mxu0 %v1251
  %1310 = vmatpush.bf16.msra.mxu0 %v1247
  %1311 = vmatpush.bf16.msra.mxu0 %v1243
  %1312 = vmatpush.bf16.msra.mxu0 %v1239
  %1313 = vmatpush.bf16.msra.mxu0 %v1235
  %1314 = vmatpush.bf16.msra.mxu0 %v1231
  %1315 = vmatmul.bf16.gmra.mxu0 0
  %v1316 = vpop.f32.mrf.mxu0
  %v1317 = vadd.f32 0.0, %v1316
  %v1318 = vpop.f32.mrf.mxu0
  %1319 = vdwg.mxu0
  %1320 = vmatpush.bf16.msra.mxu0 %v1260
  %1321 = vmatpush.bf16.msra.mxu0 %v1256
  %1322 = vmatpush.bf16.msra.mxu0 %v1252
  %1323 = vmatpush.bf16.msra.mxu0 %v1248
  %1324 = vmatpush.bf16.msra.mxu0 %v1244
  %1325 = vmatpush.bf16.msra.mxu0 %v1240
  %1326 = vmatpush.bf16.msra.mxu0 %v1236
  %1327 = vmatpush.bf16.msra.mxu0 %v1232
  %1328 = vmatmul.bf16.gmra.mxu0 0
  %v1329 = vpop.f32.mrf.mxu0
  %v1330 = vadd.f32 0.0, %v1329
  %v1331 = vpop.f32.mrf.mxu0
  %1332 = vdwg.mxu0
  %1333 = vmatpush.bf16.msra.mxu0 %v1261
  %1334 = vmatpush.bf16.msra.mxu0 %v1257
  %1335 = vmatpush.bf16.msra.mxu0 %v1253
  %1336 = vmatpush.bf16.msra.mxu0 %v1249
  %1337 = vmatpush.bf16.msra.mxu0 %v1245
  %1338 = vmatpush.bf16.msra.mxu0 %v1241
  %1339 = vmatpush.bf16.msra.mxu0 %v1237
  %1340 = vmatpush.bf16.msra.mxu0 %v1233
  %1341 = vmatmul.bf16.gmra.mxu0 0
  %v1342 = vpop.f32.mrf.mxu0
  %v1343 = vadd.f32 0.0, %v1342
  %v1344 = vpop.f32.mrf.mxu0
  %1345 = vdwg.mxu0
  %v1346 = vadd.f32 %v1130, %v1304
  %v1347 = vadd.f32 %v1131, %v1317
  %v1348 = vadd.f32 %v1132, %v1330
  %v1349 = vadd.f32 %v1133, %v1343
  %v1350 = vxor.u32 %v1346, 2147483648
  %v1351 = vmul.f32 %v1350, 1.442695
  %v1352 = vpow.pop %v1351
  %v1353 = vadd.f32 %v1352, 1.0
  %v1354 = vrcp.pop %v1353
  %v1355 = vmul.f32 %v1353, %v1354
  %v1356 = vsub.f32 1.0, %v1355
  %v1357 = vmul.f32 %v1354, %v1356
  %v1358 = vadd.f32 %v1354, %v1357
  %vm1359 = vweird.f32 %v1353
  %vm1360 = vweird.f32 %v1354
  %vm1361 = vmor %vm1359, %vm1360
  %v1362 = vsel %vm1361, %v1354, %v1358
  %v1363 = vand.u32 2147483647, %v1353
  %vm1364 = vcmp.eq.f32.partialorder %v1363, 8.507059e+37
  %v1365 = vand.u32 %v1353, 2147483648
  %v1366 = vor.u32 1.1754944e-38, %v1365
  %v1367 = vsel %vm1364, %v1366, %v1362
  %v1368 = vmul.f32 1.0, %v1367
  %v1369 = vxor.u32 %v1347, 2147483648
  %v1370 = vmul.f32 %v1369, 1.442695
  %v1371 = vpow.pop %v1370
  %v1372 = vadd.f32 %v1371, 1.0
  %v1373 = vrcp.pop %v1372
  %v1374 = vmul.f32 %v1372, %v1373
  %v1375 = vsub.f32 1.0, %v1374
  %v1376 = vmul.f32 %v1373, %v1375
  %v1377 = vadd.f32 %v1373, %v1376
  %vm1378 = vweird.f32 %v1372
  %vm1379 = vweird.f32 %v1373
  %vm1380 = vmor %vm1378, %vm1379
  %v1381 = vsel %vm1380, %v1373, %v1377
  %v1382 = vand.u32 2147483647, %v1372
  %vm1383 = vcmp.eq.f32.partialorder %v1382, 8.507059e+37
  %v1384 = vand.u32 %v1372, 2147483648
  %v1385 = vor.u32 1.1754944e-38, %v1384
  %v1386 = vsel %vm1383, %v1385, %v1381
  %v1387 = vmul.f32 1.0, %v1386
  %v1388 = vtanh.pop %v1348
  %v1389 = vxor.u32 %v1349, 2147483648
  %v1390 = vmul.f32 %v1389, 1.442695
  %v1391 = vpow.pop %v1390
  %v1392 = vadd.f32 %v1391, 1.0
  %v1393 = vrcp.pop %v1392
  %v1394 = vmul.f32 %v1392, %v1393
  %v1395 = vsub.f32 1.0, %v1394
  %v1396 = vmul.f32 %v1393, %v1395
  %v1397 = vadd.f32 %v1393, %v1396
  %vm1398 = vweird.f32 %v1392
  %vm1399 = vweird.f32 %v1393
  %vm1400 = vmor %vm1398, %vm1399
  %v1401 = vsel %vm1400, %v1393, %v1397
  %v1402 = vand.u32 2147483647, %v1392
  %vm1403 = vcmp.eq.f32.partialorder %v1402, 8.507059e+37
  %v1404 = vand.u32 %v1392, 2147483648
  %v1405 = vor.u32 1.1754944e-38, %v1404
  %v1406 = vsel %vm1403, %v1405, %v1401
  %v1407 = vmul.f32 1.0, %v1406
  %v1408 = vmul.f32 %v1387, 0.0
  %v1409 = vmul.f32 %v1368, %v1388
  %v1410 = vadd.f32 %v1408, %v1409
  %v1411 = vtanh.pop %v1410
  %v1412 = vmul.f32 %v1407, %v1411
  %vm1413 = vcmp.gt.s32.totalorder %v835, 7
  %v1414 = vsel %vm1413, 1, 0
  %1415 = vset.pattern.permute.xlu0 0
  %1416 = vperm.xlu0 %1415, %v1414
  %v1417 = vpop.permute.xlu0 %1416
  %vm1418 = vcmp.eq.s32.totalorder %v1417, 1
  %v1419 = vsel %vm1418, %v1412, 0.0
  %v1420 = vsel %vm1418, %v1410, 0.0
  %v1421 = vpack.c.bf16 %v1419, %v1419
  %s1422 = scalar_lea.vmem [#allocation5], 28
  %1423 = vst [vmem:[%s1422] sm:$0xf] %v1421
  %s1424 = scalar_lea.vmem [#allocation2], 32
  %v1425 = vld [vmem:[%s1424] sm:$0xff]
  %v1426 = vld [vmem:[%s1424 + $0x8] sm:$0xff]
  %v1427 = vld [vmem:[%s1424 + $0x10] sm:$0xff]
  %v1428 = vld [vmem:[%s1424 + $0x18] sm:$0xff]
  %1429 = vmatpush.bf16.msra.mxu0 %v964
  %1430 = vmatpush.bf16.msra.mxu0 %v960
  %1431 = vmatpush.bf16.msra.mxu0 %v956
  %1432 = vmatpush.bf16.msra.mxu0 %v952
  %1433 = vmatpush.bf16.msra.mxu0 %v948
  %1434 = vmatpush.bf16.msra.mxu0 %v944
  %1435 = vmatpush.bf16.msra.mxu0 %v940
  %1436 = vmatpush.bf16.msra.mxu0 %v936
  %1437 = vmatmul.bf16.gmra.mxu0 %v1127
  %v1438 = vpop.f32.mrf.mxu0
  %v1439 = vadd.f32 0.0, %v1438
  %v1440 = vpop.f32.mrf.mxu0
  %1441 = vdwg.mxu0
  %1442 = vmatpush.bf16.msra.mxu0 %v965
  %1443 = vmatpush.bf16.msra.mxu0 %v961
  %1444 = vmatpush.bf16.msra.mxu0 %v957
  %1445 = vmatpush.bf16.msra.mxu0 %v953
  %1446 = vmatpush.bf16.msra.mxu0 %v949
  %1447 = vmatpush.bf16.msra.mxu0 %v945
  %1448 = vmatpush.bf16.msra.mxu0 %v941
  %1449 = vmatpush.bf16.msra.mxu0 %v937
  %1450 = vmatmul.bf16.gmra.mxu0 %v1127
  %v1451 = vpop.f32.mrf.mxu0
  %v1452 = vadd.f32 0.0, %v1451
  %v1453 = vpop.f32.mrf.mxu0
  %1454 = vdwg.mxu0
  %1455 = vmatpush.bf16.msra.mxu0 %v966
  %1456 = vmatpush.bf16.msra.mxu0 %v962
  %1457 = vmatpush.bf16.msra.mxu0 %v958
  %1458 = vmatpush.bf16.msra.mxu0 %v954
  %1459 = vmatpush.bf16.msra.mxu0 %v950
  %1460 = vmatpush.bf16.msra.mxu0 %v946
  %1461 = vmatpush.bf16.msra.mxu0 %v942
  %1462 = vmatpush.bf16.msra.mxu0 %v938
  %1463 = vmatmul.bf16.gmra.mxu0 %v1127
  %v1464 = vpop.f32.mrf.mxu0
  %v1465 = vadd.f32 0.0, %v1464
  %v1466 = vpop.f32.mrf.mxu0
  %1467 = vdwg.mxu0
  %1468 = vmatpush.bf16.msra.mxu0 %v967
  %1469 = vmatpush.bf16.msra.mxu0 %v963
  %1470 = vmatpush.bf16.msra.mxu0 %v959
  %1471 = vmatpush.bf16.msra.mxu0 %v955
  %1472 = vmatpush.bf16.msra.mxu0 %v951
  %1473 = vmatpush.bf16.msra.mxu0 %v947
  %1474 = vmatpush.bf16.msra.mxu0 %v943
  %1475 = vmatpush.bf16.msra.mxu0 %v939
  %1476 = vmatmul.bf16.gmra.mxu0 %v1127
  %v1477 = vpop.f32.mrf.mxu0
  %v1478 = vadd.f32 0.0, %v1477
  %v1479 = vpop.f32.mrf.mxu0
  %1480 = vdwg.mxu0
  %v1481 = vadd.f32 %v1425, %v1439
  %v1482 = vadd.f32 %v1426, %v1452
  %v1483 = vadd.f32 %v1427, %v1465
  %v1484 = vadd.f32 %v1428, %v1478
  %v1485 = vxor.u32 %v1481, 2147483648
  %v1486 = vmul.f32 %v1485, 1.442695
  %v1487 = vpow.pop %v1486
  %v1488 = vadd.f32 %v1487, 1.0
  %v1489 = vrcp.pop %v1488
  %v1490 = vmul.f32 %v1488, %v1489
  %v1491 = vsub.f32 1.0, %v1490
  %v1492 = vmul.f32 %v1489, %v1491
  %v1493 = vadd.f32 %v1489, %v1492
  %vm1494 = vweird.f32 %v1488
  %vm1495 = vweird.f32 %v1489
  %vm1496 = vmor %vm1494, %vm1495
  %v1497 = vsel %vm1496, %v1489, %v1493
  %v1498 = vand.u32 2147483647, %v1488
  %vm1499 = vcmp.eq.f32.partialorder %v1498, 8.507059e+37
  %v1500 = vand.u32 %v1488, 2147483648
  %v1501 = vor.u32 1.1754944e-38, %v1500
  %v1502 = vsel %vm1499, %v1501, %v1497
  %v1503 = vmul.f32 1.0, %v1502
  %v1504 = vxor.u32 %v1482, 2147483648
  %v1505 = vmul.f32 %v1504, 1.442695
  %v1506 = vpow.pop %v1505
  %v1507 = vadd.f32 %v1506, 1.0
  %v1508 = vrcp.pop %v1507
  %v1509 = vmul.f32 %v1507, %v1508
  %v1510 = vsub.f32 1.0, %v1509
  %v1511 = vmul.f32 %v1508, %v1510
  %v1512 = vadd.f32 %v1508, %v1511
  %vm1513 = vweird.f32 %v1507
  %vm1514 = vweird.f32 %v1508
  %vm1515 = vmor %vm1513, %vm1514
  %v1516 = vsel %vm1515, %v1508, %v1512
  %v1517 = vand.u32 2147483647, %v1507
  %vm1518 = vcmp.eq.f32.partialorder %v1517, 8.507059e+37
  %v1519 = vand.u32 %v1507, 2147483648
  %v1520 = vor.u32 1.1754944e-38, %v1519
  %v1521 = vsel %vm1518, %v1520, %v1516
  %v1522 = vmul.f32 1.0, %v1521
  %v1523 = vtanh.pop %v1483
  %v1524 = vxor.u32 %v1484, 2147483648
  %v1525 = vmul.f32 %v1524, 1.442695
  %v1526 = vpow.pop %v1525
  %v1527 = vadd.f32 %v1526, 1.0
  %v1528 = vrcp.pop %v1527
  %v1529 = vmul.f32 %v1527, %v1528
  %v1530 = vsub.f32 1.0, %v1529
  %v1531 = vmul.f32 %v1528, %v1530
  %v1532 = vadd.f32 %v1528, %v1531
  %vm1533 = vweird.f32 %v1527
  %vm1534 = vweird.f32 %v1528
  %vm1535 = vmor %vm1533, %vm1534
  %v1536 = vsel %vm1535, %v1528, %v1532
  %v1537 = vand.u32 2147483647, %v1527
  %vm1538 = vcmp.eq.f32.partialorder %v1537, 8.507059e+37
  %v1539 = vand.u32 %v1527, 2147483648
  %v1540 = vor.u32 1.1754944e-38, %v1539
  %v1541 = vsel %vm1538, %v1540, %v1536
  %v1542 = vmul.f32 1.0, %v1541
  %v1543 = vmul.f32 %v1522, %v1126
  %v1544 = vmul.f32 %v1503, %v1523
  %v1545 = vadd.f32 %v1543, %v1544
  %v1546 = vtanh.pop %v1545
  %v1547 = vmul.f32 %v1542, %v1546
  %vm1548 = vcmp.gt.s32.totalorder %v835, 1
  %v1549 = vsel %vm1548, 1, 0
  %1550 = vset.pattern.permute.xlu0 0
  %1551 = vperm.xlu0 %1550, %v1549
  %v1552 = vpop.permute.xlu0 %1551
  %vm1553 = vcmp.eq.s32.totalorder %v1552, 1
  %v1554 = vsel %vm1553, %v1547, %v1125
  %v1555 = vsel %vm1553, %v1545, %v1126
  %v1556 = vsel %vm1553, %v1547, 0.0
  %v1557 = vpack.c.bf16 %v1556, %v1556
  %s1558 = scalar_lea.vmem [#allocation4], 4
  %1559 = vst [vmem:[%s1558] sm:$0xf] %v1557
  %s1560 = scalar_lea.vmem [#allocation3], 192
  %v1561 = vld [vmem:[%s1560] sm:$0xff]
  %v1562 = vld [vmem:[%s1560 + $0x8] sm:$0xff]
  %v1563 = vld [vmem:[%s1560 + $0x10] sm:$0xff]
  %v1564 = vld [vmem:[%s1560 + $0x18] sm:$0xff]
  %1565 = vmatpush.bf16.msra.mxu0 %v1258
  %1566 = vmatpush.bf16.msra.mxu0 %v1254
  %1567 = vmatpush.bf16.msra.mxu0 %v1250
  %1568 = vmatpush.bf16.msra.mxu0 %v1246
  %1569 = vmatpush.bf16.msra.mxu0 %v1242
  %1570 = vmatpush.bf16.msra.mxu0 %v1238
  %1571 = vmatpush.bf16.msra.mxu0 %v1234
  %1572 = vmatpush.bf16.msra.mxu0 %v1230
  %1573 = vmatmul.bf16.gmra.mxu0 %v1421
  %v1574 = vpop.f32.mrf.mxu0
  %v1575 = vadd.f32 0.0, %v1574
  %v1576 = vpop.f32.mrf.mxu0
  %1577 = vdwg.mxu0
  %1578 = vmatpush.bf16.msra.mxu0 %v1259
  %1579 = vmatpush.bf16.msra.mxu0 %v1255
  %1580 = vmatpush.bf16.msra.mxu0 %v1251
  %1581 = vmatpush.bf16.msra.mxu0 %v1247
  %1582 = vmatpush.bf16.msra.mxu0 %v1243
  %1583 = vmatpush.bf16.msra.mxu0 %v1239
  %1584 = vmatpush.bf16.msra.mxu0 %v1235
  %1585 = vmatpush.bf16.msra.mxu0 %v1231
  %1586 = vmatmul.bf16.gmra.mxu0 %v1421
  %v1587 = vpop.f32.mrf.mxu0
  %v1588 = vadd.f32 0.0, %v1587
  %v1589 = vpop.f32.mrf.mxu0
  %1590 = vdwg.mxu0
  %1591 = vmatpush.bf16.msra.mxu0 %v1260
  %1592 = vmatpush.bf16.msra.mxu0 %v1256
  %1593 = vmatpush.bf16.msra.mxu0 %v1252
  %1594 = vmatpush.bf16.msra.mxu0 %v1248
  %1595 = vmatpush.bf16.msra.mxu0 %v1244
  %1596 = vmatpush.bf16.msra.mxu0 %v1240
  %1597 = vmatpush.bf16.msra.mxu0 %v1236
  %1598 = vmatpush.bf16.msra.mxu0 %v1232
  %1599 = vmatmul.bf16.gmra.mxu0 %v1421
  %v1600 = vpop.f32.mrf.mxu0
  %v1601 = vadd.f32 0.0, %v1600
  %v1602 = vpop.f32.mrf.mxu0
  %1603 = vdwg.mxu0
  %1604 = vmatpush.bf16.msra.mxu0 %v1261
  %1605 = vmatpush.bf16.msra.mxu0 %v1257
  %1606 = vmatpush.bf16.msra.mxu0 %v1253
  %1607 = vmatpush.bf16.msra.mxu0 %v1249
  %1608 = vmatpush.bf16.msra.mxu0 %v1245
  %1609 = vmatpush.bf16.msra.mxu0 %v1241
  %1610 = vmatpush.bf16.msra.mxu0 %v1237
  %1611 = vmatpush.bf16.msra.mxu0 %v1233
  %1612 = vmatmul.bf16.gmra.mxu0 %v1421
  %v1613 = vpop.f32.mrf.mxu0
  %v1614 = vadd.f32 0.0, %v1613
  %v1615 = vpop.f32.mrf.mxu0
  %1616 = vdwg.mxu0
  %v1617 = vadd.f32 %v1561, %v1575
  %v1618 = vadd.f32 %v1562, %v1588
  %v1619 = vadd.f32 %v1563, %v1601
  %v1620 = vadd.f32 %v1564, %v1614
  %v1621 = vxor.u32 %v1617, 2147483648
  %v1622 = vmul.f32 %v1621, 1.442695
  %v1623 = vpow.pop %v1622
  %v1624 = vadd.f32 %v1623, 1.0
  %v1625 = vrcp.pop %v1624
  %v1626 = vmul.f32 %v1624, %v1625
  %v1627 = vsub.f32 1.0, %v1626
  %v1628 = vmul.f32 %v1625, %v1627
  %v1629 = vadd.f32 %v1625, %v1628
  %vm1630 = vweird.f32 %v1624
  %vm1631 = vweird.f32 %v1625
  %vm1632 = vmor %vm1630, %vm1631
  %v1633 = vsel %vm1632, %v1625, %v1629
  %v1634 = vand.u32 2147483647, %v1624
  %vm1635 = vcmp.eq.f32.partialorder %v1634, 8.507059e+37
  %v1636 = vand.u32 %v1624, 2147483648
  %v1637 = vor.u32 1.1754944e-38, %v1636
  %v1638 = vsel %vm1635, %v1637, %v1633
  %v1639 = vmul.f32 1.0, %v1638
  %v1640 = vxor.u32 %v1618, 2147483648
  %v1641 = vmul.f32 %v1640, 1.442695
  %v1642 = vpow.pop %v1641
  %v1643 = vadd.f32 %v1642, 1.0
  %v1644 = vrcp.pop %v1643
  %v1645 = vmul.f32 %v1643, %v1644
  %v1646 = vsub.f32 1.0, %v1645
  %v1647 = vmul.f32 %v1644, %v1646
  %v1648 = vadd.f32 %v1644, %v1647
  %vm1649 = vweird.f32 %v1643
  %vm1650 = vweird.f32 %v1644
  %vm1651 = vmor %vm1649, %vm1650
  %v1652 = vsel %vm1651, %v1644, %v1648
  %v1653 = vand.u32 2147483647, %v1643
  %vm1654 = vcmp.eq.f32.partialorder %v1653, 8.507059e+37
  %v1655 = vand.u32 %v1643, 2147483648
  %v1656 = vor.u32 1.1754944e-38, %v1655
  %v1657 = vsel %vm1654, %v1656, %v1652
  %v1658 = vmul.f32 1.0, %v1657
  %v1659 = vtanh.pop %v1619
  %v1660 = vxor.u32 %v1620, 2147483648
  %v1661 = vmul.f32 %v1660, 1.442695
  %v1662 = vpow.pop %v1661
  %v1663 = vadd.f32 %v1662, 1.0
  %v1664 = vrcp.pop %v1663
  %v1665 = vmul.f32 %v1663, %v1664
  %v1666 = vsub.f32 1.0, %v1665
  %v1667 = vmul.f32 %v1664, %v1666
  %v1668 = vadd.f32 %v1664, %v1667
  %vm1669 = vweird.f32 %v1663
  %vm1670 = vweird.f32 %v1664
  %vm1671 = vmor %vm1669, %vm1670
  %v1672 = vsel %vm1671, %v1664, %v1668
  %v1673 = vand.u32 2147483647, %v1663
  %vm1674 = vcmp.eq.f32.partialorder %v1673, 8.507059e+37
  %v1675 = vand.u32 %v1663, 2147483648
  %v1676 = vor.u32 1.1754944e-38, %v1675
  %v1677 = vsel %vm1674, %v1676, %v1672
  %v1678 = vmul.f32 1.0, %v1677
  %v1679 = vmul.f32 %v1658, %v1420
  %v1680 = vmul.f32 %v1639, %v1659
  %v1681 = vadd.f32 %v1679, %v1680
  %v1682 = vtanh.pop %v1681
  %v1683 = vmul.f32 %v1678, %v1682
  %vm1684 = vcmp.gt.s32.totalorder %v835, 6
  %v1685 = vsel %vm1684, 1, 0
  %1686 = vset.pattern.permute.xlu0 0
  %1687 = vperm.xlu0 %1686, %v1685
  %v1688 = vpop.permute.xlu0 %1687
  %vm1689 = vcmp.eq.s32.totalorder %v1688, 1
  %v1690 = vsel %vm1689, %v1683, %v1419
  %v1691 = vsel %vm1689, %v1681, %v1420
  %v1692 = vsel %vm1689, %v1683, 0.0
  %v1693 = vpack.c.bf16 %v1692, %v1692
  %s1694 = scalar_lea.vmem [#allocation5], 24
  %1695 = vst [vmem:[%s1694] sm:$0xf] %v1693
  %s1696 = scalar_lea.vmem [#allocation2], 64
  %v1697 = vld [vmem:[%s1696] sm:$0xff]
  %v1698 = vld [vmem:[%s1696 + $0x8] sm:$0xff]
  %v1699 = vld [vmem:[%s1696 + $0x10] sm:$0xff]
  %v1700 = vld [vmem:[%s1696 + $0x18] sm:$0xff]
  %v1701 = vpack.c.bf16 %v1554, %v1554
  %1702 = vmatpush.bf16.msra.mxu0 %v964
  %1703 = vmatpush.bf16.msra.mxu0 %v960
  %1704 = vmatpush.bf16.msra.mxu0 %v956
  %1705 = vmatpush.bf16.msra.mxu0 %v952
  %1706 = vmatpush.bf16.msra.mxu0 %v948
  %1707 = vmatpush.bf16.msra.mxu0 %v944
  %1708 = vmatpush.bf16.msra.mxu0 %v940
  %1709 = vmatpush.bf16.msra.mxu0 %v936
  %1710 = vmatmul.bf16.gmra.mxu0 %v1701
  %v1711 = vpop.f32.mrf.mxu0
  %v1712 = vadd.f32 0.0, %v1711
  %v1713 = vpop.f32.mrf.mxu0
  %1714 = vdwg.mxu0
  %1715 = vmatpush.bf16.msra.mxu0 %v965
  %1716 = vmatpush.bf16.msra.mxu0 %v961
  %1717 = vmatpush.bf16.msra.mxu0 %v957
  %1718 = vmatpush.bf16.msra.mxu0 %v953
  %1719 = vmatpush.bf16.msra.mxu0 %v949
  %1720 = vmatpush.bf16.msra.mxu0 %v945
  %1721 = vmatpush.bf16.msra.mxu0 %v941
  %1722 = vmatpush.bf16.msra.mxu0 %v937
  %1723 = vmatmul.bf16.gmra.mxu0 %v1701
  %v1724 = vpop.f32.mrf.mxu0
  %v1725 = vadd.f32 0.0, %v1724
  %v1726 = vpop.f32.mrf.mxu0
  %1727 = vdwg.mxu0
  %1728 = vmatpush.bf16.msra.mxu0 %v966
  %1729 = vmatpush.bf16.msra.mxu0 %v962
  %1730 = vmatpush.bf16.msra.mxu0 %v958
  %1731 = vmatpush.bf16.msra.mxu0 %v954
  %1732 = vmatpush.bf16.msra.mxu0 %v950
  %1733 = vmatpush.bf16.msra.mxu0 %v946
  %1734 = vmatpush.bf16.msra.mxu0 %v942
  %1735 = vmatpush.bf16.msra.mxu0 %v938
  %1736 = vmatmul.bf16.gmra.mxu0 %v1701
  %v1737 = vpop.f32.mrf.mxu0
  %v1738 = vadd.f32 0.0, %v1737
  %v1739 = vpop.f32.mrf.mxu0
  %1740 = vdwg.mxu0
  %1741 = vmatpush.bf16.msra.mxu0 %v967
  %1742 = vmatpush.bf16.msra.mxu0 %v963
  %1743 = vmatpush.bf16.msra.mxu0 %v959
  %1744 = vmatpush.bf16.msra.mxu0 %v955
  %1745 = vmatpush.bf16.msra.mxu0 %v951
  %1746 = vmatpush.bf16.msra.mxu0 %v947
  %1747 = vmatpush.bf16.msra.mxu0 %v943
  %1748 = vmatpush.bf16.msra.mxu0 %v939
  %1749 = vmatmul.bf16.gmra.mxu0 %v1701
  %v1750 = vpop.f32.mrf.mxu0
  %v1751 = vadd.f32 0.0, %v1750
  %v1752 = vpop.f32.mrf.mxu0
  %1753 = vdwg.mxu0
  %v1754 = vadd.f32 %v1697, %v1712
  %v1755 = vadd.f32 %v1698, %v1725
  %v1756 = vadd.f32 %v1699, %v1738
  %v1757 = vadd.f32 %v1700, %v1751
  %v1758 = vxor.u32 %v1754, 2147483648
  %v1759 = vmul.f32 %v1758, 1.442695
  %v1760 = vpow.pop %v1759
  %v1761 = vadd.f32 %v1760, 1.0
  %v1762 = vrcp.pop %v1761
  %v1763 = vmul.f32 %v1761, %v1762
  %v1764 = vsub.f32 1.0, %v1763
  %v1765 = vmul.f32 %v1762, %v1764
  %v1766 = vadd.f32 %v1762, %v1765
  %vm1767 = vweird.f32 %v1761
  %vm1768 = vweird.f32 %v1762
  %vm1769 = vmor %vm1767, %vm1768
  %v1770 = vsel %vm1769, %v1762, %v1766
  %v1771 = vand.u32 2147483647, %v1761
  %vm1772 = vcmp.eq.f32.partialorder %v1771, 8.507059e+37
  %v1773 = vand.u32 %v1761, 2147483648
  %v1774 = vor.u32 1.1754944e-38, %v1773
  %v1775 = vsel %vm1772, %v1774, %v1770
  %v1776 = vmul.f32 1.0, %v1775
  %v1777 = vxor.u32 %v1755, 2147483648
  %v1778 = vmul.f32 %v1777, 1.442695
  %v1779 = vpow.pop %v1778
  %v1780 = vadd.f32 %v1779, 1.0
  %v1781 = vrcp.pop %v1780
  %v1782 = vmul.f32 %v1780, %v1781
  %v1783 = vsub.f32 1.0, %v1782
  %v1784 = vmul.f32 %v1781, %v1783
  %v1785 = vadd.f32 %v1781, %v1784
  %vm1786 = vweird.f32 %v1780
  %vm1787 = vweird.f32 %v1781
  %vm1788 = vmor %vm1786, %vm1787
  %v1789 = vsel %vm1788, %v1781, %v1785
  %v1790 = vand.u32 2147483647, %v1780
  %vm1791 = vcmp.eq.f32.partialorder %v1790, 8.507059e+37
  %v1792 = vand.u32 %v1780, 2147483648
  %v1793 = vor.u32 1.1754944e-38, %v1792
  %v1794 = vsel %vm1791, %v1793, %v1789
  %v1795 = vmul.f32 1.0, %v1794
  %v1796 = vtanh.pop %v1756
  %v1797 = vxor.u32 %v1757, 2147483648
  %v1798 = vmul.f32 %v1797, 1.442695
  %v1799 = vpow.pop %v1798
  %v1800 = vadd.f32 %v1799, 1.0
  %v1801 = vrcp.pop %v1800
  %v1802 = vmul.f32 %v1800, %v1801
  %v1803 = vsub.f32 1.0, %v1802
  %v1804 = vmul.f32 %v1801, %v1803
  %v1805 = vadd.f32 %v1801, %v1804
  %vm1806 = vweird.f32 %v1800
  %vm1807 = vweird.f32 %v1801
  %vm1808 = vmor %vm1806, %vm1807
  %v1809 = vsel %vm1808, %v1801, %v1805
  %v1810 = vand.u32 2147483647, %v1800
  %vm1811 = vcmp.eq.f32.partialorder %v1810, 8.507059e+37
  %v1812 = vand.u32 %v1800, 2147483648
  %v1813 = vor.u32 1.1754944e-38, %v1812
  %v1814 = vsel %vm1811, %v1813, %v1809
  %v1815 = vmul.f32 1.0, %v1814
  %v1816 = vmul.f32 %v1795, %v1555
  %v1817 = vmul.f32 %v1776, %v1796
  %v1818 = vadd.f32 %v1816, %v1817
  %v1819 = vtanh.pop %v1818
  %v1820 = vmul.f32 %v1815, %v1819
  %vm1821 = vcmp.gt.s32.totalorder %v835, 2
  %v1822 = vsel %vm1821, 1, 0
  %1823 = vset.pattern.permute.xlu0 0
  %1824 = vperm.xlu0 %1823, %v1822
  %v1825 = vpop.permute.xlu0 %1824
  %vm1826 = vcmp.eq.s32.totalorder %v1825, 1
  %v1827 = vsel %vm1826, %v1820, %v1554
  %v1828 = vsel %vm1826, %v1818, %v1555
  %v1829 = vsel %vm1826, %v1820, 0.0
  %v1830 = vpack.c.bf16 %v1829, %v1829
  %s1831 = scalar_lea.vmem [#allocation4], 8
  %1832 = vst [vmem:[%s1831] sm:$0xf] %v1830
  %s1833 = scalar_lea.vmem [#allocation3], 160
  %v1834 = vld [vmem:[%s1833] sm:$0xff]
  %v1835 = vld [vmem:[%s1833 + $0x8] sm:$0xff]
  %v1836 = vld [vmem:[%s1833 + $0x10] sm:$0xff]
  %v1837 = vld [vmem:[%s1833 + $0x18] sm:$0xff]
  %v1838 = vpack.c.bf16 %v1690, %v1690
  %1839 = vmatpush.bf16.msra.mxu0 %v1258
  %1840 = vmatpush.bf16.msra.mxu0 %v1254
  %1841 = vmatpush.bf16.msra.mxu0 %v1250
  %1842 = vmatpush.bf16.msra.mxu0 %v1246
  %1843 = vmatpush.bf16.msra.mxu0 %v1242
  %1844 = vmatpush.bf16.msra.mxu0 %v1238
  %1845 = vmatpush.bf16.msra.mxu0 %v1234
  %1846 = vmatpush.bf16.msra.mxu0 %v1230
  %1847 = vmatmul.bf16.gmra.mxu0 %v1838
  %v1848 = vpop.f32.mrf.mxu0
  %v1849 = vadd.f32 0.0, %v1848
  %v1850 = vpop.f32.mrf.mxu0
  %1851 = vdwg.mxu0
  %1852 = vmatpush.bf16.msra.mxu0 %v1259
  %1853 = vmatpush.bf16.msra.mxu0 %v1255
  %1854 = vmatpush.bf16.msra.mxu0 %v1251
  %1855 = vmatpush.bf16.msra.mxu0 %v1247
  %1856 = vmatpush.bf16.msra.mxu0 %v1243
  %1857 = vmatpush.bf16.msra.mxu0 %v1239
  %1858 = vmatpush.bf16.msra.mxu0 %v1235
  %1859 = vmatpush.bf16.msra.mxu0 %v1231
  %1860 = vmatmul.bf16.gmra.mxu0 %v1838
  %v1861 = vpop.f32.mrf.mxu0
  %v1862 = vadd.f32 0.0, %v1861
  %v1863 = vpop.f32.mrf.mxu0
  %1864 = vdwg.mxu0
  %1865 = vmatpush.bf16.msra.mxu0 %v1260
  %1866 = vmatpush.bf16.msra.mxu0 %v1256
  %1867 = vmatpush.bf16.msra.mxu0 %v1252
  %1868 = vmatpush.bf16.msra.mxu0 %v1248
  %1869 = vmatpush.bf16.msra.mxu0 %v1244
  %1870 = vmatpush.bf16.msra.mxu0 %v1240
  %1871 = vmatpush.bf16.msra.mxu0 %v1236
  %1872 = vmatpush.bf16.msra.mxu0 %v1232
  %1873 = vmatmul.bf16.gmra.mxu0 %v1838
  %v1874 = vpop.f32.mrf.mxu0
  %v1875 = vadd.f32 0.0, %v1874
  %v1876 = vpop.f32.mrf.mxu0
  %1877 = vdwg.mxu0
  %1878 = vmatpush.bf16.msra.mxu0 %v1261
  %1879 = vmatpush.bf16.msra.mxu0 %v1257
  %1880 = vmatpush.bf16.msra.mxu0 %v1253
  %1881 = vmatpush.bf16.msra.mxu0 %v1249
  %1882 = vmatpush.bf16.msra.mxu0 %v1245
  %1883 = vmatpush.bf16.msra.mxu0 %v1241
  %1884 = vmatpush.bf16.msra.mxu0 %v1237
  %1885 = vmatpush.bf16.msra.mxu0 %v1233
  %1886 = vmatmul.bf16.gmra.mxu0 %v1838
  %v1887 = vpop.f32.mrf.mxu0
  %v1888 = vadd.f32 0.0, %v1887
  %v1889 = vpop.f32.mrf.mxu0
  %1890 = vdwg.mxu0
  %v1891 = vadd.f32 %v1834, %v1849
  %v1892 = vadd.f32 %v1835, %v1862
  %v1893 = vadd.f32 %v1836, %v1875
  %v1894 = vadd.f32 %v1837, %v1888
  %v1895 = vxor.u32 %v1891, 2147483648
  %v1896 = vmul.f32 %v1895, 1.442695
  %v1897 = vpow.pop %v1896
  %v1898 = vadd.f32 %v1897, 1.0
  %v1899 = vrcp.pop %v1898
  %v1900 = vmul.f32 %v1898, %v1899
  %v1901 = vsub.f32 1.0, %v1900
  %v1902 = vmul.f32 %v1899, %v1901
  %v1903 = vadd.f32 %v1899, %v1902
  %vm1904 = vweird.f32 %v1898
  %vm1905 = vweird.f32 %v1899
  %vm1906 = vmor %vm1904, %vm1905
  %v1907 = vsel %vm1906, %v1899, %v1903
  %v1908 = vand.u32 2147483647, %v1898
  %vm1909 = vcmp.eq.f32.partialorder %v1908, 8.507059e+37
  %v1910 = vand.u32 %v1898, 2147483648
  %v1911 = vor.u32 1.1754944e-38, %v1910
  %v1912 = vsel %vm1909, %v1911, %v1907
  %v1913 = vmul.f32 1.0, %v1912
  %v1914 = vxor.u32 %v1892, 2147483648
  %v1915 = vmul.f32 %v1914, 1.442695
  %v1916 = vpow.pop %v1915
  %v1917 = vadd.f32 %v1916, 1.0
  %v1918 = vrcp.pop %v1917
  %v1919 = vmul.f32 %v1917, %v1918
  %v1920 = vsub.f32 1.0, %v1919
  %v1921 = vmul.f32 %v1918, %v1920
  %v1922 = vadd.f32 %v1918, %v1921
  %vm1923 = vweird.f32 %v1917
  %vm1924 = vweird.f32 %v1918
  %vm1925 = vmor %vm1923, %vm1924
  %v1926 = vsel %vm1925, %v1918, %v1922
  %v1927 = vand.u32 2147483647, %v1917
  %vm1928 = vcmp.eq.f32.partialorder %v1927, 8.507059e+37
  %v1929 = vand.u32 %v1917, 2147483648
  %v1930 = vor.u32 1.1754944e-38, %v1929
  %v1931 = vsel %vm1928, %v1930, %v1926
  %v1932 = vmul.f32 1.0, %v1931
  %v1933 = vtanh.pop %v1893
  %v1934 = vxor.u32 %v1894, 2147483648
  %v1935 = vmul.f32 %v1934, 1.442695
  %v1936 = vpow.pop %v1935
  %v1937 = vadd.f32 %v1936, 1.0
  %v1938 = vrcp.pop %v1937
  %v1939 = vmul.f32 %v1937, %v1938
  %v1940 = vsub.f32 1.0, %v1939
  %v1941 = vmul.f32 %v1938, %v1940
  %v1942 = vadd.f32 %v1938, %v1941
  %vm1943 = vweird.f32 %v1937
  %vm1944 = vweird.f32 %v1938
  %vm1945 = vmor %vm1943, %vm1944
  %v1946 = vsel %vm1945, %v1938, %v1942
  %v1947 = vand.u32 2147483647, %v1937
  %vm1948 = vcmp.eq.f32.partialorder %v1947, 8.507059e+37
  %v1949 = vand.u32 %v1937, 2147483648
  %v1950 = vor.u32 1.1754944e-38, %v1949
  %v1951 = vsel %vm1948, %v1950, %v1946
  %v1952 = vmul.f32 1.0, %v1951
  %v1953 = vmul.f32 %v1932, %v1691
  %v1954 = vmul.f32 %v1913, %v1933
  %v1955 = vadd.f32 %v1953, %v1954
  %v1956 = vtanh.pop %v1955
  %v1957 = vmul.f32 %v1952, %v1956
  %vm1958 = vcmp.gt.s32.totalorder %v835, 5
  %v1959 = vsel %vm1958, 1, 0
  %1960 = vset.pattern.permute.xlu0 0
  %1961 = vperm.xlu0 %1960, %v1959
  %v1962 = vpop.permute.xlu0 %1961
  %vm1963 = vcmp.eq.s32.totalorder %v1962, 1
  %v1964 = vsel %vm1963, %v1957, %v1690
  %v1965 = vsel %vm1963, %v1955, %v1691
  %v1966 = vsel %vm1963, %v1957, 0.0
  %v1967 = vpack.c.bf16 %v1966, %v1966
  %s1968 = scalar_lea.vmem [#allocation5], 20
  %1969 = vst [vmem:[%s1968] sm:$0xf] %v1967
  %s1970 = scalar_lea.vmem [#allocation2], 96
  %v1971 = vld [vmem:[%s1970] sm:$0xff]
  %v1972 = vld [vmem:[%s1970 + $0x8] sm:$0xff]
  %v1973 = vld [vmem:[%s1970 + $0x10] sm:$0xff]
  %v1974 = vld [vmem:[%s1970 + $0x18] sm:$0xff]
  %v1975 = vpack.c.bf16 %v1827, %v1827
  %1976 = vmatpush.bf16.msra.mxu0 %v964
  %1977 = vmatpush.bf16.msra.mxu0 %v960
  %1978 = vmatpush.bf16.msra.mxu0 %v956
  %1979 = vmatpush.bf16.msra.mxu0 %v952
  %1980 = vmatpush.bf16.msra.mxu0 %v948
  %1981 = vmatpush.bf16.msra.mxu0 %v944
  %1982 = vmatpush.bf16.msra.mxu0 %v940
  %1983 = vmatpush.bf16.msra.mxu0 %v936
  %1984 = vmatmul.bf16.gmra.mxu0 %v1975
  %v1985 = vpop.f32.mrf.mxu0
  %v1986 = vadd.f32 0.0, %v1985
  %v1987 = vpop.f32.mrf.mxu0
  %1988 = vdwg.mxu0
  %1989 = vmatpush.bf16.msra.mxu0 %v965
  %1990 = vmatpush.bf16.msra.mxu0 %v961
  %1991 = vmatpush.bf16.msra.mxu0 %v957
  %1992 = vmatpush.bf16.msra.mxu0 %v953
  %1993 = vmatpush.bf16.msra.mxu0 %v949
  %1994 = vmatpush.bf16.msra.mxu0 %v945
  %1995 = vmatpush.bf16.msra.mxu0 %v941
  %1996 = vmatpush.bf16.msra.mxu0 %v937
  %1997 = vmatmul.bf16.gmra.mxu0 %v1975
  %v1998 = vpop.f32.mrf.mxu0
  %v1999 = vadd.f32 0.0, %v1998
  %v2000 = vpop.f32.mrf.mxu0
  %2001 = vdwg.mxu0
  %2002 = vmatpush.bf16.msra.mxu0 %v966
  %2003 = vmatpush.bf16.msra.mxu0 %v962
  %2004 = vmatpush.bf16.msra.mxu0 %v958
  %2005 = vmatpush.bf16.msra.mxu0 %v954
  %2006 = vmatpush.bf16.msra.mxu0 %v950
  %2007 = vmatpush.bf16.msra.mxu0 %v946
  %2008 = vmatpush.bf16.msra.mxu0 %v942
  %2009 = vmatpush.bf16.msra.mxu0 %v938
  %2010 = vmatmul.bf16.gmra.mxu0 %v1975
  %v2011 = vpop.f32.mrf.mxu0
  %v2012 = vadd.f32 0.0, %v2011
  %v2013 = vpop.f32.mrf.mxu0
  %2014 = vdwg.mxu0
  %2015 = vmatpush.bf16.msra.mxu0 %v967
  %2016 = vmatpush.bf16.msra.mxu0 %v963
  %2017 = vmatpush.bf16.msra.mxu0 %v959
  %2018 = vmatpush.bf16.msra.mxu0 %v955
  %2019 = vmatpush.bf16.msra.mxu0 %v951
  %2020 = vmatpush.bf16.msra.mxu0 %v947
  %2021 = vmatpush.bf16.msra.mxu0 %v943
  %2022 = vmatpush.bf16.msra.mxu0 %v939
  %2023 = vmatmul.bf16.gmra.mxu0 %v1975
  %v2024 = vpop.f32.mrf.mxu0
  %v2025 = vadd.f32 0.0, %v2024
  %v2026 = vpop.f32.mrf.mxu0
  %2027 = vdwg.mxu0
  %v2028 = vadd.f32 %v1971, %v1986
  %v2029 = vadd.f32 %v1972, %v1999
  %v2030 = vadd.f32 %v1973, %v2012
  %v2031 = vadd.f32 %v1974, %v2025
  %v2032 = vxor.u32 %v2028, 2147483648
  %v2033 = vmul.f32 %v2032, 1.442695
  %v2034 = vpow.pop %v2033
  %v2035 = vadd.f32 %v2034, 1.0
  %v2036 = vrcp.pop %v2035
  %v2037 = vmul.f32 %v2035, %v2036
  %v2038 = vsub.f32 1.0, %v2037
  %v2039 = vmul.f32 %v2036, %v2038
  %v2040 = vadd.f32 %v2036, %v2039
  %vm2041 = vweird.f32 %v2035
  %vm2042 = vweird.f32 %v2036
  %vm2043 = vmor %vm2041, %vm2042
  %v2044 = vsel %vm2043, %v2036, %v2040
  %v2045 = vand.u32 2147483647, %v2035
  %vm2046 = vcmp.eq.f32.partialorder %v2045, 8.507059e+37
  %v2047 = vand.u32 %v2035, 2147483648
  %v2048 = vor.u32 1.1754944e-38, %v2047
  %v2049 = vsel %vm2046, %v2048, %v2044
  %v2050 = vmul.f32 1.0, %v2049
  %v2051 = vxor.u32 %v2029, 2147483648
  %v2052 = vmul.f32 %v2051, 1.442695
  %v2053 = vpow.pop %v2052
  %v2054 = vadd.f32 %v2053, 1.0
  %v2055 = vrcp.pop %v2054
  %v2056 = vmul.f32 %v2054, %v2055
  %v2057 = vsub.f32 1.0, %v2056
  %v2058 = vmul.f32 %v2055, %v2057
  %v2059 = vadd.f32 %v2055, %v2058
  %vm2060 = vweird.f32 %v2054
  %vm2061 = vweird.f32 %v2055
  %vm2062 = vmor %vm2060, %vm2061
  %v2063 = vsel %vm2062, %v2055, %v2059
  %v2064 = vand.u32 2147483647, %v2054
  %vm2065 = vcmp.eq.f32.partialorder %v2064, 8.507059e+37
  %v2066 = vand.u32 %v2054, 2147483648
  %v2067 = vor.u32 1.1754944e-38, %v2066
  %v2068 = vsel %vm2065, %v2067, %v2063
  %v2069 = vmul.f32 1.0, %v2068
  %v2070 = vtanh.pop %v2030
  %v2071 = vxor.u32 %v2031, 2147483648
  %v2072 = vmul.f32 %v2071, 1.442695
  %v2073 = vpow.pop %v2072
  %v2074 = vadd.f32 %v2073, 1.0
  %v2075 = vrcp.pop %v2074
  %v2076 = vmul.f32 %v2074, %v2075
  %v2077 = vsub.f32 1.0, %v2076
  %v2078 = vmul.f32 %v2075, %v2077
  %v2079 = vadd.f32 %v2075, %v2078
  %vm2080 = vweird.f32 %v2074
  %vm2081 = vweird.f32 %v2075
  %vm2082 = vmor %vm2080, %vm2081
  %v2083 = vsel %vm2082, %v2075, %v2079
  %v2084 = vand.u32 2147483647, %v2074
  %vm2085 = vcmp.eq.f32.partialorder %v2084, 8.507059e+37
  %v2086 = vand.u32 %v2074, 2147483648
  %v2087 = vor.u32 1.1754944e-38, %v2086
  %v2088 = vsel %vm2085, %v2087, %v2083
  %v2089 = vmul.f32 1.0, %v2088
  %v2090 = vmul.f32 %v2069, %v1828
  %v2091 = vmul.f32 %v2050, %v2070
  %v2092 = vadd.f32 %v2090, %v2091
  %v2093 = vtanh.pop %v2092
  %v2094 = vmul.f32 %v2089, %v2093
  %vm2095 = vcmp.gt.s32.totalorder %v835, 3
  %v2096 = vsel %vm2095, 1, 0
  %2097 = vset.pattern.permute.xlu0 0
  %2098 = vperm.xlu0 %2097, %v2096
  %v2099 = vpop.permute.xlu0 %2098
  %vm2100 = vcmp.eq.s32.totalorder %v2099, 1
  %v2101 = vsel %vm2100, %v2094, %v1827
  %v2102 = vsel %vm2100, %v2092, %v1828
  %v2103 = vsel %vm2100, %v2094, 0.0
  %v2104 = vpack.c.bf16 %v2103, %v2103
  %s2105 = scalar_lea.vmem [#allocation4], 12
  %2106 = vst [vmem:[%s2105] sm:$0xf] %v2104
  %s2107 = scalar_lea.vmem [#allocation3], 128
  %v2108 = vld [vmem:[%s2107] sm:$0xff]
  %v2109 = vld [vmem:[%s2107 + $0x8] sm:$0xff]
  %v2110 = vld [vmem:[%s2107 + $0x10] sm:$0xff]
  %v2111 = vld [vmem:[%s2107 + $0x18] sm:$0xff]
  %v2112 = vpack.c.bf16 %v1964, %v1964
  %2113 = vmatpush.bf16.msra.mxu0 %v1258
  %2114 = vmatpush.bf16.msra.mxu0 %v1254
  %2115 = vmatpush.bf16.msra.mxu0 %v1250
  %2116 = vmatpush.bf16.msra.mxu0 %v1246
  %2117 = vmatpush.bf16.msra.mxu0 %v1242
  %2118 = vmatpush.bf16.msra.mxu0 %v1238
  %2119 = vmatpush.bf16.msra.mxu0 %v1234
  %2120 = vmatpush.bf16.msra.mxu0 %v1230
  %2121 = vmatmul.bf16.gmra.mxu0 %v2112
  %v2122 = vpop.f32.mrf.mxu0
  %v2123 = vadd.f32 0.0, %v2122
  %v2124 = vpop.f32.mrf.mxu0
  %2125 = vdwg.mxu0
  %2126 = vmatpush.bf16.msra.mxu0 %v1259
  %2127 = vmatpush.bf16.msra.mxu0 %v1255
  %2128 = vmatpush.bf16.msra.mxu0 %v1251
  %2129 = vmatpush.bf16.msra.mxu0 %v1247
  %2130 = vmatpush.bf16.msra.mxu0 %v1243
  %2131 = vmatpush.bf16.msra.mxu0 %v1239
  %2132 = vmatpush.bf16.msra.mxu0 %v1235
  %2133 = vmatpush.bf16.msra.mxu0 %v1231
  %2134 = vmatmul.bf16.gmra.mxu0 %v2112
  %v2135 = vpop.f32.mrf.mxu0
  %v2136 = vadd.f32 0.0, %v2135
  %v2137 = vpop.f32.mrf.mxu0
  %2138 = vdwg.mxu0
  %2139 = vmatpush.bf16.msra.mxu0 %v1260
  %2140 = vmatpush.bf16.msra.mxu0 %v1256
  %2141 = vmatpush.bf16.msra.mxu0 %v1252
  %2142 = vmatpush.bf16.msra.mxu0 %v1248
  %2143 = vmatpush.bf16.msra.mxu0 %v1244
  %2144 = vmatpush.bf16.msra.mxu0 %v1240
  %2145 = vmatpush.bf16.msra.mxu0 %v1236
  %2146 = vmatpush.bf16.msra.mxu0 %v1232
  %2147 = vmatmul.bf16.gmra.mxu0 %v2112
  %v2148 = vpop.f32.mrf.mxu0
  %v2149 = vadd.f32 0.0, %v2148
  %v2150 = vpop.f32.mrf.mxu0
  %2151 = vdwg.mxu0
  %2152 = vmatpush.bf16.msra.mxu0 %v1261
  %2153 = vmatpush.bf16.msra.mxu0 %v1257
  %2154 = vmatpush.bf16.msra.mxu0 %v1253
  %2155 = vmatpush.bf16.msra.mxu0 %v1249
  %2156 = vmatpush.bf16.msra.mxu0 %v1245
  %2157 = vmatpush.bf16.msra.mxu0 %v1241
  %2158 = vmatpush.bf16.msra.mxu0 %v1237
  %2159 = vmatpush.bf16.msra.mxu0 %v1233
  %2160 = vmatmul.bf16.gmra.mxu0 %v2112
  %v2161 = vpop.f32.mrf.mxu0
  %v2162 = vadd.f32 0.0, %v2161
  %v2163 = vpop.f32.mrf.mxu0
  %2164 = vdwg.mxu0
  %v2165 = vadd.f32 %v2108, %v2123
  %v2166 = vadd.f32 %v2109, %v2136
  %v2167 = vadd.f32 %v2110, %v2149
  %v2168 = vadd.f32 %v2111, %v2162
  %v2169 = vxor.u32 %v2165, 2147483648
  %v2170 = vmul.f32 %v2169, 1.442695
  %v2171 = vpow.pop %v2170
  %v2172 = vadd.f32 %v2171, 1.0
  %v2173 = vrcp.pop %v2172
  %v2174 = vmul.f32 %v2172, %v2173
  %v2175 = vsub.f32 1.0, %v2174
  %v2176 = vmul.f32 %v2173, %v2175
  %v2177 = vadd.f32 %v2173, %v2176
  %vm2178 = vweird.f32 %v2172
  %vm2179 = vweird.f32 %v2173
  %vm2180 = vmor %vm2178, %vm2179
  %v2181 = vsel %vm2180, %v2173, %v2177
  %v2182 = vand.u32 2147483647, %v2172
  %vm2183 = vcmp.eq.f32.partialorder %v2182, 8.507059e+37
  %v2184 = vand.u32 %v2172, 2147483648
  %v2185 = vor.u32 1.1754944e-38, %v2184
  %v2186 = vsel %vm2183, %v2185, %v2181
  %v2187 = vmul.f32 1.0, %v2186
  %v2188 = vxor.u32 %v2166, 2147483648
  %v2189 = vmul.f32 %v2188, 1.442695
  %v2190 = vpow.pop %v2189
  %v2191 = vadd.f32 %v2190, 1.0
  %v2192 = vrcp.pop %v2191
  %v2193 = vmul.f32 %v2191, %v2192
  %v2194 = vsub.f32 1.0, %v2193
  %v2195 = vmul.f32 %v2192, %v2194
  %v2196 = vadd.f32 %v2192, %v2195
  %vm2197 = vweird.f32 %v2191
  %vm2198 = vweird.f32 %v2192
  %vm2199 = vmor %vm2197, %vm2198
  %v2200 = vsel %vm2199, %v2192, %v2196
  %v2201 = vand.u32 2147483647, %v2191
  %vm2202 = vcmp.eq.f32.partialorder %v2201, 8.507059e+37
  %v2203 = vand.u32 %v2191, 2147483648
  %v2204 = vor.u32 1.1754944e-38, %v2203
  %v2205 = vsel %vm2202, %v2204, %v2200
  %v2206 = vmul.f32 1.0, %v2205
  %v2207 = vtanh.pop %v2167
  %v2208 = vxor.u32 %v2168, 2147483648
  %v2209 = vmul.f32 %v2208, 1.442695
  %v2210 = vpow.pop %v2209
  %v2211 = vadd.f32 %v2210, 1.0
  %v2212 = vrcp.pop %v2211
  %v2213 = vmul.f32 %v2211, %v2212
  %v2214 = vsub.f32 1.0, %v2213
  %v2215 = vmul.f32 %v2212, %v2214
  %v2216 = vadd.f32 %v2212, %v2215
  %vm2217 = vweird.f32 %v2211
  %vm2218 = vweird.f32 %v2212
  %vm2219 = vmor %vm2217, %vm2218
  %v2220 = vsel %vm2219, %v2212, %v2216
  %v2221 = vand.u32 2147483647, %v2211
  %vm2222 = vcmp.eq.f32.partialorder %v2221, 8.507059e+37
  %v2223 = vand.u32 %v2211, 2147483648
  %v2224 = vor.u32 1.1754944e-38, %v2223
  %v2225 = vsel %vm2222, %v2224, %v2220
  %v2226 = vmul.f32 1.0, %v2225
  %v2227 = vmul.f32 %v2206, %v1965
  %v2228 = vmul.f32 %v2187, %v2207
  %v2229 = vadd.f32 %v2227, %v2228
  %v2230 = vtanh.pop %v2229
  %v2231 = vmul.f32 %v2226, %v2230
  %vm2232 = vcmp.gt.s32.totalorder %v835, 4
  %v2233 = vsel %vm2232, 1, 0
  %2234 = vset.pattern.permute.xlu0 0
  %2235 = vperm.xlu0 %2234, %v2233
  %v2236 = vpop.permute.xlu0 %2235
  %vm2237 = vcmp.eq.s32.totalorder %v2236, 1
  %v2238 = vsel %vm2237, %v2231, %v1964
  %v2239 = vsel %vm2237, %v2229, %v1965
  %v2240 = vsel %vm2237, %v2231, 0.0
  %v2241 = vpack.c.bf16 %v2240, %v2240
  %s2242 = scalar_lea.vmem [#allocation5], 16
  %2243 = vst [vmem:[%s2242] sm:$0xf] %v2241
  %s2244 = scalar_lea.vmem [#allocation2], 128
  %v2245 = vld [vmem:[%s2244] sm:$0xff]
  %v2246 = vld [vmem:[%s2244 + $0x8] sm:$0xff]
  %v2247 = vld [vmem:[%s2244 + $0x10] sm:$0xff]
  %v2248 = vld [vmem:[%s2244 + $0x18] sm:$0xff]
  %v2249 = vpack.c.bf16 %v2101, %v2101
  %2250 = vmatpush.bf16.msra.mxu0 %v964
  %2251 = vmatpush.bf16.msra.mxu0 %v960
  %2252 = vmatpush.bf16.msra.mxu0 %v956
  %2253 = vmatpush.bf16.msra.mxu0 %v952
  %2254 = vmatpush.bf16.msra.mxu0 %v948
  %2255 = vmatpush.bf16.msra.mxu0 %v944
  %2256 = vmatpush.bf16.msra.mxu0 %v940
  %2257 = vmatpush.bf16.msra.mxu0 %v936
  %2258 = vmatmul.bf16.gmra.mxu0 %v2249
  %v2259 = vpop.f32.mrf.mxu0
  %v2260 = vadd.f32 0.0, %v2259
  %v2261 = vpop.f32.mrf.mxu0
  %2262 = vdwg.mxu0
  %2263 = vmatpush.bf16.msra.mxu0 %v965
  %2264 = vmatpush.bf16.msra.mxu0 %v961
  %2265 = vmatpush.bf16.msra.mxu0 %v957
  %2266 = vmatpush.bf16.msra.mxu0 %v953
  %2267 = vmatpush.bf16.msra.mxu0 %v949
  %2268 = vmatpush.bf16.msra.mxu0 %v945
  %2269 = vmatpush.bf16.msra.mxu0 %v941
  %2270 = vmatpush.bf16.msra.mxu0 %v937
  %2271 = vmatmul.bf16.gmra.mxu0 %v2249
  %v2272 = vpop.f32.mrf.mxu0
  %v2273 = vadd.f32 0.0, %v2272
  %v2274 = vpop.f32.mrf.mxu0
  %2275 = vdwg.mxu0
  %2276 = vmatpush.bf16.msra.mxu0 %v966
  %2277 = vmatpush.bf16.msra.mxu0 %v962
  %2278 = vmatpush.bf16.msra.mxu0 %v958
  %2279 = vmatpush.bf16.msra.mxu0 %v954
  %2280 = vmatpush.bf16.msra.mxu0 %v950
  %2281 = vmatpush.bf16.msra.mxu0 %v946
  %2282 = vmatpush.bf16.msra.mxu0 %v942
  %2283 = vmatpush.bf16.msra.mxu0 %v938
  %2284 = vmatmul.bf16.gmra.mxu0 %v2249
  %v2285 = vpop.f32.mrf.mxu0
  %v2286 = vadd.f32 0.0, %v2285
  %v2287 = vpop.f32.mrf.mxu0
  %2288 = vdwg.mxu0
  %2289 = vmatpush.bf16.msra.mxu0 %v967
  %2290 = vmatpush.bf16.msra.mxu0 %v963
  %2291 = vmatpush.bf16.msra.mxu0 %v959
  %2292 = vmatpush.bf16.msra.mxu0 %v955
  %2293 = vmatpush.bf16.msra.mxu0 %v951
  %2294 = vmatpush.bf16.msra.mxu0 %v947
  %2295 = vmatpush.bf16.msra.mxu0 %v943
  %2296 = vmatpush.bf16.msra.mxu0 %v939
  %2297 = vmatmul.bf16.gmra.mxu0 %v2249
  %v2298 = vpop.f32.mrf.mxu0
  %v2299 = vadd.f32 0.0, %v2298
  %v2300 = vpop.f32.mrf.mxu0
  %2301 = vdwg.mxu0
  %v2302 = vadd.f32 %v2245, %v2260
  %v2303 = vadd.f32 %v2246, %v2273
  %v2304 = vadd.f32 %v2247, %v2286
  %v2305 = vadd.f32 %v2248, %v2299
  %v2306 = vxor.u32 %v2302, 2147483648
  %v2307 = vmul.f32 %v2306, 1.442695
  %v2308 = vpow.pop %v2307
  %v2309 = vadd.f32 %v2308, 1.0
  %v2310 = vrcp.pop %v2309
  %v2311 = vmul.f32 %v2309, %v2310
  %v2312 = vsub.f32 1.0, %v2311
  %v2313 = vmul.f32 %v2310, %v2312
  %v2314 = vadd.f32 %v2310, %v2313
  %vm2315 = vweird.f32 %v2309
  %vm2316 = vweird.f32 %v2310
  %vm2317 = vmor %vm2315, %vm2316
  %v2318 = vsel %vm2317, %v2310, %v2314
  %v2319 = vand.u32 2147483647, %v2309
  %vm2320 = vcmp.eq.f32.partialorder %v2319, 8.507059e+37
  %v2321 = vand.u32 %v2309, 2147483648
  %v2322 = vor.u32 1.1754944e-38, %v2321
  %v2323 = vsel %vm2320, %v2322, %v2318
  %v2324 = vmul.f32 1.0, %v2323
  %v2325 = vxor.u32 %v2303, 2147483648
  %v2326 = vmul.f32 %v2325, 1.442695
  %v2327 = vpow.pop %v2326
  %v2328 = vadd.f32 %v2327, 1.0
  %v2329 = vrcp.pop %v2328
  %v2330 = vmul.f32 %v2328, %v2329
  %v2331 = vsub.f32 1.0, %v2330
  %v2332 = vmul.f32 %v2329, %v2331
  %v2333 = vadd.f32 %v2329, %v2332
  %vm2334 = vweird.f32 %v2328
  %vm2335 = vweird.f32 %v2329
  %vm2336 = vmor %vm2334, %vm2335
  %v2337 = vsel %vm2336, %v2329, %v2333
  %v2338 = vand.u32 2147483647, %v2328
  %vm2339 = vcmp.eq.f32.partialorder %v2338, 8.507059e+37
  %v2340 = vand.u32 %v2328, 2147483648
  %v2341 = vor.u32 1.1754944e-38, %v2340
  %v2342 = vsel %vm2339, %v2341, %v2337
  %v2343 = vmul.f32 1.0, %v2342
  %v2344 = vtanh.pop %v2304
  %v2345 = vxor.u32 %v2305, 2147483648
  %v2346 = vmul.f32 %v2345, 1.442695
  %v2347 = vpow.pop %v2346
  %v2348 = vadd.f32 %v2347, 1.0
  %v2349 = vrcp.pop %v2348
  %v2350 = vmul.f32 %v2348, %v2349
  %v2351 = vsub.f32 1.0, %v2350
  %v2352 = vmul.f32 %v2349, %v2351
  %v2353 = vadd.f32 %v2349, %v2352
  %vm2354 = vweird.f32 %v2348
  %vm2355 = vweird.f32 %v2349
  %vm2356 = vmor %vm2354, %vm2355
  %v2357 = vsel %vm2356, %v2349, %v2353
  %v2358 = vand.u32 2147483647, %v2348
  %vm2359 = vcmp.eq.f32.partialorder %v2358, 8.507059e+37
  %v2360 = vand.u32 %v2348, 2147483648
  %v2361 = vor.u32 1.1754944e-38, %v2360
  %v2362 = vsel %vm2359, %v2361, %v2357
  %v2363 = vmul.f32 1.0, %v2362
  %v2364 = vmul.f32 %v2343, %v2102
  %v2365 = vmul.f32 %v2324, %v2344
  %v2366 = vadd.f32 %v2364, %v2365
  %v2367 = vtanh.pop %v2366
  %v2368 = vmul.f32 %v2363, %v2367
  %v2369 = vsel %vm2237, %v2368, %v2101
  %v2370 = vsel %vm2237, %v2366, %v2102
  %v2371 = vsel %vm2237, %v2368, 0.0
  %v2372 = vpack.c.bf16 %v2371, %v2371
  %s2373 = scalar_lea.vmem [#allocation4], 16
  %2374 = vst [vmem:[%s2373] sm:$0xf] %v2372
  %s2375 = scalar_lea.vmem [#allocation3], 96
  %v2376 = vld [vmem:[%s2375] sm:$0xff]
  %v2377 = vld [vmem:[%s2375 + $0x8] sm:$0xff]
  %v2378 = vld [vmem:[%s2375 + $0x10] sm:$0xff]
  %v2379 = vld [vmem:[%s2375 + $0x18] sm:$0xff]
  %v2380 = vpack.c.bf16 %v2238, %v2238
  %2381 = vmatpush.bf16.msra.mxu0 %v1258
  %2382 = vmatpush.bf16.msra.mxu0 %v1254
  %2383 = vmatpush.bf16.msra.mxu0 %v1250
  %2384 = vmatpush.bf16.msra.mxu0 %v1246
  %2385 = vmatpush.bf16.msra.mxu0 %v1242
  %2386 = vmatpush.bf16.msra.mxu0 %v1238
  %2387 = vmatpush.bf16.msra.mxu0 %v1234
  %2388 = vmatpush.bf16.msra.mxu0 %v1230
  %2389 = vmatmul.bf16.gmra.mxu0 %v2380
  %v2390 = vpop.f32.mrf.mxu0
  %v2391 = vadd.f32 0.0, %v2390
  %v2392 = vpop.f32.mrf.mxu0
  %2393 = vdwg.mxu0
  %2394 = vmatpush.bf16.msra.mxu0 %v1259
  %2395 = vmatpush.bf16.msra.mxu0 %v1255
  %2396 = vmatpush.bf16.msra.mxu0 %v1251
  %2397 = vmatpush.bf16.msra.mxu0 %v1247
  %2398 = vmatpush.bf16.msra.mxu0 %v1243
  %2399 = vmatpush.bf16.msra.mxu0 %v1239
  %2400 = vmatpush.bf16.msra.mxu0 %v1235
  %2401 = vmatpush.bf16.msra.mxu0 %v1231
  %2402 = vmatmul.bf16.gmra.mxu0 %v2380
  %v2403 = vpop.f32.mrf.mxu0
  %v2404 = vadd.f32 0.0, %v2403
  %v2405 = vpop.f32.mrf.mxu0
  %2406 = vdwg.mxu0
  %2407 = vmatpush.bf16.msra.mxu0 %v1260
  %2408 = vmatpush.bf16.msra.mxu0 %v1256
  %2409 = vmatpush.bf16.msra.mxu0 %v1252
  %2410 = vmatpush.bf16.msra.mxu0 %v1248
  %2411 = vmatpush.bf16.msra.mxu0 %v1244
  %2412 = vmatpush.bf16.msra.mxu0 %v1240
  %2413 = vmatpush.bf16.msra.mxu0 %v1236
  %2414 = vmatpush.bf16.msra.mxu0 %v1232
  %2415 = vmatmul.bf16.gmra.mxu0 %v2380
  %v2416 = vpop.f32.mrf.mxu0
  %v2417 = vadd.f32 0.0, %v2416
  %v2418 = vpop.f32.mrf.mxu0
  %2419 = vdwg.mxu0
  %2420 = vmatpush.bf16.msra.mxu0 %v1261
  %2421 = vmatpush.bf16.msra.mxu0 %v1257
  %2422 = vmatpush.bf16.msra.mxu0 %v1253
  %2423 = vmatpush.bf16.msra.mxu0 %v1249
  %2424 = vmatpush.bf16.msra.mxu0 %v1245
  %2425 = vmatpush.bf16.msra.mxu0 %v1241
  %2426 = vmatpush.bf16.msra.mxu0 %v1237
  %2427 = vmatpush.bf16.msra.mxu0 %v1233
  %2428 = vmatmul.bf16.gmra.mxu0 %v2380
  %v2429 = vpop.f32.mrf.mxu0
  %v2430 = vadd.f32 0.0, %v2429
  %v2431 = vpop.f32.mrf.mxu0
  %2432 = vdwg.mxu0
  %v2433 = vadd.f32 %v2376, %v2391
  %v2434 = vadd.f32 %v2377, %v2404
  %v2435 = vadd.f32 %v2378, %v2417
  %v2436 = vadd.f32 %v2379, %v2430
  %v2437 = vxor.u32 %v2433, 2147483648
  %v2438 = vmul.f32 %v2437, 1.442695
  %v2439 = vpow.pop %v2438
  %v2440 = vadd.f32 %v2439, 1.0
  %v2441 = vrcp.pop %v2440
  %v2442 = vmul.f32 %v2440, %v2441
  %v2443 = vsub.f32 1.0, %v2442
  %v2444 = vmul.f32 %v2441, %v2443
  %v2445 = vadd.f32 %v2441, %v2444
  %vm2446 = vweird.f32 %v2440
  %vm2447 = vweird.f32 %v2441
  %vm2448 = vmor %vm2446, %vm2447
  %v2449 = vsel %vm2448, %v2441, %v2445
  %v2450 = vand.u32 2147483647, %v2440
  %vm2451 = vcmp.eq.f32.partialorder %v2450, 8.507059e+37
  %v2452 = vand.u32 %v2440, 2147483648
  %v2453 = vor.u32 1.1754944e-38, %v2452
  %v2454 = vsel %vm2451, %v2453, %v2449
  %v2455 = vmul.f32 1.0, %v2454
  %v2456 = vxor.u32 %v2434, 2147483648
  %v2457 = vmul.f32 %v2456, 1.442695
  %v2458 = vpow.pop %v2457
  %v2459 = vadd.f32 %v2458, 1.0
  %v2460 = vrcp.pop %v2459
  %v2461 = vmul.f32 %v2459, %v2460
  %v2462 = vsub.f32 1.0, %v2461
  %v2463 = vmul.f32 %v2460, %v2462
  %v2464 = vadd.f32 %v2460, %v2463
  %vm2465 = vweird.f32 %v2459
  %vm2466 = vweird.f32 %v2460
  %vm2467 = vmor %vm2465, %vm2466
  %v2468 = vsel %vm2467, %v2460, %v2464
  %v2469 = vand.u32 2147483647, %v2459
  %vm2470 = vcmp.eq.f32.partialorder %v2469, 8.507059e+37
  %v2471 = vand.u32 %v2459, 2147483648
  %v2472 = vor.u32 1.1754944e-38, %v2471
  %v2473 = vsel %vm2470, %v2472, %v2468
  %v2474 = vmul.f32 1.0, %v2473
  %v2475 = vtanh.pop %v2435
  %v2476 = vxor.u32 %v2436, 2147483648
  %v2477 = vmul.f32 %v2476, 1.442695
  %v2478 = vpow.pop %v2477
  %v2479 = vadd.f32 %v2478, 1.0
  %v2480 = vrcp.pop %v2479
  %v2481 = vmul.f32 %v2479, %v2480
  %v2482 = vsub.f32 1.0, %v2481
  %v2483 = vmul.f32 %v2480, %v2482
  %v2484 = vadd.f32 %v2480, %v2483
  %vm2485 = vweird.f32 %v2479
  %vm2486 = vweird.f32 %v2480
  %vm2487 = vmor %vm2485, %vm2486
  %v2488 = vsel %vm2487, %v2480, %v2484
  %v2489 = vand.u32 2147483647, %v2479
  %vm2490 = vcmp.eq.f32.partialorder %v2489, 8.507059e+37
  %v2491 = vand.u32 %v2479, 2147483648
  %v2492 = vor.u32 1.1754944e-38, %v2491
  %v2493 = vsel %vm2490, %v2492, %v2488
  %v2494 = vmul.f32 1.0, %v2493
  %v2495 = vmul.f32 %v2474, %v2239
  %v2496 = vmul.f32 %v2455, %v2475
  %v2497 = vadd.f32 %v2495, %v2496
  %v2498 = vtanh.pop %v2497
  %v2499 = vmul.f32 %v2494, %v2498
  %v2500 = vsel %vm2100, %v2499, %v2238
  %v2501 = vsel %vm2100, %v2497, %v2239
  %v2502 = vsel %vm2100, %v2499, 0.0
  %v2503 = vpack.c.bf16 %v2502, %v2502
  %s2504 = scalar_lea.vmem [#allocation5], 12
  %2505 = vst [vmem:[%s2504] sm:$0xf] %v2503
  %s2506 = scalar_lea.vmem [#allocation2], 160
  %v2507 = vld [vmem:[%s2506] sm:$0xff]
  %v2508 = vld [vmem:[%s2506 + $0x8] sm:$0xff]
  %v2509 = vld [vmem:[%s2506 + $0x10] sm:$0xff]
  %v2510 = vld [vmem:[%s2506 + $0x18] sm:$0xff]
  %v2511 = vpack.c.bf16 %v2369, %v2369
  %2512 = vmatpush.bf16.msra.mxu0 %v964
  %2513 = vmatpush.bf16.msra.mxu0 %v960
  %2514 = vmatpush.bf16.msra.mxu0 %v956
  %2515 = vmatpush.bf16.msra.mxu0 %v952
  %2516 = vmatpush.bf16.msra.mxu0 %v948
  %2517 = vmatpush.bf16.msra.mxu0 %v944
  %2518 = vmatpush.bf16.msra.mxu0 %v940
  %2519 = vmatpush.bf16.msra.mxu0 %v936
  %2520 = vmatmul.bf16.gmra.mxu0 %v2511
  %v2521 = vpop.f32.mrf.mxu0
  %v2522 = vadd.f32 0.0, %v2521
  %v2523 = vpop.f32.mrf.mxu0
  %2524 = vdwg.mxu0
  %2525 = vmatpush.bf16.msra.mxu0 %v965
  %2526 = vmatpush.bf16.msra.mxu0 %v961
  %2527 = vmatpush.bf16.msra.mxu0 %v957
  %2528 = vmatpush.bf16.msra.mxu0 %v953
  %2529 = vmatpush.bf16.msra.mxu0 %v949
  %2530 = vmatpush.bf16.msra.mxu0 %v945
  %2531 = vmatpush.bf16.msra.mxu0 %v941
  %2532 = vmatpush.bf16.msra.mxu0 %v937
  %2533 = vmatmul.bf16.gmra.mxu0 %v2511
  %v2534 = vpop.f32.mrf.mxu0
  %v2535 = vadd.f32 0.0, %v2534
  %v2536 = vpop.f32.mrf.mxu0
  %2537 = vdwg.mxu0
  %2538 = vmatpush.bf16.msra.mxu0 %v966
  %2539 = vmatpush.bf16.msra.mxu0 %v962
  %2540 = vmatpush.bf16.msra.mxu0 %v958
  %2541 = vmatpush.bf16.msra.mxu0 %v954
  %2542 = vmatpush.bf16.msra.mxu0 %v950
  %2543 = vmatpush.bf16.msra.mxu0 %v946
  %2544 = vmatpush.bf16.msra.mxu0 %v942
  %2545 = vmatpush.bf16.msra.mxu0 %v938
  %2546 = vmatmul.bf16.gmra.mxu0 %v2511
  %v2547 = vpop.f32.mrf.mxu0
  %v2548 = vadd.f32 0.0, %v2547
  %v2549 = vpop.f32.mrf.mxu0
  %2550 = vdwg.mxu0
  %2551 = vmatpush.bf16.msra.mxu0 %v967
  %2552 = vmatpush.bf16.msra.mxu0 %v963
  %2553 = vmatpush.bf16.msra.mxu0 %v959
  %2554 = vmatpush.bf16.msra.mxu0 %v955
  %2555 = vmatpush.bf16.msra.mxu0 %v951
  %2556 = vmatpush.bf16.msra.mxu0 %v947
  %2557 = vmatpush.bf16.msra.mxu0 %v943
  %2558 = vmatpush.bf16.msra.mxu0 %v939
  %2559 = vmatmul.bf16.gmra.mxu0 %v2511
  %v2560 = vpop.f32.mrf.mxu0
  %v2561 = vadd.f32 0.0, %v2560
  %v2562 = vpop.f32.mrf.mxu0
  %2563 = vdwg.mxu0
  %v2564 = vadd.f32 %v2507, %v2522
  %v2565 = vadd.f32 %v2508, %v2535
  %v2566 = vadd.f32 %v2509, %v2548
  %v2567 = vadd.f32 %v2510, %v2561
  %v2568 = vxor.u32 %v2564, 2147483648
  %v2569 = vmul.f32 %v2568, 1.442695
  %v2570 = vpow.pop %v2569
  %v2571 = vadd.f32 %v2570, 1.0
  %v2572 = vrcp.pop %v2571
  %v2573 = vmul.f32 %v2571, %v2572
  %v2574 = vsub.f32 1.0, %v2573
  %v2575 = vmul.f32 %v2572, %v2574
  %v2576 = vadd.f32 %v2572, %v2575
  %vm2577 = vweird.f32 %v2571
  %vm2578 = vweird.f32 %v2572
  %vm2579 = vmor %vm2577, %vm2578
  %v2580 = vsel %vm2579, %v2572, %v2576
  %v2581 = vand.u32 2147483647, %v2571
  %vm2582 = vcmp.eq.f32.partialorder %v2581, 8.507059e+37
  %v2583 = vand.u32 %v2571, 2147483648
  %v2584 = vor.u32 1.1754944e-38, %v2583
  %v2585 = vsel %vm2582, %v2584, %v2580
  %v2586 = vmul.f32 1.0, %v2585
  %v2587 = vxor.u32 %v2565, 2147483648
  %v2588 = vmul.f32 %v2587, 1.442695
  %v2589 = vpow.pop %v2588
  %v2590 = vadd.f32 %v2589, 1.0
  %v2591 = vrcp.pop %v2590
  %v2592 = vmul.f32 %v2590, %v2591
  %v2593 = vsub.f32 1.0, %v2592
  %v2594 = vmul.f32 %v2591, %v2593
  %v2595 = vadd.f32 %v2591, %v2594
  %vm2596 = vweird.f32 %v2590
  %vm2597 = vweird.f32 %v2591
  %vm2598 = vmor %vm2596, %vm2597
  %v2599 = vsel %vm2598, %v2591, %v2595
  %v2600 = vand.u32 2147483647, %v2590
  %vm2601 = vcmp.eq.f32.partialorder %v2600, 8.507059e+37
  %v2602 = vand.u32 %v2590, 2147483648
  %v2603 = vor.u32 1.1754944e-38, %v2602
  %v2604 = vsel %vm2601, %v2603, %v2599
  %v2605 = vmul.f32 1.0, %v2604
  %v2606 = vtanh.pop %v2566
  %v2607 = vxor.u32 %v2567, 2147483648
  %v2608 = vmul.f32 %v2607, 1.442695
  %v2609 = vpow.pop %v2608
  %v2610 = vadd.f32 %v2609, 1.0
  %v2611 = vrcp.pop %v2610
  %v2612 = vmul.f32 %v2610, %v2611
  %v2613 = vsub.f32 1.0, %v2612
  %v2614 = vmul.f32 %v2611, %v2613
  %v2615 = vadd.f32 %v2611, %v2614
  %vm2616 = vweird.f32 %v2610
  %vm2617 = vweird.f32 %v2611
  %vm2618 = vmor %vm2616, %vm2617
  %v2619 = vsel %vm2618, %v2611, %v2615
  %v2620 = vand.u32 2147483647, %v2610
  %vm2621 = vcmp.eq.f32.partialorder %v2620, 8.507059e+37
  %v2622 = vand.u32 %v2610, 2147483648
  %v2623 = vor.u32 1.1754944e-38, %v2622
  %v2624 = vsel %vm2621, %v2623, %v2619
  %v2625 = vmul.f32 1.0, %v2624
  %v2626 = vmul.f32 %v2605, %v2370
  %v2627 = vmul.f32 %v2586, %v2606
  %v2628 = vadd.f32 %v2626, %v2627
  %v2629 = vtanh.pop %v2628
  %v2630 = vmul.f32 %v2625, %v2629
  %v2631 = vsel %vm1963, %v2630, %v2369
  %v2632 = vsel %vm1963, %v2628, %v2370
  %v2633 = vsel %vm1963, %v2630, 0.0
  %v2634 = vpack.c.bf16 %v2633, %v2633
  %s2635 = scalar_lea.vmem [#allocation4], 20
  %2636 = vst [vmem:[%s2635] sm:$0xf] %v2634
  %s2637 = scalar_lea.vmem [#allocation3], 64
  %v2638 = vld [vmem:[%s2637] sm:$0xff]
  %v2639 = vld [vmem:[%s2637 + $0x8] sm:$0xff]
  %v2640 = vld [vmem:[%s2637 + $0x10] sm:$0xff]
  %v2641 = vld [vmem:[%s2637 + $0x18] sm:$0xff]
  %v2642 = vpack.c.bf16 %v2500, %v2500
  %2643 = vmatpush.bf16.msra.mxu0 %v1258
  %2644 = vmatpush.bf16.msra.mxu0 %v1254
  %2645 = vmatpush.bf16.msra.mxu0 %v1250
  %2646 = vmatpush.bf16.msra.mxu0 %v1246
  %2647 = vmatpush.bf16.msra.mxu0 %v1242
  %2648 = vmatpush.bf16.msra.mxu0 %v1238
  %2649 = vmatpush.bf16.msra.mxu0 %v1234
  %2650 = vmatpush.bf16.msra.mxu0 %v1230
  %2651 = vmatmul.bf16.gmra.mxu0 %v2642
  %v2652 = vpop.f32.mrf.mxu0
  %v2653 = vadd.f32 0.0, %v2652
  %v2654 = vpop.f32.mrf.mxu0
  %2655 = vdwg.mxu0
  %2656 = vmatpush.bf16.msra.mxu0 %v1259
  %2657 = vmatpush.bf16.msra.mxu0 %v1255
  %2658 = vmatpush.bf16.msra.mxu0 %v1251
  %2659 = vmatpush.bf16.msra.mxu0 %v1247
  %2660 = vmatpush.bf16.msra.mxu0 %v1243
  %2661 = vmatpush.bf16.msra.mxu0 %v1239
  %2662 = vmatpush.bf16.msra.mxu0 %v1235
  %2663 = vmatpush.bf16.msra.mxu0 %v1231
  %2664 = vmatmul.bf16.gmra.mxu0 %v2642
  %v2665 = vpop.f32.mrf.mxu0
  %v2666 = vadd.f32 0.0, %v2665
  %v2667 = vpop.f32.mrf.mxu0
  %2668 = vdwg.mxu0
  %2669 = vmatpush.bf16.msra.mxu0 %v1260
  %2670 = vmatpush.bf16.msra.mxu0 %v1256
  %2671 = vmatpush.bf16.msra.mxu0 %v1252
  %2672 = vmatpush.bf16.msra.mxu0 %v1248
  %2673 = vmatpush.bf16.msra.mxu0 %v1244
  %2674 = vmatpush.bf16.msra.mxu0 %v1240
  %2675 = vmatpush.bf16.msra.mxu0 %v1236
  %2676 = vmatpush.bf16.msra.mxu0 %v1232
  %2677 = vmatmul.bf16.gmra.mxu0 %v2642
  %v2678 = vpop.f32.mrf.mxu0
  %v2679 = vadd.f32 0.0, %v2678
  %v2680 = vpop.f32.mrf.mxu0
  %2681 = vdwg.mxu0
  %2682 = vmatpush.bf16.msra.mxu0 %v1261
  %2683 = vmatpush.bf16.msra.mxu0 %v1257
  %2684 = vmatpush.bf16.msra.mxu0 %v1253
  %2685 = vmatpush.bf16.msra.mxu0 %v1249
  %2686 = vmatpush.bf16.msra.mxu0 %v1245
  %2687 = vmatpush.bf16.msra.mxu0 %v1241
  %2688 = vmatpush.bf16.msra.mxu0 %v1237
  %2689 = vmatpush.bf16.msra.mxu0 %v1233
  %2690 = vmatmul.bf16.gmra.mxu0 %v2642
  %v2691 = vpop.f32.mrf.mxu0
  %v2692 = vadd.f32 0.0, %v2691
  %v2693 = vpop.f32.mrf.mxu0
  %2694 = vdwg.mxu0
  %v2695 = vadd.f32 %v2638, %v2653
  %v2696 = vadd.f32 %v2639, %v2666
  %v2697 = vadd.f32 %v2640, %v2679
  %v2698 = vadd.f32 %v2641, %v2692
  %v2699 = vxor.u32 %v2695, 2147483648
  %v2700 = vmul.f32 %v2699, 1.442695
  %v2701 = vpow.pop %v2700
  %v2702 = vadd.f32 %v2701, 1.0
  %v2703 = vrcp.pop %v2702
  %v2704 = vmul.f32 %v2702, %v2703
  %v2705 = vsub.f32 1.0, %v2704
  %v2706 = vmul.f32 %v2703, %v2705
  %v2707 = vadd.f32 %v2703, %v2706
  %vm2708 = vweird.f32 %v2702
  %vm2709 = vweird.f32 %v2703
  %vm2710 = vmor %vm2708, %vm2709
  %v2711 = vsel %vm2710, %v2703, %v2707
  %v2712 = vand.u32 2147483647, %v2702
  %vm2713 = vcmp.eq.f32.partialorder %v2712, 8.507059e+37
  %v2714 = vand.u32 %v2702, 2147483648
  %v2715 = vor.u32 1.1754944e-38, %v2714
  %v2716 = vsel %vm2713, %v2715, %v2711
  %v2717 = vmul.f32 1.0, %v2716
  %v2718 = vxor.u32 %v2696, 2147483648
  %v2719 = vmul.f32 %v2718, 1.442695
  %v2720 = vpow.pop %v2719
  %v2721 = vadd.f32 %v2720, 1.0
  %v2722 = vrcp.pop %v2721
  %v2723 = vmul.f32 %v2721, %v2722
  %v2724 = vsub.f32 1.0, %v2723
  %v2725 = vmul.f32 %v2722, %v2724
  %v2726 = vadd.f32 %v2722, %v2725
  %vm2727 = vweird.f32 %v2721
  %vm2728 = vweird.f32 %v2722
  %vm2729 = vmor %vm2727, %vm2728
  %v2730 = vsel %vm2729, %v2722, %v2726
  %v2731 = vand.u32 2147483647, %v2721
  %vm2732 = vcmp.eq.f32.partialorder %v2731, 8.507059e+37
  %v2733 = vand.u32 %v2721, 2147483648
  %v2734 = vor.u32 1.1754944e-38, %v2733
  %v2735 = vsel %vm2732, %v2734, %v2730
  %v2736 = vmul.f32 1.0, %v2735
  %v2737 = vtanh.pop %v2697
  %v2738 = vxor.u32 %v2698, 2147483648
  %v2739 = vmul.f32 %v2738, 1.442695
  %v2740 = vpow.pop %v2739
  %v2741 = vadd.f32 %v2740, 1.0
  %v2742 = vrcp.pop %v2741
  %v2743 = vmul.f32 %v2741, %v2742
  %v2744 = vsub.f32 1.0, %v2743
  %v2745 = vmul.f32 %v2742, %v2744
  %v2746 = vadd.f32 %v2742, %v2745
  %vm2747 = vweird.f32 %v2741
  %vm2748 = vweird.f32 %v2742
  %vm2749 = vmor %vm2747, %vm2748
  %v2750 = vsel %vm2749, %v2742, %v2746
  %v2751 = vand.u32 2147483647, %v2741
  %vm2752 = vcmp.eq.f32.partialorder %v2751, 8.507059e+37
  %v2753 = vand.u32 %v2741, 2147483648
  %v2754 = vor.u32 1.1754944e-38, %v2753
  %v2755 = vsel %vm2752, %v2754, %v2750
  %v2756 = vmul.f32 1.0, %v2755
  %v2757 = vmul.f32 %v2736, %v2501
  %v2758 = vmul.f32 %v2717, %v2737
  %v2759 = vadd.f32 %v2757, %v2758
  %v2760 = vtanh.pop %v2759
  %v2761 = vmul.f32 %v2756, %v2760
  %v2762 = vsel %vm1826, %v2761, %v2500
  %v2763 = vsel %vm1826, %v2759, %v2501
  %v2764 = vsel %vm1826, %v2761, 0.0
  %v2765 = vpack.c.bf16 %v2764, %v2764
  %s2766 = scalar_lea.vmem [#allocation5], 8
  %2767 = vst [vmem:[%s2766] sm:$0xf] %v2765
  %s2768 = scalar_lea.vmem [#allocation2], 192
  %v2769 = vld [vmem:[%s2768] sm:$0xff]
  %v2770 = vld [vmem:[%s2768 + $0x8] sm:$0xff]
  %v2771 = vld [vmem:[%s2768 + $0x10] sm:$0xff]
  %v2772 = vld [vmem:[%s2768 + $0x18] sm:$0xff]
  %v2773 = vpack.c.bf16 %v2631, %v2631
  %2774 = vmatpush.bf16.msra.mxu0 %v964
  %2775 = vmatpush.bf16.msra.mxu0 %v960
  %2776 = vmatpush.bf16.msra.mxu0 %v956
  %2777 = vmatpush.bf16.msra.mxu0 %v952
  %2778 = vmatpush.bf16.msra.mxu0 %v948
  %2779 = vmatpush.bf16.msra.mxu0 %v944
  %2780 = vmatpush.bf16.msra.mxu0 %v940
  %2781 = vmatpush.bf16.msra.mxu0 %v936
  %2782 = vmatmul.bf16.gmra.mxu0 %v2773
  %v2783 = vpop.f32.mrf.mxu0
  %v2784 = vadd.f32 0.0, %v2783
  %v2785 = vpop.f32.mrf.mxu0
  %2786 = vdwg.mxu0
  %2787 = vmatpush.bf16.msra.mxu0 %v965
  %2788 = vmatpush.bf16.msra.mxu0 %v961
  %2789 = vmatpush.bf16.msra.mxu0 %v957
  %2790 = vmatpush.bf16.msra.mxu0 %v953
  %2791 = vmatpush.bf16.msra.mxu0 %v949
  %2792 = vmatpush.bf16.msra.mxu0 %v945
  %2793 = vmatpush.bf16.msra.mxu0 %v941
  %2794 = vmatpush.bf16.msra.mxu0 %v937
  %2795 = vmatmul.bf16.gmra.mxu0 %v2773
  %v2796 = vpop.f32.mrf.mxu0
  %v2797 = vadd.f32 0.0, %v2796
  %v2798 = vpop.f32.mrf.mxu0
  %2799 = vdwg.mxu0
  %2800 = vmatpush.bf16.msra.mxu0 %v966
  %2801 = vmatpush.bf16.msra.mxu0 %v962
  %2802 = vmatpush.bf16.msra.mxu0 %v958
  %2803 = vmatpush.bf16.msra.mxu0 %v954
  %2804 = vmatpush.bf16.msra.mxu0 %v950
  %2805 = vmatpush.bf16.msra.mxu0 %v946
  %2806 = vmatpush.bf16.msra.mxu0 %v942
  %2807 = vmatpush.bf16.msra.mxu0 %v938
  %2808 = vmatmul.bf16.gmra.mxu0 %v2773
  %v2809 = vpop.f32.mrf.mxu0
  %v2810 = vadd.f32 0.0, %v2809
  %v2811 = vpop.f32.mrf.mxu0
  %2812 = vdwg.mxu0
  %2813 = vmatpush.bf16.msra.mxu0 %v967
  %2814 = vmatpush.bf16.msra.mxu0 %v963
  %2815 = vmatpush.bf16.msra.mxu0 %v959
  %2816 = vmatpush.bf16.msra.mxu0 %v955
  %2817 = vmatpush.bf16.msra.mxu0 %v951
  %2818 = vmatpush.bf16.msra.mxu0 %v947
  %2819 = vmatpush.bf16.msra.mxu0 %v943
  %2820 = vmatpush.bf16.msra.mxu0 %v939
  %2821 = vmatmul.bf16.gmra.mxu0 %v2773
  %v2822 = vpop.f32.mrf.mxu0
  %v2823 = vadd.f32 0.0, %v2822
  %v2824 = vpop.f32.mrf.mxu0
  %2825 = vdwg.mxu0
  %v2826 = vadd.f32 %v2769, %v2784
  %v2827 = vadd.f32 %v2770, %v2797
  %v2828 = vadd.f32 %v2771, %v2810
  %v2829 = vadd.f32 %v2772, %v2823
  %v2830 = vxor.u32 %v2826, 2147483648
  %v2831 = vmul.f32 %v2830, 1.442695
  %v2832 = vpow.pop %v2831
  %v2833 = vadd.f32 %v2832, 1.0
  %v2834 = vrcp.pop %v2833
  %v2835 = vmul.f32 %v2833, %v2834
  %v2836 = vsub.f32 1.0, %v2835
  %v2837 = vmul.f32 %v2834, %v2836
  %v2838 = vadd.f32 %v2834, %v2837
  %vm2839 = vweird.f32 %v2833
  %vm2840 = vweird.f32 %v2834
  %vm2841 = vmor %vm2839, %vm2840
  %v2842 = vsel %vm2841, %v2834, %v2838
  %v2843 = vand.u32 2147483647, %v2833
  %vm2844 = vcmp.eq.f32.partialorder %v2843, 8.507059e+37
  %v2845 = vand.u32 %v2833, 2147483648
  %v2846 = vor.u32 1.1754944e-38, %v2845
  %v2847 = vsel %vm2844, %v2846, %v2842
  %v2848 = vmul.f32 1.0, %v2847
  %v2849 = vxor.u32 %v2827, 2147483648
  %v2850 = vmul.f32 %v2849, 1.442695
  %v2851 = vpow.pop %v2850
  %v2852 = vadd.f32 %v2851, 1.0
  %v2853 = vrcp.pop %v2852
  %v2854 = vmul.f32 %v2852, %v2853
  %v2855 = vsub.f32 1.0, %v2854
  %v2856 = vmul.f32 %v2853, %v2855
  %v2857 = vadd.f32 %v2853, %v2856
  %vm2858 = vweird.f32 %v2852
  %vm2859 = vweird.f32 %v2853
  %vm2860 = vmor %vm2858, %vm2859
  %v2861 = vsel %vm2860, %v2853, %v2857
  %v2862 = vand.u32 2147483647, %v2852
  %vm2863 = vcmp.eq.f32.partialorder %v2862, 8.507059e+37
  %v2864 = vand.u32 %v2852, 2147483648
  %v2865 = vor.u32 1.1754944e-38, %v2864
  %v2866 = vsel %vm2863, %v2865, %v2861
  %v2867 = vmul.f32 1.0, %v2866
  %v2868 = vtanh.pop %v2828
  %v2869 = vxor.u32 %v2829, 2147483648
  %v2870 = vmul.f32 %v2869, 1.442695
  %v2871 = vpow.pop %v2870
  %v2872 = vadd.f32 %v2871, 1.0
  %v2873 = vrcp.pop %v2872
  %v2874 = vmul.f32 %v2872, %v2873
  %v2875 = vsub.f32 1.0, %v2874
  %v2876 = vmul.f32 %v2873, %v2875
  %v2877 = vadd.f32 %v2873, %v2876
  %vm2878 = vweird.f32 %v2872
  %vm2879 = vweird.f32 %v2873
  %vm2880 = vmor %vm2878, %vm2879
  %v2881 = vsel %vm2880, %v2873, %v2877
  %v2882 = vand.u32 2147483647, %v2872
  %vm2883 = vcmp.eq.f32.partialorder %v2882, 8.507059e+37
  %v2884 = vand.u32 %v2872, 2147483648
  %v2885 = vor.u32 1.1754944e-38, %v2884
  %v2886 = vsel %vm2883, %v2885, %v2881
  %v2887 = vmul.f32 1.0, %v2886
  %v2888 = vmul.f32 %v2867, %v2632
  %v2889 = vmul.f32 %v2848, %v2868
  %v2890 = vadd.f32 %v2888, %v2889
  %v2891 = vtanh.pop %v2890
  %v2892 = vmul.f32 %v2887, %v2891
  %v2893 = vsel %vm1689, %v2892, %v2631
  %v2894 = vsel %vm1689, %v2890, %v2632
  %v2895 = vsel %vm1689, %v2892, 0.0
  %v2896 = vpack.c.bf16 %v2895, %v2895
  %s2897 = scalar_lea.vmem [#allocation4], 24
  %2898 = vst [vmem:[%s2897] sm:$0xf] %v2896
  %s2899 = scalar_lea.vmem [#allocation3], 32
  %v2900 = vld [vmem:[%s2899] sm:$0xff]
  %v2901 = vld [vmem:[%s2899 + $0x8] sm:$0xff]
  %v2902 = vld [vmem:[%s2899 + $0x10] sm:$0xff]
  %v2903 = vld [vmem:[%s2899 + $0x18] sm:$0xff]
  %v2904 = vpack.c.bf16 %v2762, %v2762
  %2905 = vmatpush.bf16.msra.mxu0 %v1258
  %2906 = vmatpush.bf16.msra.mxu0 %v1254
  %2907 = vmatpush.bf16.msra.mxu0 %v1250
  %2908 = vmatpush.bf16.msra.mxu0 %v1246
  %2909 = vmatpush.bf16.msra.mxu0 %v1242
  %2910 = vmatpush.bf16.msra.mxu0 %v1238
  %2911 = vmatpush.bf16.msra.mxu0 %v1234
  %2912 = vmatpush.bf16.msra.mxu0 %v1230
  %2913 = vmatmul.bf16.gmra.mxu0 %v2904
  %v2914 = vpop.f32.mrf.mxu0
  %v2915 = vadd.f32 0.0, %v2914
  %v2916 = vpop.f32.mrf.mxu0
  %2917 = vdwg.mxu0
  %2918 = vmatpush.bf16.msra.mxu0 %v1259
  %2919 = vmatpush.bf16.msra.mxu0 %v1255
  %2920 = vmatpush.bf16.msra.mxu0 %v1251
  %2921 = vmatpush.bf16.msra.mxu0 %v1247
  %2922 = vmatpush.bf16.msra.mxu0 %v1243
  %2923 = vmatpush.bf16.msra.mxu0 %v1239
  %2924 = vmatpush.bf16.msra.mxu0 %v1235
  %2925 = vmatpush.bf16.msra.mxu0 %v1231
  %2926 = vmatmul.bf16.gmra.mxu0 %v2904
  %v2927 = vpop.f32.mrf.mxu0
  %v2928 = vadd.f32 0.0, %v2927
  %v2929 = vpop.f32.mrf.mxu0
  %2930 = vdwg.mxu0
  %2931 = vmatpush.bf16.msra.mxu0 %v1260
  %2932 = vmatpush.bf16.msra.mxu0 %v1256
  %2933 = vmatpush.bf16.msra.mxu0 %v1252
  %2934 = vmatpush.bf16.msra.mxu0 %v1248
  %2935 = vmatpush.bf16.msra.mxu0 %v1244
  %2936 = vmatpush.bf16.msra.mxu0 %v1240
  %2937 = vmatpush.bf16.msra.mxu0 %v1236
  %2938 = vmatpush.bf16.msra.mxu0 %v1232
  %2939 = vmatmul.bf16.gmra.mxu0 %v2904
  %v2940 = vpop.f32.mrf.mxu0
  %v2941 = vadd.f32 0.0, %v2940
  %v2942 = vpop.f32.mrf.mxu0
  %2943 = vdwg.mxu0
  %2944 = vmatpush.bf16.msra.mxu0 %v1261
  %2945 = vmatpush.bf16.msra.mxu0 %v1257
  %2946 = vmatpush.bf16.msra.mxu0 %v1253
  %2947 = vmatpush.bf16.msra.mxu0 %v1249
  %2948 = vmatpush.bf16.msra.mxu0 %v1245
  %2949 = vmatpush.bf16.msra.mxu0 %v1241
  %2950 = vmatpush.bf16.msra.mxu0 %v1237
  %2951 = vmatpush.bf16.msra.mxu0 %v1233
  %2952 = vmatmul.bf16.gmra.mxu0 %v2904
  %v2953 = vpop.f32.mrf.mxu0
  %v2954 = vadd.f32 0.0, %v2953
  %v2955 = vpop.f32.mrf.mxu0
  %2956 = vdwg.mxu0
  %v2957 = vadd.f32 %v2900, %v2915
  %v2958 = vadd.f32 %v2901, %v2928
  %v2959 = vadd.f32 %v2902, %v2941
  %v2960 = vadd.f32 %v2903, %v2954
  %v2961 = vxor.u32 %v2957, 2147483648
  %v2962 = vmul.f32 %v2961, 1.442695
  %v2963 = vpow.pop %v2962
  %v2964 = vadd.f32 %v2963, 1.0
  %v2965 = vrcp.pop %v2964
  %v2966 = vmul.f32 %v2964, %v2965
  %v2967 = vsub.f32 1.0, %v2966
  %v2968 = vmul.f32 %v2965, %v2967
  %v2969 = vadd.f32 %v2965, %v2968
  %vm2970 = vweird.f32 %v2964
  %vm2971 = vweird.f32 %v2965
  %vm2972 = vmor %vm2970, %vm2971
  %v2973 = vsel %vm2972, %v2965, %v2969
  %v2974 = vand.u32 2147483647, %v2964
  %vm2975 = vcmp.eq.f32.partialorder %v2974, 8.507059e+37
  %v2976 = vand.u32 %v2964, 2147483648
  %v2977 = vor.u32 1.1754944e-38, %v2976
  %v2978 = vsel %vm2975, %v2977, %v2973
  %v2979 = vmul.f32 1.0, %v2978
  %v2980 = vxor.u32 %v2958, 2147483648
  %v2981 = vmul.f32 %v2980, 1.442695
  %v2982 = vpow.pop %v2981
  %v2983 = vadd.f32 %v2982, 1.0
  %v2984 = vrcp.pop %v2983
  %v2985 = vmul.f32 %v2983, %v2984
  %v2986 = vsub.f32 1.0, %v2985
  %v2987 = vmul.f32 %v2984, %v2986
  %v2988 = vadd.f32 %v2984, %v2987
  %vm2989 = vweird.f32 %v2983
  %vm2990 = vweird.f32 %v2984
  %vm2991 = vmor %vm2989, %vm2990
  %v2992 = vsel %vm2991, %v2984, %v2988
  %v2993 = vand.u32 2147483647, %v2983
  %vm2994 = vcmp.eq.f32.partialorder %v2993, 8.507059e+37
  %v2995 = vand.u32 %v2983, 2147483648
  %v2996 = vor.u32 1.1754944e-38, %v2995
  %v2997 = vsel %vm2994, %v2996, %v2992
  %v2998 = vmul.f32 1.0, %v2997
  %v2999 = vtanh.pop %v2959
  %v3000 = vxor.u32 %v2960, 2147483648
  %v3001 = vmul.f32 %v3000, 1.442695
  %v3002 = vpow.pop %v3001
  %v3003 = vadd.f32 %v3002, 1.0
  %v3004 = vrcp.pop %v3003
  %v3005 = vmul.f32 %v3003, %v3004
  %v3006 = vsub.f32 1.0, %v3005
  %v3007 = vmul.f32 %v3004, %v3006
  %v3008 = vadd.f32 %v3004, %v3007
  %vm3009 = vweird.f32 %v3003
  %vm3010 = vweird.f32 %v3004
  %vm3011 = vmor %vm3009, %vm3010
  %v3012 = vsel %vm3011, %v3004, %v3008
  %v3013 = vand.u32 2147483647, %v3003
  %vm3014 = vcmp.eq.f32.partialorder %v3013, 8.507059e+37
  %v3015 = vand.u32 %v3003, 2147483648
  %v3016 = vor.u32 1.1754944e-38, %v3015
  %v3017 = vsel %vm3014, %v3016, %v3012
  %v3018 = vmul.f32 1.0, %v3017
  %v3019 = vmul.f32 %v2998, %v2763
  %v3020 = vmul.f32 %v2979, %v2999
  %v3021 = vadd.f32 %v3019, %v3020
  %v3022 = vtanh.pop %v3021
  %v3023 = vmul.f32 %v3018, %v3022
  %v3024 = vsel %vm1553, %v3023, %v2762
  %v3025 = vsel %vm1553, %v3021, %v2763
  %v3026 = vsel %vm1553, %v3023, 0.0
  %v3027 = vpack.c.bf16 %v3026, %v3026
  %s3028 = scalar_lea.vmem [#allocation5], 4
  %3029 = vst [vmem:[%s3028] sm:$0xf] %v3027
  %s3030 = scalar_lea.vmem [#allocation2], 224
  %v3031 = vld [vmem:[%s3030] sm:$0xff]
  %v3032 = vld [vmem:[%s3030 + $0x8] sm:$0xff]
  %v3033 = vld [vmem:[%s3030 + $0x10] sm:$0xff]
  %v3034 = vld [vmem:[%s3030 + $0x18] sm:$0xff]
  %v3035 = vpack.c.bf16 %v2893, %v2893
  %3036 = vmatpush.bf16.msra.mxu0 %v964
  %3037 = vmatpush.bf16.msra.mxu0 %v960
  %3038 = vmatpush.bf16.msra.mxu0 %v956
  %3039 = vmatpush.bf16.msra.mxu0 %v952
  %3040 = vmatpush.bf16.msra.mxu0 %v948
  %3041 = vmatpush.bf16.msra.mxu0 %v944
  %3042 = vmatpush.bf16.msra.mxu0 %v940
  %3043 = vmatpush.bf16.msra.mxu0 %v936
  %3044 = vmatmul.bf16.gmra.mxu0 %v3035
  %v3045 = vpop.f32.mrf.mxu0
  %v3046 = vadd.f32 0.0, %v3045
  %v3047 = vpop.f32.mrf.mxu0
  %3048 = vdwg.mxu0
  %3049 = vmatpush.bf16.msra.mxu0 %v965
  %3050 = vmatpush.bf16.msra.mxu0 %v961
  %3051 = vmatpush.bf16.msra.mxu0 %v957
  %3052 = vmatpush.bf16.msra.mxu0 %v953
  %3053 = vmatpush.bf16.msra.mxu0 %v949
  %3054 = vmatpush.bf16.msra.mxu0 %v945
  %3055 = vmatpush.bf16.msra.mxu0 %v941
  %3056 = vmatpush.bf16.msra.mxu0 %v937
  %3057 = vmatmul.bf16.gmra.mxu0 %v3035
  %v3058 = vpop.f32.mrf.mxu0
  %v3059 = vadd.f32 0.0, %v3058
  %v3060 = vpop.f32.mrf.mxu0
  %3061 = vdwg.mxu0
  %3062 = vmatpush.bf16.msra.mxu0 %v966
  %3063 = vmatpush.bf16.msra.mxu0 %v962
  %3064 = vmatpush.bf16.msra.mxu0 %v958
  %3065 = vmatpush.bf16.msra.mxu0 %v954
  %3066 = vmatpush.bf16.msra.mxu0 %v950
  %3067 = vmatpush.bf16.msra.mxu0 %v946
  %3068 = vmatpush.bf16.msra.mxu0 %v942
  %3069 = vmatpush.bf16.msra.mxu0 %v938
  %3070 = vmatmul.bf16.gmra.mxu0 %v3035
  %v3071 = vpop.f32.mrf.mxu0
  %v3072 = vadd.f32 0.0, %v3071
  %v3073 = vpop.f32.mrf.mxu0
  %3074 = vdwg.mxu0
  %3075 = vmatpush.bf16.msra.mxu0 %v967
  %3076 = vmatpush.bf16.msra.mxu0 %v963
  %3077 = vmatpush.bf16.msra.mxu0 %v959
  %3078 = vmatpush.bf16.msra.mxu0 %v955
  %3079 = vmatpush.bf16.msra.mxu0 %v951
  %3080 = vmatpush.bf16.msra.mxu0 %v947
  %3081 = vmatpush.bf16.msra.mxu0 %v943
  %3082 = vmatpush.bf16.msra.mxu0 %v939
  %3083 = vmatmul.bf16.gmra.mxu0 %v3035
  %v3084 = vpop.f32.mrf.mxu0
  %v3085 = vadd.f32 0.0, %v3084
  %v3086 = vpop.f32.mrf.mxu0
  %3087 = vdwg.mxu0
  %v3088 = vadd.f32 %v3031, %v3046
  %v3089 = vadd.f32 %v3032, %v3059
  %v3090 = vadd.f32 %v3033, %v3072
  %v3091 = vadd.f32 %v3034, %v3085
  %v3092 = vxor.u32 %v3088, 2147483648
  %v3093 = vmul.f32 %v3092, 1.442695
  %v3094 = vpow.pop %v3093
  %v3095 = vadd.f32 %v3094, 1.0
  %v3096 = vrcp.pop %v3095
  %v3097 = vmul.f32 %v3095, %v3096
  %v3098 = vsub.f32 1.0, %v3097
  %v3099 = vmul.f32 %v3096, %v3098
  %v3100 = vadd.f32 %v3096, %v3099
  %vm3101 = vweird.f32 %v3095
  %vm3102 = vweird.f32 %v3096
  %vm3103 = vmor %vm3101, %vm3102
  %v3104 = vsel %vm3103, %v3096, %v3100
  %v3105 = vand.u32 2147483647, %v3095
  %vm3106 = vcmp.eq.f32.partialorder %v3105, 8.507059e+37
  %v3107 = vand.u32 %v3095, 2147483648
  %v3108 = vor.u32 1.1754944e-38, %v3107
  %v3109 = vsel %vm3106, %v3108, %v3104
  %v3110 = vmul.f32 1.0, %v3109
  %v3111 = vxor.u32 %v3089, 2147483648
  %v3112 = vmul.f32 %v3111, 1.442695
  %v3113 = vpow.pop %v3112
  %v3114 = vadd.f32 %v3113, 1.0
  %v3115 = vrcp.pop %v3114
  %v3116 = vmul.f32 %v3114, %v3115
  %v3117 = vsub.f32 1.0, %v3116
  %v3118 = vmul.f32 %v3115, %v3117
  %v3119 = vadd.f32 %v3115, %v3118
  %vm3120 = vweird.f32 %v3114
  %vm3121 = vweird.f32 %v3115
  %vm3122 = vmor %vm3120, %vm3121
  %v3123 = vsel %vm3122, %v3115, %v3119
  %v3124 = vand.u32 2147483647, %v3114
  %vm3125 = vcmp.eq.f32.partialorder %v3124, 8.507059e+37
  %v3126 = vand.u32 %v3114, 2147483648
  %v3127 = vor.u32 1.1754944e-38, %v3126
  %v3128 = vsel %vm3125, %v3127, %v3123
  %v3129 = vmul.f32 1.0, %v3128
  %v3130 = vtanh.pop %v3090
  %v3131 = vxor.u32 %v3091, 2147483648
  %v3132 = vmul.f32 %v3131, 1.442695
  %v3133 = vpow.pop %v3132
  %v3134 = vadd.f32 %v3133, 1.0
  %v3135 = vrcp.pop %v3134
  %v3136 = vmul.f32 %v3134, %v3135
  %v3137 = vsub.f32 1.0, %v3136
  %v3138 = vmul.f32 %v3135, %v3137
  %v3139 = vadd.f32 %v3135, %v3138
  %vm3140 = vweird.f32 %v3134
  %vm3141 = vweird.f32 %v3135
  %vm3142 = vmor %vm3140, %vm3141
  %v3143 = vsel %vm3142, %v3135, %v3139
  %v3144 = vand.u32 2147483647, %v3134
  %vm3145 = vcmp.eq.f32.partialorder %v3144, 8.507059e+37
  %v3146 = vand.u32 %v3134, 2147483648
  %v3147 = vor.u32 1.1754944e-38, %v3146
  %v3148 = vsel %vm3145, %v3147, %v3143
  %v3149 = vmul.f32 1.0, %v3148
  %v3150 = vmul.f32 %v3129, %v2894
  %v3151 = vmul.f32 %v3110, %v3130
  %v3152 = vadd.f32 %v3150, %v3151
  %v3153 = vtanh.pop %v3152
  %v3154 = vmul.f32 %v3149, %v3153
  %v3155 = vsel %vm1418, %v3154, 0.0
  %v3156 = vpack.c.bf16 %v3155, %v3155
  %s3157 = scalar_lea.vmem [#allocation4], 28
  %3158 = vst [vmem:[%s3157] sm:$0xf] %v3156
  %v3159 = vld [vmem:[#allocation3] sm:$0xff]
  %v3160 = vld [vmem:[#allocation3 + $0x8] sm:$0xff]
  %v3161 = vld [vmem:[#allocation3 + $0x10] sm:$0xff]
  %v3162 = vld [vmem:[#allocation3 + $0x18] sm:$0xff]
  %v3163 = vpack.c.bf16 %v3024, %v3024
  %3164 = vmatpush.bf16.msra.mxu0 %v1258
  %3165 = vmatpush.bf16.msra.mxu0 %v1254
  %3166 = vmatpush.bf16.msra.mxu0 %v1250
  %3167 = vmatpush.bf16.msra.mxu0 %v1246
  %3168 = vmatpush.bf16.msra.mxu0 %v1242
  %3169 = vmatpush.bf16.msra.mxu0 %v1238
  %3170 = vmatpush.bf16.msra.mxu0 %v1234
  %3171 = vmatpush.bf16.msra.mxu0 %v1230
  %3172 = vmatmul.bf16.gmra.mxu0 %v3163
  %v3173 = vpop.f32.mrf.mxu0
  %v3174 = vadd.f32 0.0, %v3173
  %v3175 = vpop.f32.mrf.mxu0
  %3176 = vdwg.mxu0
  %3177 = vmatpush.bf16.msra.mxu0 %v1259
  %3178 = vmatpush.bf16.msra.mxu0 %v1255
  %3179 = vmatpush.bf16.msra.mxu0 %v1251
  %3180 = vmatpush.bf16.msra.mxu0 %v1247
  %3181 = vmatpush.bf16.msra.mxu0 %v1243
  %3182 = vmatpush.bf16.msra.mxu0 %v1239
  %3183 = vmatpush.bf16.msra.mxu0 %v1235
  %3184 = vmatpush.bf16.msra.mxu0 %v1231
  %3185 = vmatmul.bf16.gmra.mxu0 %v3163
  %v3186 = vpop.f32.mrf.mxu0
  %v3187 = vadd.f32 0.0, %v3186
  %v3188 = vpop.f32.mrf.mxu0
  %3189 = vdwg.mxu0
  %3190 = vmatpush.bf16.msra.mxu0 %v1260
  %3191 = vmatpush.bf16.msra.mxu0 %v1256
  %3192 = vmatpush.bf16.msra.mxu0 %v1252
  %3193 = vmatpush.bf16.msra.mxu0 %v1248
  %3194 = vmatpush.bf16.msra.mxu0 %v1244
  %3195 = vmatpush.bf16.msra.mxu0 %v1240
  %3196 = vmatpush.bf16.msra.mxu0 %v1236
  %3197 = vmatpush.bf16.msra.mxu0 %v1232
  %3198 = vmatmul.bf16.gmra.mxu0 %v3163
  %v3199 = vpop.f32.mrf.mxu0
  %v3200 = vadd.f32 0.0, %v3199
  %v3201 = vpop.f32.mrf.mxu0
  %3202 = vdwg.mxu0
  %3203 = vmatpush.bf16.msra.mxu0 %v1261
  %3204 = vmatpush.bf16.msra.mxu0 %v1257
  %3205 = vmatpush.bf16.msra.mxu0 %v1253
  %3206 = vmatpush.bf16.msra.mxu0 %v1249
  %3207 = vmatpush.bf16.msra.mxu0 %v1245
  %3208 = vmatpush.bf16.msra.mxu0 %v1241
  %3209 = vmatpush.bf16.msra.mxu0 %v1237
  %3210 = vmatpush.bf16.msra.mxu0 %v1233
  %3211 = vmatmul.bf16.gmra.mxu0 %v3163
  %v3212 = vpop.f32.mrf.mxu0
  %v3213 = vadd.f32 0.0, %v3212
  %v3214 = vpop.f32.mrf.mxu0
  %3215 = vdwg.mxu0
  %v3216 = vadd.f32 %v3159, %v3174
  %v3217 = vadd.f32 %v3160, %v3187
  %v3218 = vadd.f32 %v3161, %v3200
  %v3219 = vadd.f32 %v3162, %v3213
  %v3220 = vxor.u32 %v3216, 2147483648
  %v3221 = vmul.f32 %v3220, 1.442695
  %v3222 = vpow.pop %v3221
  %v3223 = vadd.f32 %v3222, 1.0
  %v3224 = vrcp.pop %v3223
  %v3225 = vmul.f32 %v3223, %v3224
  %v3226 = vsub.f32 1.0, %v3225
  %v3227 = vmul.f32 %v3224, %v3226
  %v3228 = vadd.f32 %v3224, %v3227
  %vm3229 = vweird.f32 %v3223
  %vm3230 = vweird.f32 %v3224
  %vm3231 = vmor %vm3229, %vm3230
  %v3232 = vsel %vm3231, %v3224, %v3228
  %v3233 = vand.u32 2147483647, %v3223
  %vm3234 = vcmp.eq.f32.partialorder %v3233, 8.507059e+37
  %v3235 = vand.u32 %v3223, 2147483648
  %v3236 = vor.u32 1.1754944e-38, %v3235
  %v3237 = vsel %vm3234, %v3236, %v3232
  %v3238 = vmul.f32 1.0, %v3237
  %v3239 = vxor.u32 %v3217, 2147483648
  %v3240 = vmul.f32 %v3239, 1.442695
  %v3241 = vpow.pop %v3240
  %v3242 = vadd.f32 %v3241, 1.0
  %v3243 = vrcp.pop %v3242
  %v3244 = vmul.f32 %v3242, %v3243
  %v3245 = vsub.f32 1.0, %v3244
  %v3246 = vmul.f32 %v3243, %v3245
  %v3247 = vadd.f32 %v3243, %v3246
  %vm3248 = vweird.f32 %v3242
  %vm3249 = vweird.f32 %v3243
  %vm3250 = vmor %vm3248, %vm3249
  %v3251 = vsel %vm3250, %v3243, %v3247
  %v3252 = vand.u32 2147483647, %v3242
  %vm3253 = vcmp.eq.f32.partialorder %v3252, 8.507059e+37
  %v3254 = vand.u32 %v3242, 2147483648
  %v3255 = vor.u32 1.1754944e-38, %v3254
  %v3256 = vsel %vm3253, %v3255, %v3251
  %v3257 = vmul.f32 1.0, %v3256
  %v3258 = vtanh.pop %v3218
  %v3259 = vxor.u32 %v3219, 2147483648
  %v3260 = vmul.f32 %v3259, 1.442695
  %v3261 = vpow.pop %v3260
  %v3262 = vadd.f32 %v3261, 1.0
  %v3263 = vrcp.pop %v3262
  %v3264 = vmul.f32 %v3262, %v3263
  %v3265 = vsub.f32 1.0, %v3264
  %v3266 = vmul.f32 %v3263, %v3265
  %v3267 = vadd.f32 %v3263, %v3266
  %vm3268 = vweird.f32 %v3262
  %vm3269 = vweird.f32 %v3263
  %vm3270 = vmor %vm3268, %vm3269
  %v3271 = vsel %vm3270, %v3263, %v3267
  %v3272 = vand.u32 2147483647, %v3262
  %vm3273 = vcmp.eq.f32.partialorder %v3272, 8.507059e+37
  %v3274 = vand.u32 %v3262, 2147483648
  %v3275 = vor.u32 1.1754944e-38, %v3274
  %v3276 = vsel %vm3273, %v3275, %v3271
  %v3277 = vmul.f32 1.0, %v3276
  %v3278 = vmul.f32 %v3257, %v3025
  %v3279 = vmul.f32 %v3238, %v3258
  %v3280 = vadd.f32 %v3278, %v3279
  %v3281 = vtanh.pop %v3280
  %v3282 = vmul.f32 %v3277, %v3281
  %v3283 = vsel %vm1124, %v3282, 0.0
  %v3284 = vpack.c.bf16 %v3283, %v3283
  %3285 = vst [vmem:[#allocation5] sm:$0xf] %v3284
  %v3286 = vld [vmem:[#allocation4] sm:$0xf]
  %v3287 = vld [vmem:[#allocation4 + $0x4] sm:$0xf]
  %v3288 = vld [vmem:[#allocation4 + $0x8] sm:$0xf]
  %v3289 = vld [vmem:[#allocation4 + $0xc] sm:$0xf]
  %v3290 = vld [vmem:[#allocation4 + $0x10] sm:$0xf]
  %v3291 = vld [vmem:[#allocation4 + $0x14] sm:$0xf]
  %v3292 = vld [vmem:[#allocation4 + $0x18] sm:$0xf]
  %v3293 = vld [vmem:[#allocation4 + $0x1c] sm:$0xf]
  %v3294 = vld [vmem:[#allocation5] sm:$0xf]
  %v3295 = vld [vmem:[#allocation5 + $0x4] sm:$0xf]
  %v3296 = vld [vmem:[#allocation5 + $0x8] sm:$0xf]
  %v3297 = vld [vmem:[#allocation5 + $0xc] sm:$0xf]
  %v3298 = vld [vmem:[#allocation5 + $0x10] sm:$0xf]
  %v3299 = vld [vmem:[#allocation5 + $0x14] sm:$0xf]
  %v3300 = vld [vmem:[#allocation5 + $0x18] sm:$0xf]
  %v3301 = vld [vmem:[#allocation5 + $0x1c] sm:$0xf]
  %v3302 = vld [vmem:[%s8] sm:$0xf]
  %v3303 = vld [vmem:[%s8 + $0x4] sm:$0xf]
  %v3304 = vld [vmem:[%s8 + $0x8] sm:$0xf]
  %v3305 = vld [vmem:[%s8 + $0xc] sm:$0xf]
  %v3306 = vld [vmem:[%s8 + $0x10] sm:$0xf]
  %v3307 = vld [vmem:[%s8 + $0x14] sm:$0xf]
  %v3308 = vld [vmem:[%s8 + $0x18] sm:$0xf]
  %v3309 = vld [vmem:[%s8 + $0x1c] sm:$0xf]
  %v3310 = vld [vmem:[%s8 + $0x20] sm:$0xf]
  %v3311 = vld [vmem:[%s8 + $0x24] sm:$0xf]
  %v3312 = vld [vmem:[%s8 + $0x28] sm:$0xf]
  %v3313 = vld [vmem:[%s8 + $0x2c] sm:$0xf]
  %v3314 = vld [vmem:[%s8 + $0x30] sm:$0xf]
  %v3315 = vld [vmem:[%s8 + $0x34] sm:$0xf]
  %v3316 = vld [vmem:[%s8 + $0x38] sm:$0xf]
  %v3317 = vld [vmem:[%s8 + $0x3c] sm:$0xf]
  %v3318 = vld [vmem:[%s9] sm:$0xf]
  %v3319 = vld [vmem:[%s9 + $0x4] sm:$0xf]
  %v3320 = vld [vmem:[%s9 + $0x8] sm:$0xf]
  %v3321 = vld [vmem:[%s9 + $0xc] sm:$0xf]
  %v3322 = vld [vmem:[%s9 + $0x10] sm:$0xf]
  %v3323 = vld [vmem:[%s9 + $0x14] sm:$0xf]
  %v3324 = vld [vmem:[%s9 + $0x18] sm:$0xf]
  %v3325 = vld [vmem:[%s9 + $0x1c] sm:$0xf]
  %v3326 = vld [vmem:[%s9 + $0x20] sm:$0xf]
  %v3327 = vld [vmem:[%s9 + $0x24] sm:$0xf]
  %v3328 = vld [vmem:[%s9 + $0x28] sm:$0xf]
  %v3329 = vld [vmem:[%s9 + $0x2c] sm:$0xf]
  %v3330 = vld [vmem:[%s9 + $0x30] sm:$0xf]
  %v3331 = vld [vmem:[%s9 + $0x34] sm:$0xf]
  %v3332 = vld [vmem:[%s9 + $0x38] sm:$0xf]
  %v3333 = vld [vmem:[%s9 + $0x3c] sm:$0xf]
  %v3342 = vunpack.c.l.b16 %v3294
  %v3343 = vunpack.c.l.b16 %v3295
  %v3344 = vunpack.c.l.b16 %v3296
  %v3345 = vunpack.c.l.b16 %v3297
  %v3346 = vunpack.c.l.b16 %v3298
  %v3347 = vunpack.c.l.b16 %v3299
  %v3348 = vunpack.c.l.b16 %v3300
  %v3349 = vunpack.c.l.b16 %v3301
  %v3350 = vpack.c.b16 %v3343, %v3342
  %v3351 = vpack.c.b16 %v3345, %v3344
  %v3352 = vpack.c.b16 %v3347, %v3346
  %v3353 = vpack.c.b16 %v3349, %v3348
  %v3374 = vunpack.c.l.b16 %v3318
  %v3375 = vunpack.c.l.b16 %v3319
  %v3376 = vunpack.c.l.b16 %v3320
  %v3377 = vunpack.c.l.b16 %v3321
  %v3378 = vunpack.c.l.b16 %v3322
  %v3379 = vunpack.c.l.b16 %v3323
  %v3380 = vunpack.c.l.b16 %v3324
  %v3381 = vunpack.c.l.b16 %v3325
  %v3382 = vunpack.c.l.b16 %v3326
  %v3383 = vunpack.c.l.b16 %v3327
  %v3384 = vunpack.c.l.b16 %v3328
  %v3385 = vunpack.c.l.b16 %v3329
  %v3386 = vunpack.c.l.b16 %v3330
  %v3387 = vunpack.c.l.b16 %v3331
  %v3388 = vunpack.c.l.b16 %v3332
  %v3389 = vunpack.c.l.b16 %v3333
  %v3390 = vpack.c.b16 %v3375, %v3374
  %v3391 = vpack.c.b16 %v3377, %v3376
  %v3392 = vpack.c.b16 %v3379, %v3378
  %v3393 = vpack.c.b16 %v3381, %v3380
  %v3394 = vpack.c.b16 %v3383, %v3382
  %v3395 = vpack.c.b16 %v3385, %v3384
  %v3396 = vpack.c.b16 %v3387, %v3386
  %v3397 = vpack.c.b16 %v3389, %v3388
  %3406 = vmatpush.bf16.msra.mxu0 %v3397
  %3407 = vmatpush.bf16.msra.mxu0 %v3396
  %3408 = vmatpush.bf16.msra.mxu0 %v3395
  %3409 = vmatpush.bf16.msra.mxu0 %v3394
  %3410 = vmatpush.bf16.msra.mxu0 %v3393
  %3411 = vmatpush.bf16.msra.mxu0 %v3392
  %3412 = vmatpush.bf16.msra.mxu0 %v3391
  %3413 = vmatpush.bf16.msra.mxu0 %v3390
  %3414 = vmatmul.bf16.gmra.mxu0 %v3350
  %v3415 = vpop.f32.mrf.mxu0
  %v3416 = vadd.f32 0.0, %v3415
  %v3417 = vpop.f32.mrf.mxu0
  %v3418 = vadd.f32 0.0, %v3417
  %3419 = vmatmul.bf16.gmra.mxu0 %v3351
  %v3420 = vpop.f32.mrf.mxu0
  %v3421 = vadd.f32 0.0, %v3420
  %v3422 = vpop.f32.mrf.mxu0
  %v3423 = vadd.f32 0.0, %v3422
  %3424 = vmatmul.bf16.gmra.mxu0 %v3352
  %v3425 = vpop.f32.mrf.mxu0
  %v3426 = vadd.f32 0.0, %v3425
  %v3427 = vpop.f32.mrf.mxu0
  %v3428 = vadd.f32 0.0, %v3427
  %3429 = vmatmul.bf16.gmra.mxu0 %v3353
  %v3430 = vpop.f32.mrf.mxu0
  %v3431 = vadd.f32 0.0, %v3430
  %v3432 = vpop.f32.mrf.mxu0
  %v3433 = vadd.f32 0.0, %v3432
  %3434 = vdwg.mxu0
  %v3443 = vunpack.c.l.b16 %v3286
  %v3444 = vunpack.c.l.b16 %v3287
  %v3445 = vunpack.c.l.b16 %v3288
  %v3446 = vunpack.c.l.b16 %v3289
  %v3447 = vunpack.c.l.b16 %v3290
  %v3448 = vunpack.c.l.b16 %v3291
  %v3449 = vunpack.c.l.b16 %v3292
  %v3450 = vunpack.c.l.b16 %v3293
  %v3451 = vpack.c.b16 %v3444, %v3443
  %v3452 = vpack.c.b16 %v3446, %v3445
  %v3453 = vpack.c.b16 %v3448, %v3447
  %v3454 = vpack.c.b16 %v3450, %v3449
  %v3475 = vunpack.c.l.b16 %v3302
  %v3476 = vunpack.c.l.b16 %v3303
  %v3477 = vunpack.c.l.b16 %v3304
  %v3478 = vunpack.c.l.b16 %v3305
  %v3479 = vunpack.c.l.b16 %v3306
  %v3480 = vunpack.c.l.b16 %v3307
  %v3481 = vunpack.c.l.b16 %v3308
  %v3482 = vunpack.c.l.b16 %v3309
  %v3483 = vunpack.c.l.b16 %v3310
  %v3484 = vunpack.c.l.b16 %v3311
  %v3485 = vunpack.c.l.b16 %v3312
  %v3486 = vunpack.c.l.b16 %v3313
  %v3487 = vunpack.c.l.b16 %v3314
  %v3488 = vunpack.c.l.b16 %v3315
  %v3489 = vunpack.c.l.b16 %v3316
  %v3490 = vunpack.c.l.b16 %v3317
  %v3491 = vpack.c.b16 %v3476, %v3475
  %v3492 = vpack.c.b16 %v3478, %v3477
  %v3493 = vpack.c.b16 %v3480, %v3479
  %v3494 = vpack.c.b16 %v3482, %v3481
  %v3495 = vpack.c.b16 %v3484, %v3483
  %v3496 = vpack.c.b16 %v3486, %v3485
  %v3497 = vpack.c.b16 %v3488, %v3487
  %v3498 = vpack.c.b16 %v3490, %v3489
  %3507 = vmatpush.bf16.msra.mxu0 %v3498
  %3508 = vmatpush.bf16.msra.mxu0 %v3497
  %3509 = vmatpush.bf16.msra.mxu0 %v3496
  %3510 = vmatpush.bf16.msra.mxu0 %v3495
  %3511 = vmatpush.bf16.msra.mxu0 %v3494
  %3512 = vmatpush.bf16.msra.mxu0 %v3493
  %3513 = vmatpush.bf16.msra.mxu0 %v3492
  %3514 = vmatpush.bf16.msra.mxu0 %v3491
  %3515 = vmatmul.bf16.gmra.mxu0 %v3451
  %v3516 = vpop.f32.mrf.mxu0
  %v3517 = vadd.f32 %v3416, %v3516
  %v3518 = vpop.f32.mrf.mxu0
  %v3519 = vadd.f32 %v3418, %v3518
  %3520 = vmatmul.bf16.gmra.mxu0 %v3452
  %v3521 = vpop.f32.mrf.mxu0
  %v3522 = vadd.f32 %v3421, %v3521
  %v3523 = vpop.f32.mrf.mxu0
  %v3524 = vadd.f32 %v3423, %v3523
  %3525 = vmatmul.bf16.gmra.mxu0 %v3453
  %v3526 = vpop.f32.mrf.mxu0
  %v3527 = vadd.f32 %v3426, %v3526
  %v3528 = vpop.f32.mrf.mxu0
  %v3529 = vadd.f32 %v3428, %v3528
  %3530 = vmatmul.bf16.gmra.mxu0 %v3454
  %v3531 = vpop.f32.mrf.mxu0
  %v3532 = vadd.f32 %v3431, %v3531
  %v3533 = vpop.f32.mrf.mxu0
  %v3534 = vadd.f32 %v3433, %v3533
  %3535 = vdwg.mxu0
  %v3536 = vld [vmem:[%s10] sm:$0x1]
  %v3538 = vperm.slane %v3536, 0
  %v3540 = vadd.f32 %v3517, %v3538
  %v3541 = vadd.f32 %v3519, %v3538
  %v3542 = vadd.f32 %v3522, %v3538
  %v3543 = vadd.f32 %v3524, %v3538
  %v3544 = vadd.f32 %v3527, %v3538
  %v3545 = vadd.f32 %v3529, %v3538
  %v3546 = vadd.f32 %v3532, %v3538
  %v3547 = vadd.f32 %v3534, %v3538
  %3548 = vst [vmem:[%s11] sm:$0xff] %v3540
  %3549 = vst [vmem:[%s11 + $0x8] sm:$0xff] %v3541
  %3550 = vst [vmem:[%s11 + $0x10] sm:$0xff] %v3542
  %3551 = vst [vmem:[%s11 + $0x18] sm:$0xff] %v3543
  %3552 = vst [vmem:[%s11 + $0x20] sm:$0xff] %v3544
  %3553 = vst [vmem:[%s11 + $0x28] sm:$0xff] %v3545
  %3554 = vst [vmem:[%s11 + $0x30] sm:$0xff] %v3546
  %3555 = vst [vmem:[%s11 + $0x38] sm:$0xff] %v3547
  // Predicated region
  $region46: #{bilstm_forward.1} parent=0 // pred_check
    _
  $region47: #{bilstm_forward.1} parent=0 // pred_check_branch
    %3557 = sbr.rel (0) target = $region49
  $region48: #{bilstm_forward.1} parent=0 // pred_region
    _
  $region49: #{bilstm_forward.1} parent=0 // pred_fallthru
    _
  // Predicated region
  $region50: #{bilstm_forward.1} parent=0 // pred_check
    _
  $region51: #{bilstm_forward.1} parent=0 // pred_check_branch
    %3559 = sbr.rel (0) target = $region53
  $region52: #{bilstm_forward.1} parent=0 // pred_region
    _
  $region53: #{bilstm_forward.1} parent=0 // pred_fallthru
    _

</llo_original>
